<compile_context>
chip_gen: v7x
topology: tpu7x:2x2x1
jax: 0.10.0
libtpu: 0.0.40
codegen_flags: <defaults>
</compile_context>

<pallas_src>
import functools

import numpy as np
import jax
import jax.numpy as jnp
from jax import lax
from jax.experimental import pallas as pl
from jax.experimental.pallas import tpu as pltpu

BN_EPS = 1e-5


# ----------------------------------------------------------------------------
# Host-side helpers: generation-aware VMEM limit and tile pickers.
# ----------------------------------------------------------------------------
@functools.lru_cache(maxsize=None)
def _vmem_limit_bytes():
    """~3/4 of physical VMEM (96 MiB on v5e/v6e, 48 MiB on v7x), capped at 100 MiB."""
    cap = 64 * 1024 * 1024
    try:
        cap = int(pltpu.get_tpu_info().vmem_capacity_bytes)
    except Exception:
        pass
    return int(min(cap * 3 // 4, 100 * 1024 * 1024))


def _compiler_params(dim_sem):
    return pltpu.CompilerParams(dimension_semantics=dim_sem,
                                vmem_limit_bytes=_vmem_limit_bytes())


def _conv_row_tile(h_out, w_out, target_rows=512):
    """Largest divisor of h_out with th*w_out <= target_rows (bounds live set)."""
    # TODO(synk): drop target_rows to ~256 on v5e (128-wide MXU, tighter vregs).
    th = 1
    for t in range(1, h_out + 1):
        if h_out % t == 0 and t * w_out <= target_rows:
            th = t
    return th


def _flat_row_tile(total_rows, bytes_per_row, target_bytes=6 * 1024 * 1024):
    """Row tile for the flattened elementwise kernel, sized by bytes."""
    if total_rows * bytes_per_row <= target_bytes:
        return total_rows
    cap = max(8, target_bytes // bytes_per_row)
    divs = [t for t in range(1, total_rows + 1)
            if total_rows % t == 0 and t <= cap]
    mult8 = [t for t in divs if t % 8 == 0]
    return max(mult8) if mult8 else max(divs)


# ----------------------------------------------------------------------------
# Kernel 1: fused [optional BN-affine+ReLU on input] -> [optional nearest
# upsample] -> zero-pad (VMEM scratch, border-only memset) -> 3x3 conv
# (row-tiled; per-tap matmuls for small Cin, im2col for large Cin) ->
# per-image per-channel sum / sumsq partials (from the f32 accumulator).
# Grid iterates over batch images ("parallel": stats are per-image partials).
# ----------------------------------------------------------------------------
def _conv3x3_kernel(*refs, upsample, fuse_in, th, use_bf16, use_im2col):
    if fuse_in:
        (x_ref, w_ref, b_ref, isc_ref, ish_ref,
         out_ref, sum_ref, ssq_ref, pad_ref) = refs
    else:
        (x_ref, w_ref, b_ref,
         out_ref, sum_ref, ssq_ref, pad_ref) = refs
        isc_ref = ish_ref = None

    h_in, w_in, cin = x_ref.shape
    h_out, w_out, cout = out_ref.shape
    hp, wp, _ = pad_ref.shape                  # (h_out + 2, w_out + 2, cin)
    s = upsample
    cdt = jnp.bfloat16 if use_bf16 else jnp.float32

    # --- 1) load input tile (f32 math); optionally fused BN2 affine + ReLU.
    x = x_ref[...].astype(jnp.float32)
    if fuse_in:
        x = jnp.maximum(x * isc_ref[0] + ish_ref[0], 0.0)

    # --- 2) zero ONLY the 1-px border (interior fully overwritten each step;
    #        re-zeroed every step so a future per-core grid split stays safe),
    #        then bulk-store the (optionally nearest-upsampled) image.
    pad_ref[0:1, :, :] = jnp.zeros((1, wp, cin), jnp.float32)
    pad_ref[hp - 1:hp, :, :] = jnp.zeros((1, wp, cin), jnp.float32)
    pad_ref[:, 0:1, :] = jnp.zeros((hp, 1, cin), jnp.float32)
    pad_ref[:, wp - 1:wp, :] = jnp.zeros((hp, 1, cin), jnp.float32)
    if s == 1:
        pad_ref[1:h_out + 1, 1:w_out + 1, :] = x
    else:
        # Nearest upsample via concat-over-new-axis + reshape (lane dim kept
        # last); a single bulk store replaces the old per-column store loop.
        xh = jnp.concatenate([x[:, None]] * s, axis=1)
        xh = xh.reshape(s * h_in, w_in, cin)
        xw = jnp.concatenate([xh[:, :, None, :]] * s, axis=2)
        xw = xw.reshape(s * h_in, s * w_in, cin)
        pad_ref[1:h_out + 1, 1:w_out + 1, :] = xw

    # --- 3) row-tiled conv.  Bias broadcast hoisted out of the loop.
    wmat = w_ref[...].astype(cdt)                                   # (9*cin, cout)
    bias_b = jnp.broadcast_to(b_ref[...], (th * w_out, cout)).astype(jnp.float32)
    n_tiles = h_out // th

    def tile_body(i, carry):
        s_acc, ss_acc = carry
        r0 = i * th
        bandfull = pad_ref[pl.ds(r0, th + 2), :, :]     # (th+2, w_out+2, cin)
        if use_im2col:
            # Large-channel path: fold 9 taps into the contraction dim.
            taps = []
            for kh in range(3):
                band = bandfull[kh:kh + th]
                for kw in range(3):
                    taps.append(band[:, kw:kw + w_out, :])
            patch = jnp.concatenate(taps, axis=-1).reshape(th * w_out, 9 * cin)
            y = jnp.dot(patch.astype(cdt), wmat,
                        preferred_element_type=jnp.float32) + bias_b
        else:
            # Small-channel path: 9 per-tap matmuls (K = cin) accumulated in
            # f32 -- no lane-axis concatenate / lane packing.
            y = bias_b
            for kh in range(3):
                band = bandfull[kh:kh + th]
                for kw in range(3):
                    tap = band[:, kw:kw + w_out, :].reshape(th * w_out, cin)
                    t = kh * 3 + kw
                    wk = wmat[t * cin:(t + 1) * cin, :]
                    y = y + jnp.dot(tap.astype(cdt), wk,
                                    preferred_element_type=jnp.float32)
        out_ref[pl.ds(r0, th), :, :] = y.reshape(th, w_out, cout).astype(out_ref.dtype)
        # Stats from the f32 accumulator (not the possibly-bf16 stored tensor).
        s_acc = s_acc + jnp.sum(y, axis=0, keepdims=True)
        ss_acc = ss_acc + jnp.sum(y * y, axis=0, keepdims=True)
        return s_acc, ss_acc

    zeros = jnp.zeros((1, cout), jnp.float32)
    s_fin, ss_fin = lax.fori_loop(0, n_tiles, tile_body, (zeros, zeros))
    sum_ref[...] = s_fin
    ssq_ref[...] = ss_fin


def conv3x3_bn_stats(x, w, b, in_scale=None, in_bias=None,
                     upsample=1, use_bf16=True):
    """NHWC fused block: [affine+relu] -> [nearest up x s] -> pad1 -> 3x3 conv.

    Returns (out, per-image channel sums, per-image channel sum-of-squares).
    In bf16 mode, inputs/weights/outputs are bf16 in HBM; accumulation and
    stats stay f32.
    """
    N, H, W, Cin = x.shape
    Cout = w.shape[-1]
    s = int(upsample)
    Ho, Wo = s * H, s * W
    th = _conv_row_tile(Ho, Wo)
    fuse_in = in_scale is not None
    use_im2col = Cin >= 32
    cdt = jnp.bfloat16 if use_bf16 else jnp.float32

    wmat = w.reshape(9 * Cin, Cout).astype(cdt)
    b2 = b.reshape(1, Cout).astype(jnp.float32)

    kernel = functools.partial(_conv3x3_kernel, upsample=s, fuse_in=fuse_in,
                               th=th, use_bf16=use_bf16, use_im2col=use_im2col)

    in_specs = [
        pl.BlockSpec((None, H, W, Cin), lambda n: (n, 0, 0, 0)),
        pl.BlockSpec((9 * Cin, Cout), lambda n: (0, 0)),
        pl.BlockSpec((1, Cout), lambda n: (0, 0)),
    ]
    args = [x.astype(cdt), wmat, b2]
    if fuse_in:
        in_specs += [pl.BlockSpec((1, Cin), lambda n: (0, 0)),
                     pl.BlockSpec((1, Cin), lambda n: (0, 0))]
        args += [in_scale.reshape(1, Cin).astype(jnp.float32),
                 in_bias.reshape(1, Cin).astype(jnp.float32)]

    out, psum, pssq = pl.pallas_call(
        kernel,
        out_shape=(
            jax.ShapeDtypeStruct((N, Ho, Wo, Cout), cdt),
            jax.ShapeDtypeStruct((N, 1, Cout), jnp.float32),
            jax.ShapeDtypeStruct((N, 1, Cout), jnp.float32),
        ),
        grid=(N,),
        in_specs=in_specs,
        out_specs=(
            pl.BlockSpec((None, Ho, Wo, Cout), lambda n: (n, 0, 0, 0)),
            pl.BlockSpec((None, 1, Cout), lambda n: (n, 0, 0)),
            pl.BlockSpec((None, 1, Cout), lambda n: (n, 0, 0)),
        ),
        scratch_shapes=[pltpu.VMEM((Ho + 2, Wo + 2, Cin), jnp.float32)],
        compiler_params=_compiler_params(("parallel",)),
    )(*args)
    return out, psum, pssq


# ----------------------------------------------------------------------------
# Kernel 2: fused dual-affine residual add + ReLU, lane-dense over (N*H, W*C):
#   out = relu(y * s1 + b1 + r * s2 + b2)
# Covers both "bn1(...) + identity" and "bn1(...) + bn_sc(conv_sc(...))".
# ----------------------------------------------------------------------------
def _fused_bn_add_relu_kernel(y_ref, r_ref, s1_ref, b1_ref, s2_ref, b2_ref,
                              o_ref):
    y = y_ref[...].astype(jnp.float32)
    r = r_ref[...].astype(jnp.float32)
    out = y * s1_ref[...] + b1_ref[...] + (r * s2_ref[...] + b2_ref[...])
    o_ref[...] = jnp.maximum(out, 0.0)


def fused_bn_add_relu(y, resid, scale1, bias1, scale2, bias2):
    N, H, W, C = y.shape
    R, WC = N * H, W * C
    y2d = y.reshape(R, WC)
    r2d = resid.reshape(R, WC)

    # Pre-broadcast per-channel affine vectors to lane-dense (1, W*C):
    # flat index k = w*C + c maps to channel c, so tile the C-vector W times.
    def _tile(v):
        return jnp.tile(v.astype(jnp.float32).reshape(1, C), (1, W))

    s1, b1 = _tile(scale1), _tile(bias1)
    s2, b2 = _tile(scale2), _tile(bias2)

    bytes_per_row = WC * (y2d.dtype.itemsize + r2d.dtype.itemsize + 4)
    tr = _flat_row_tile(R, bytes_per_row)

    out = pl.pallas_call(
        _fused_bn_add_relu_kernel,
        out_shape=jax.ShapeDtypeStruct((R, WC), jnp.float32),
        grid=(R // tr,),
        in_specs=[
            pl.BlockSpec((tr, WC), lambda i: (i, 0)),
            pl.BlockSpec((tr, WC), lambda i: (i, 0)),
            pl.BlockSpec((1, WC), lambda i: (0, 0)),
            pl.BlockSpec((1, WC), lambda i: (0, 0)),
            pl.BlockSpec((1, WC), lambda i: (0, 0)),
            pl.BlockSpec((1, WC), lambda i: (0, 0)),
        ],
        out_specs=pl.BlockSpec((tr, WC), lambda i: (i, 0)),
        compiler_params=_compiler_params(("parallel",)),
    )(y2d, r2d, s1, b1, s2, b2)
    return out.reshape(N, H, W, C)


# ----------------------------------------------------------------------------
# Glue (plain JAX): reduce per-image stats partials -> BN affine; param init.
# ----------------------------------------------------------------------------
def bn_affine_from_stats(psum, pssq, gamma, beta, count):
    s = jnp.sum(psum, axis=(0, 1))
    ss = jnp.sum(pssq, axis=(0, 1))
    mean = s / count
    var = jnp.maximum(ss / count - mean * mean, 0.0)   # biased var, clamp cancellation
    scale = gamma / jnp.sqrt(var + BN_EPS)
    bias = beta - mean * scale
    return scale, bias


def init_params(key, in_planes, stride):
    planes = in_planes // stride
    k = jax.random.split(key, 10)
    p = {}
    p["conv2_w"] = 0.1 * jax.random.normal(k[0], (3, 3, in_planes, in_planes), jnp.float32)
    p["conv2_b"] = jnp.zeros((in_planes,), jnp.float32)            # bias=False
    p["bn2_gamma"] = 1.0 + 0.1 * jax.random.normal(k[1], (in_planes,), jnp.float32)
    p["bn2_beta"] = 0.1 * jax.random.normal(k[2], (in_planes,), jnp.float32)
    p["conv1_w"] = 0.1 * jax.random.normal(k[3], (3, 3, in_planes, planes), jnp.float32)
    if stride == 1:
        p["conv1_b"] = jnp.zeros((planes,), jnp.float32)           # bias=False
    else:
        p["conv1_b"] = 0.1 * jax.random.normal(k[4], (planes,), jnp.float32)
        p["sc_conv_w"] = 0.1 * jax.random.normal(k[5], (3, 3, in_planes, planes), jnp.float32)
        p["sc_conv_b"] = 0.1 * jax.random.normal(k[6], (planes,), jnp.float32)
        p["sc_bn_gamma"] = 1.0 + 0.1 * jax.random.normal(k[7], (planes,), jnp.float32)
        p["sc_bn_beta"] = 0.1 * jax.random.normal(k[8], (planes,), jnp.float32)
    p["bn1_gamma"] = 1.0 + 0.1 * jax.random.normal(k[9], (planes,), jnp.float32)
    p["bn1_beta"] = jnp.zeros((planes,), jnp.float32)
    return p


# ----------------------------------------------------------------------------
# Forward pass (matches BasicBlockDec.forward).
# ----------------------------------------------------------------------------
def basic_block_dec_forward(x_nchw, params, stride=1, use_bf16=True):
    x = jnp.transpose(x_nchw, (0, 2, 3, 1)).astype(jnp.float32)   # NCHW -> NHWC
    N, H, W, Cin = x.shape
    planes = params["conv1_w"].shape[-1]

    # y2 = conv2(x); BN2 stats from y2 (affine applied fused into the next conv)
    y2, s2, ss2 = conv3x3_bn_stats(x, params["conv2_w"], params["conv2_b"],
                                   use_bf16=use_bf16)
    sc2, b2 = bn_affine_from_stats(s2, ss2, params["bn2_gamma"],
                                   params["bn2_beta"], N * H * W)

    if stride == 1:
        # conv1( relu(bn2(y2)) )  -- BN2 affine + ReLU fused into the conv kernel.
        y1, s1, ss1 = conv3x3_bn_stats(y2, params["conv1_w"], params["conv1_b"],
                                       in_scale=sc2, in_bias=b2, use_bf16=use_bf16)
        sc1, bb1 = bn_affine_from_stats(s1, ss1, params["bn1_gamma"],
                                        params["bn1_beta"], N * H * W)
        ones = jnp.ones((planes,), jnp.float32)
        zeros = jnp.zeros((planes,), jnp.float32)
        out = fused_bn_add_relu(y1, x, sc1, bb1, ones, zeros)     # + identity shortcut
    else:
        s = int(stride)
        Ho, Wo = s * H, s * W
        count_u = N * Ho * Wo
        # conv1 = ResizeConv2d: fused BN2-affine+ReLU + in-kernel nearest upsample + conv+bias.
        # (affine/ReLU commute with nearest upsample, so fusing is exact.)
        y1, s1, ss1 = conv3x3_bn_stats(y2, params["conv1_w"], params["conv1_b"],
                                       in_scale=sc2, in_bias=b2,
                                       upsample=s, use_bf16=use_bf16)
        sc1, bb1 = bn_affine_from_stats(s1, ss1, params["bn1_gamma"],
                                        params["bn1_beta"], count_u)
        # shortcut = BatchNorm(ResizeConv2d(x)): in-kernel upsample of raw x.
        ysc, ssx, ssqx = conv3x3_bn_stats(x, params["sc_conv_w"], params["sc_conv_b"],
                                          upsample=s, use_bf16=use_bf16)
        scs, bsc = bn_affine_from_stats(ssx, ssqx, params["sc_bn_gamma"],
                                        params["sc_bn_beta"], count_u)
        # out = relu(bn1(conv1) + bn_sc(conv_sc))   (both affines fused here)
        out = fused_bn_add_relu(y1, ysc, sc1, bb1, scs, bsc)

    return jnp.transpose(out, (0, 3, 1, 2))                      # NHWC -> NCHW


# ----------------------------------------------------------------------------
# Pure-JAX reference (lax.conv) for validation.
# ----------------------------------------------------------------------------
def _upsample_nearest_ref(x, s):
    return jnp.repeat(jnp.repeat(x, s, axis=1), s, axis=2)


def _conv3x3_ref(x, w, b):
    return lax.conv_general_dilated(
        x, w, window_strides=(1, 1), padding=((1, 1), (1, 1)),
        dimension_numbers=("NHWC", "HWIO", "NHWC")) + b


def _bn_ref(y, gamma, beta):
    mean = jnp.mean(y, axis=(0, 1, 2))
    var = jnp.mean((y - mean) ** 2, axis=(0, 1, 2))
    return gamma * (y - mean) / jnp.sqrt(var + BN_EPS) + beta


def reference_forward(x_nchw, params, stride=1):
    x = jnp.transpose(x_nchw, (0, 2, 3, 1)).astype(jnp.float32)
    out = jax.nn.relu(_bn_ref(_conv3x3_ref(x, params["conv2_w"], params["conv2_b"]),
                              params["bn2_gamma"], params["bn2_beta"]))
    if stride == 1:
        out = _bn_ref(_conv3x3_ref(out, params["conv1_w"], params["conv1_b"]),
                      params["bn1_gamma"], params["bn1_beta"])
        out = jax.nn.relu(out + x)
    else:
        out = _bn_ref(_conv3x3_ref(_upsample_nearest_ref(out, stride),
                                   params["conv1_w"], params["conv1_b"]),
                      params["bn1_gamma"], params["bn1_beta"])
        sc = _bn_ref(_conv3x3_ref(_upsample_nearest_ref(x, stride),
                                  params["sc_conv_w"], params["sc_conv_b"]),
                     params["sc_bn_gamma"], params["sc_bn_beta"])
        out = jax.nn.relu(out + sc)
    return jnp.transpose(out, (0, 3, 1, 2))


if __name__ == "__main__":
    key = jax.random.PRNGKey(0)
    kx, kp1, kp2 = jax.random.split(key, 3)
    N, C, H, W = 2, 8, 16, 16
    x = jax.random.normal(kx, (N, C, H, W), jnp.float32)

    for stride, kp in ((1, kp1), (2, kp2)):
        params = init_params(kp, C, stride)
        ref = reference_forward(x, params, stride=stride)

        # f32 path: tight check against the lax.conv reference.
        out = basic_block_dec_forward(x, params, stride=stride, use_bf16=False)
        out = jax.block_until_ready(out)
        np.testing.assert_allclose(np.asarray(out), np.asarray(ref),
                                   rtol=1e-4, atol=1e-4)

        # bf16 path (bf16 matmul inputs + bf16 HBM intermediates, f32 acc/stats):
        # loose check.
        out_bf16 = basic_block_dec_forward(x, params, stride=stride, use_bf16=True)
        out_bf16 = jax.block_until_ready(out_bf16)
        np.testing.assert_allclose(np.asarray(out_bf16), np.asarray(ref),
                                   rtol=2e-1, atol=2e-1)

    print("KERNEL_OK")
</pallas_src>

<mosaic_0001>
module attributes {stable_mosaic.version = 11 : i64} {
  func.func @_conv3x3_kernel(%arg0: i32, %arg1: memref<1x16x16x8xf32, #tpu.memory_space<vmem>>, %arg2: memref<72x8xf32, #tpu.memory_space<vmem>>, %arg3: memref<1x8xf32, #tpu.memory_space<vmem>>, %arg4: memref<1x16x16x8xf32, #tpu.memory_space<vmem>>, %arg5: memref<1x1x8xf32, #tpu.memory_space<vmem>>, %arg6: memref<1x1x8xf32, #tpu.memory_space<vmem>>, %arg7: memref<18x18x8xf32, #tpu.memory_space<vmem>>) attributes {dimension_semantics = [#tpu.dimension_semantics<parallel>], iteration_bounds = array<i64: 2>, scalar_prefetch = 0 : i64, scratch_operands = 1 : i64, tpu.core_type = #tpu.core_type<tc>, window_params = [{transform_indices = @transform_0, window_bounds = array<i64: 1, 16, 16, 8>}, {pipeline_mode = #tpu.pipeline_mode<synchronous>, transform_indices = @transform_1, window_bounds = array<i64: 72, 8>}, {pipeline_mode = #tpu.pipeline_mode<synchronous>, transform_indices = @transform_2, window_bounds = array<i64: 1, 8>}, {transform_indices = @transform_3, window_bounds = array<i64: 1, 16, 16, 8>}, {transform_indices = @transform_4, window_bounds = array<i64: 1, 1, 8>}, {transform_indices = @transform_5, window_bounds = array<i64: 1, 1, 8>}]} {
    %c0 = arith.constant 0 : index
    %c0_0 = arith.constant 0 : index
    %c0_1 = arith.constant 0 : index
    %c0_2 = arith.constant 0 : index
    %0 = vector.load %arg1[%c0, %c0_0, %c0_1, %c0_2] : memref<1x16x16x8xf32, #tpu.memory_space<vmem>>, vector<1x16x16x8xf32>
    %1 = vector.shape_cast %0 : vector<1x16x16x8xf32> to vector<16x16x8xf32>
    %cst = arith.constant 0.000000e+00 : f32
    %2 = vector.broadcast %cst : f32 to vector<1x18x8xf32>
    %c0_3 = arith.constant 0 : index
    %c0_4 = arith.constant 0 : index
    %c0_5 = arith.constant 0 : index
    %3 = vector.load %arg7[%c0_3, %c0_4, %c0_5] : memref<18x18x8xf32, #tpu.memory_space<vmem>>, vector<1x18x8xf32>
    tpu.vector_store %arg7[%c0_3, %c0_4, %c0_5], %2 {strides = array<i32>} : memref<18x18x8xf32, #tpu.memory_space<vmem>>, vector<1x18x8xf32>,
    %cst_6 = arith.constant 0.000000e+00 : f32
    %4 = vector.broadcast %cst_6 : f32 to vector<1x18x8xf32>
    %c17 = arith.constant 17 : index
    %c0_7 = arith.constant 0 : index
    %c0_8 = arith.constant 0 : index
    %5 = vector.load %arg7[%c17, %c0_7, %c0_8] : memref<18x18x8xf32, #tpu.memory_space<vmem>>, vector<1x18x8xf32>
    tpu.vector_store %arg7[%c17, %c0_7, %c0_8], %4 {strides = array<i32>} : memref<18x18x8xf32, #tpu.memory_space<vmem>>, vector<1x18x8xf32>,
    %cst_9 = arith.constant 0.000000e+00 : f32
    %6 = vector.broadcast %cst_9 : f32 to vector<18x1x8xf32>
    %c0_10 = arith.constant 0 : index
    %c0_11 = arith.constant 0 : index
    %c0_12 = arith.constant 0 : index
    %7 = vector.load %arg7[%c0_10, %c0_11, %c0_12] : memref<18x18x8xf32, #tpu.memory_space<vmem>>, vector<18x1x8xf32>
    tpu.vector_store %arg7[%c0_10, %c0_11, %c0_12], %6 {strides = array<i32>} : memref<18x18x8xf32, #tpu.memory_space<vmem>>, vector<18x1x8xf32>,
    %cst_13 = arith.constant 0.000000e+00 : f32
    %8 = vector.broadcast %cst_13 : f32 to vector<18x1x8xf32>
    %c0_14 = arith.constant 0 : index
    %c17_15 = arith.constant 17 : index
    %c0_16 = arith.constant 0 : index
    %9 = vector.load %arg7[%c0_14, %c17_15, %c0_16] : memref<18x18x8xf32, #tpu.memory_space<vmem>>, vector<18x1x8xf32>
    tpu.vector_store %arg7[%c0_14, %c17_15, %c0_16], %8 {strides = array<i32>} : memref<18x18x8xf32, #tpu.memory_space<vmem>>, vector<18x1x8xf32>,
    %c1 = arith.constant 1 : index
    %c1_17 = arith.constant 1 : index
    %c0_18 = arith.constant 0 : index
    %10 = vector.load %arg7[%c1, %c1_17, %c0_18] : memref<18x18x8xf32, #tpu.memory_space<vmem>>, vector<16x16x8xf32>
    tpu.vector_store %arg7[%c1, %c1_17, %c0_18], %1 {strides = array<i32>} : memref<18x18x8xf32, #tpu.memory_space<vmem>>, vector<16x16x8xf32>,
    %c0_19 = arith.constant 0 : index
    %c0_20 = arith.constant 0 : index
    %11 = vector.load %arg2[%c0_19, %c0_20] : memref<72x8xf32, #tpu.memory_space<vmem>>, vector<72x8xf32>
    %c0_21 = arith.constant 0 : index
    %c0_22 = arith.constant 0 : index
    %12 = vector.load %arg3[%c0_21, %c0_22] : memref<1x8xf32, #tpu.memory_space<vmem>>, vector<1x8xf32>
    %13 = vector.shape_cast %12 : vector<1x8xf32> to vector<1x8xf32>
    %14 = vector.broadcast %13 : vector<1x8xf32> to vector<256x8xf32>
    %cst_23 = arith.constant 0.000000e+00 : f32
    %15 = vector.broadcast %cst_23 : f32 to vector<1x8xf32>
    %c0_i32 = arith.constant 0 : i32
    %c16_i32 = arith.constant 16 : i32
    %16 = arith.muli %c0_i32, %c16_i32 : i32
    %17 = arith.index_cast %16 : i32 to index
    %c0_24 = arith.constant 0 : index
    %c0_25 = arith.constant 0 : index
    %18 = vector.load %arg7[%17, %c0_24, %c0_25] : memref<18x18x8xf32, #tpu.memory_space<vmem>>, vector<18x18x8xf32>
    %19 = vector.extract_strided_slice %18 {offsets = [0, 0, 0], sizes = [16, 18, 8], strides = [1, 1, 1]} : vector<18x18x8xf32> to vector<16x18x8xf32>
    %20 = vector.extract_strided_slice %19 {offsets = [0, 0, 0], sizes = [16, 16, 8], strides = [1, 1, 1]} : vector<16x18x8xf32> to vector<16x16x8xf32>
    %21 = vector.shape_cast %20 : vector<16x16x8xf32> to vector<256x8xf32>
    %22 = vector.extract_strided_slice %11 {offsets = [0, 0], sizes = [8, 8], strides = [1, 1]} : vector<72x8xf32> to vector<8x8xf32>
    %cst_26 = arith.constant dense<0.000000e+00> : vector<256x8xf32>
    %23 = tpu.matmul %21, %22, %cst_26 {dimension_numbers = #tpu.dot_dimension_numbers<[1], [0], [0], [1], [0, 0, 1, 1], [], []>} : vector<256x8xf32>, vector<8x8xf32>, vector<256x8xf32> -> vector<256x8xf32>
    %24 = arith.addf %14, %23 : vector<256x8xf32>
    %25 = vector.extract_strided_slice %19 {offsets = [0, 1, 0], sizes = [16, 16, 8], strides = [1, 1, 1]} : vector<16x18x8xf32> to vector<16x16x8xf32>
    %26 = vector.shape_cast %25 : vector<16x16x8xf32> to vector<256x8xf32>
    %27 = vector.extract_strided_slice %11 {offsets = [8, 0], sizes = [8, 8], strides = [1, 1]} : vector<72x8xf32> to vector<8x8xf32>
    %cst_27 = arith.constant dense<0.000000e+00> : vector<256x8xf32>
    %28 = tpu.matmul %26, %27, %cst_27 {dimension_numbers = #tpu.dot_dimension_numbers<[1], [0], [0], [1], [0, 0, 1, 1], [], []>} : vector<256x8xf32>, vector<8x8xf32>, vector<256x8xf32> -> vector<256x8xf32>
    %29 = arith.addf %24, %28 : vector<256x8xf32>
    %30 = vector.extract_strided_slice %19 {offsets = [0, 2, 0], sizes = [16, 16, 8], strides = [1, 1, 1]} : vector<16x18x8xf32> to vector<16x16x8xf32>
    %31 = vector.shape_cast %30 : vector<16x16x8xf32> to vector<256x8xf32>
    %32 = vector.extract_strided_slice %11 {offsets = [16, 0], sizes = [8, 8], strides = [1, 1]} : vector<72x8xf32> to vector<8x8xf32>
    %cst_28 = arith.constant dense<0.000000e+00> : vector<256x8xf32>
    %33 = tpu.matmul %31, %32, %cst_28 {dimension_numbers = #tpu.dot_dimension_numbers<[1], [0], [0], [1], [0, 0, 1, 1], [], []>} : vector<256x8xf32>, vector<8x8xf32>, vector<256x8xf32> -> vector<256x8xf32>
    %34 = arith.addf %29, %33 : vector<256x8xf32>
    %35 = vector.extract_strided_slice %18 {offsets = [1, 0, 0], sizes = [16, 18, 8], strides = [1, 1, 1]} : vector<18x18x8xf32> to vector<16x18x8xf32>
    %36 = vector.extract_strided_slice %35 {offsets = [0, 0, 0], sizes = [16, 16, 8], strides = [1, 1, 1]} : vector<16x18x8xf32> to vector<16x16x8xf32>
    %37 = vector.shape_cast %36 : vector<16x16x8xf32> to vector<256x8xf32>
    %38 = vector.extract_strided_slice %11 {offsets = [24, 0], sizes = [8, 8], strides = [1, 1]} : vector<72x8xf32> to vector<8x8xf32>
    %cst_29 = arith.constant dense<0.000000e+00> : vector<256x8xf32>
    %39 = tpu.matmul %37, %38, %cst_29 {dimension_numbers = #tpu.dot_dimension_numbers<[1], [0], [0], [1], [0, 0, 1, 1], [], []>} : vector<256x8xf32>, vector<8x8xf32>, vector<256x8xf32> -> vector<256x8xf32>
    %40 = arith.addf %34, %39 : vector<256x8xf32>
    %41 = vector.extract_strided_slice %35 {offsets = [0, 1, 0], sizes = [16, 16, 8], strides = [1, 1, 1]} : vector<16x18x8xf32> to vector<16x16x8xf32>
    %42 = vector.shape_cast %41 : vector<16x16x8xf32> to vector<256x8xf32>
    %43 = vector.extract_strided_slice %11 {offsets = [32, 0], sizes = [8, 8], strides = [1, 1]} : vector<72x8xf32> to vector<8x8xf32>
    %cst_30 = arith.constant dense<0.000000e+00> : vector<256x8xf32>
    %44 = tpu.matmul %42, %43, %cst_30 {dimension_numbers = #tpu.dot_dimension_numbers<[1], [0], [0], [1], [0, 0, 1, 1], [], []>} : vector<256x8xf32>, vector<8x8xf32>, vector<256x8xf32> -> vector<256x8xf32>
    %45 = arith.addf %40, %44 : vector<256x8xf32>
    %46 = vector.extract_strided_slice %35 {offsets = [0, 2, 0], sizes = [16, 16, 8], strides = [1, 1, 1]} : vector<16x18x8xf32> to vector<16x16x8xf32>
    %47 = vector.shape_cast %46 : vector<16x16x8xf32> to vector<256x8xf32>
    %48 = vector.extract_strided_slice %11 {offsets = [40, 0], sizes = [8, 8], strides = [1, 1]} : vector<72x8xf32> to vector<8x8xf32>
    %cst_31 = arith.constant dense<0.000000e+00> : vector<256x8xf32>
    %49 = tpu.matmul %47, %48, %cst_31 {dimension_numbers = #tpu.dot_dimension_numbers<[1], [0], [0], [1], [0, 0, 1, 1], [], []>} : vector<256x8xf32>, vector<8x8xf32>, vector<256x8xf32> -> vector<256x8xf32>
    %50 = arith.addf %45, %49 : vector<256x8xf32>
    %51 = vector.extract_strided_slice %18 {offsets = [2, 0, 0], sizes = [16, 18, 8], strides = [1, 1, 1]} : vector<18x18x8xf32> to vector<16x18x8xf32>
    %52 = vector.extract_strided_slice %51 {offsets = [0, 0, 0], sizes = [16, 16, 8], strides = [1, 1, 1]} : vector<16x18x8xf32> to vector<16x16x8xf32>
    %53 = vector.shape_cast %52 : vector<16x16x8xf32> to vector<256x8xf32>
    %54 = vector.extract_strided_slice %11 {offsets = [48, 0], sizes = [8, 8], strides = [1, 1]} : vector<72x8xf32> to vector<8x8xf32>
    %cst_32 = arith.constant dense<0.000000e+00> : vector<256x8xf32>
    %55 = tpu.matmul %53, %54, %cst_32 {dimension_numbers = #tpu.dot_dimension_numbers<[1], [0], [0], [1], [0, 0, 1, 1], [], []>} : vector<256x8xf32>, vector<8x8xf32>, vector<256x8xf32> -> vector<256x8xf32>
    %56 = arith.addf %50, %55 : vector<256x8xf32>
    %57 = vector.extract_strided_slice %51 {offsets = [0, 1, 0], sizes = [16, 16, 8], strides = [1, 1, 1]} : vector<16x18x8xf32> to vector<16x16x8xf32>
    %58 = vector.shape_cast %57 : vector<16x16x8xf32> to vector<256x8xf32>
    %59 = vector.extract_strided_slice %11 {offsets = [56, 0], sizes = [8, 8], strides = [1, 1]} : vector<72x8xf32> to vector<8x8xf32>
    %cst_33 = arith.constant dense<0.000000e+00> : vector<256x8xf32>
    %60 = tpu.matmul %58, %59, %cst_33 {dimension_numbers = #tpu.dot_dimension_numbers<[1], [0], [0], [1], [0, 0, 1, 1], [], []>} : vector<256x8xf32>, vector<8x8xf32>, vector<256x8xf32> -> vector<256x8xf32>
    %61 = arith.addf %56, %60 : vector<256x8xf32>
    %62 = vector.extract_strided_slice %51 {offsets = [0, 2, 0], sizes = [16, 16, 8], strides = [1, 1, 1]} : vector<16x18x8xf32> to vector<16x16x8xf32>
    %63 = vector.shape_cast %62 : vector<16x16x8xf32> to vector<256x8xf32>
    %64 = vector.extract_strided_slice %11 {offsets = [64, 0], sizes = [8, 8], strides = [1, 1]} : vector<72x8xf32> to vector<8x8xf32>
    %cst_34 = arith.constant dense<0.000000e+00> : vector<256x8xf32>
    %65 = tpu.matmul %63, %64, %cst_34 {dimension_numbers = #tpu.dot_dimension_numbers<[1], [0], [0], [1], [0, 0, 1, 1], [], []>} : vector<256x8xf32>, vector<8x8xf32>, vector<256x8xf32> -> vector<256x8xf32>
    %66 = arith.addf %61, %65 : vector<256x8xf32>
    %67 = vector.shape_cast %66 : vector<256x8xf32> to vector<16x16x8xf32>
    %c0_35 = arith.constant 0 : index
    %68 = arith.index_cast %16 : i32 to index
    %c0_36 = arith.constant 0 : index
    %c0_37 = arith.constant 0 : index
    %69 = vector.load %arg4[%c0_35, %68, %c0_36, %c0_37] : memref<1x16x16x8xf32, #tpu.memory_space<vmem>>, vector<1x16x16x8xf32>
    %70 = vector.shape_cast %69 : vector<1x16x16x8xf32> to vector<16x16x8xf32>
    %71 = vector.shape_cast %67 : vector<16x16x8xf32> to vector<1x16x16x8xf32>
    tpu.vector_store %arg4[%c0_35, %68, %c0_36, %c0_37], %71 {strides = array<i32>} : memref<1x16x16x8xf32, #tpu.memory_space<vmem>>, vector<1x16x16x8xf32>,
    %cst_38 = arith.constant dense<0.000000e+00> : vector<8xf32>
    %72 = vector.multi_reduction <add>, %66, %cst_38 [0] : vector<256x8xf32> to vector<8xf32>
    %73 = vector.shape_cast %72 : vector<8xf32> to vector<1x8xf32>
    %74 = arith.addf %15, %73 : vector<1x8xf32>
    %75 = arith.mulf %66, %66 : vector<256x8xf32>
    %cst_39 = arith.constant dense<0.000000e+00> : vector<8xf32>
    %76 = vector.multi_reduction <add>, %75, %cst_39 [0] : vector<256x8xf32> to vector<8xf32>
    %77 = vector.shape_cast %76 : vector<8xf32> to vector<1x8xf32>
    %78 = arith.addf %15, %77 : vector<1x8xf32>
    %c1_i32 = arith.constant 1 : i32
    %c0_40 = arith.constant 0 : index
    %c0_41 = arith.constant 0 : index
    %c0_42 = arith.constant 0 : index
    %79 = vector.load %arg5[%c0_40, %c0_41, %c0_42] : memref<1x1x8xf32, #tpu.memory_space<vmem>>, vector<1x1x8xf32>
    %80 = vector.shape_cast %79 : vector<1x1x8xf32> to vector<1x8xf32>
    %81 = vector.shape_cast %74 : vector<1x8xf32> to vector<1x1x8xf32>
    tpu.vector_store %arg5[%c0_40, %c0_41, %c0_42], %81 {strides = array<i32>} : memref<1x1x8xf32, #tpu.memory_space<vmem>>, vector<1x1x8xf32>,
    %c0_43 = arith.constant 0 : index
    %c0_44 = arith.constant 0 : index
    %c0_45 = arith.constant 0 : index
    %82 = vector.load %arg6[%c0_43, %c0_44, %c0_45] : memref<1x1x8xf32, #tpu.memory_space<vmem>>, vector<1x1x8xf32>
    %83 = vector.shape_cast %82 : vector<1x1x8xf32> to vector<1x8xf32>
    %84 = vector.shape_cast %78 : vector<1x8xf32> to vector<1x1x8xf32>
    tpu.vector_store %arg6[%c0_43, %c0_44, %c0_45], %84 {strides = array<i32>} : memref<1x1x8xf32, #tpu.memory_space<vmem>>, vector<1x1x8xf32>,
    return
  }
  func.func @transform_0(%arg0: i32) -> (i32, i32, i32, i32) {
    %c0_i32 = arith.constant 0 : i32
    %c0_i32_0 = arith.constant 0 : i32
    %c0_i32_1 = arith.constant 0 : i32
    %c0_i32_2 = arith.constant 0 : i32
    return %arg0, %c0_i32, %c0_i32_0, %c0_i32_1 : i32, i32, i32, i32
  }
  func.func @transform_1(%arg0: i32) -> (i32, i32) {
    %c0_i32 = arith.constant 0 : i32
    %c0_i32_0 = arith.constant 0 : i32
    %c0_i32_1 = arith.constant 0 : i32
    return %c0_i32, %c0_i32_0 : i32, i32
  }
  func.func @transform_2(%arg0: i32) -> (i32, i32) {
    %c0_i32 = arith.constant 0 : i32
    %c0_i32_0 = arith.constant 0 : i32
    %c0_i32_1 = arith.constant 0 : i32
    return %c0_i32, %c0_i32_0 : i32, i32
  }
  func.func @transform_3(%arg0: i32) -> (i32, i32, i32, i32) {
    %c0_i32 = arith.constant 0 : i32
    %c0_i32_0 = arith.constant 0 : i32
    %c0_i32_1 = arith.constant 0 : i32
    %c0_i32_2 = arith.constant 0 : i32
    return %arg0, %c0_i32, %c0_i32_0, %c0_i32_1 : i32, i32, i32, i32
  }
  func.func @transform_4(%arg0: i32) -> (i32, i32, i32) {
    %c0_i32 = arith.constant 0 : i32
    %c0_i32_0 = arith.constant 0 : i32
    %c0_i32_1 = arith.constant 0 : i32
    return %arg0, %c0_i32, %c0_i32_0 : i32, i32, i32
  }
  func.func @transform_5(%arg0: i32) -> (i32, i32, i32) {
    %c0_i32 = arith.constant 0 : i32
    %c0_i32_0 = arith.constant 0 : i32
    %c0_i32_1 = arith.constant 0 : i32
    return %arg0, %c0_i32, %c0_i32_0 : i32, i32, i32
  }
}

</mosaic_0001>

<llo_original>
// kernel: tpu_custom_call.1
$region0: #{tpu_custom_call.1}
  #allocation0 [shape = 'u32[]', space=smem, size = 0x4, offset = 0x4, fixed_abs, tag = 'smem constant byte address 0x4 - core index']
  #allocation1 [shape = 'u32[144,128]{1,0:T(1,128)}', space=vmem, size = 0x12000, scoped, tag = 'internal scratch']
  #allocation2 [shape = 'f32[18,18,8]{2,1,0:T(8,128)}', space=vmem, size = 0x36000, scoped, tag = 'scratch operand']
  %s0 = inlined_call_operand.vmem [shape: f32[2,16,16,8], index: 0, kind: input, shape index: {}]
  %s1 = inlined_call_operand.vmem [shape: f32[72,8], index: 1, kind: input, shape index: {}]
  %s2 = inlined_call_operand.vmem [shape: f32[1,8], index: 2, kind: input, shape index: {}]
  %s3 = inlined_call_operand.vmem [shape: f32[2,16,16,8], index: 3, kind: output, shape index: {0}]
  %s4 = inlined_call_operand.hbm [shape: f32[2,1,8], index: 4, kind: output, shape index: {1}]
  %s5 = inlined_call_operand.hbm [shape: f32[2,1,8], index: 5, kind: output, shape index: {2}]
  %6 = xla_tuple %s3, %s4, %s5
  %s7 = sld [smem:[#allocation0]]
  $region61: #{tpu_custom_call.1} parent=0
    _
  %s9 = ssub.s32 1, %s7
  %s10 = scalar_select 0, %s9, %s7
  $region1: #{tpu_custom_call.1} parent=0
    #allocation3 [shape = 'u8[1024]{0}', space=vmem, size = 0x400, scoped, tag = 'output window, operand 1']
    #allocation4 [shape = 's32[2]{0}', space=sflag, size = 0x8, scoped, tag = 'scoped memory for tpu_custom_call.1']
    #allocation5 [shape = 'u8[1024]{0}', space=vmem, size = 0x400, scoped, tag = 'output window, operand 2']
    #allocation6 [shape = 's32[2]{0}', space=sflag, size = 0x8, scoped, tag = 'scoped memory for tpu_custom_call.1']
    %11 = vsyncpa [#allocation4], 0
    %s12 = scalar_lea.sflag [#allocation4], 1
    %13 = vsyncpa %s12, 0
    %14 = vsyncpa [#allocation6], 0
    %s15 = scalar_lea.sflag [#allocation6], 1
    %16 = vsyncpa %s15, 0
    loop: start=0, step=1, limit=4
    $region2: #{tpu_custom_call.1} parent=1 // loop_pre_header
      _
    $region3: #{tpu_custom_call.1} parent=1 // loop_header
      %s18 = sphi 0, %s22
      %p19 = scmp.ge.s32.totalorder %s18, 4
      %s28 = sphi 0, %s30
      %s31 = sphi 0, %s28
      %s32 = sphi 0, %s31
      %s48 = sphi 0, %s32
      %s52 = sphi 0, %s52
      %s54 = sphi 0, %s52
      %s55 = sphi 0, %s54
      %s69 = sphi 0, %s55
      %s73 = sphi 0, %s73
      %s75 = sphi 0, %s73
      %s76 = sphi 0, %s75
      %s90 = sphi 0, %s76
      %s96 = sphi 0, %s98
      %s99 = sphi 0, %s96
      %s100 = sphi 0, %s99
      %s116 = sphi 0, %s100
      %s122 = sphi 0, %s124
      %s125 = sphi 0, %s122
      %s126 = sphi 0, %s125
      %s142 = sphi 0, %s126
      %s148 = sphi 0, %s150
      %s151 = sphi 0, %s148
      %s152 = sphi 0, %s151
      %s168 = sphi 0, %s152
    $region4: #{tpu_custom_call.1} parent=1 // loop_header_branch
      %21 = sbr.rel (%p19) target = $region8
    $region5: #{tpu_custom_call.1} parent=1 // loop_body
      %s23 = ssub.s32 %s18, 1
      %s24 = ssub.s32 %s18, 2
      %s25 = sadd.s32 %s18, 1
      %s26 = ssub.s32 %s18, %s25
      %p27 = scmp.eq.s32.totalorder %s26, 0
      %s29 = sadd.s32 %s28, 1
      %s30 = scalar_select %p27, %s28, %s29
      %p33 = pneg %p27
      %p34 = scmp.eq.s32.totalorder %s18, 1
      %p35 = por %p33, %p34
      %p36 = scmp.ne.s32.totalorder %s28, %s31
      %p37 = scmp.eq.s32.totalorder %s18, 0
      %p38 = por %p36, %p37
      %p39 = scmp.ne.s32.totalorder %s28, %s31
      %p40 = scmp.eq.s32.totalorder %s23, 1
      %p41 = por %p39, %p40
      %p42 = scmp.ne.s32.totalorder %s31, %s32
      %p43 = scmp.eq.s32.totalorder %s23, 0
      %p44 = por %p42, %p43
      %p45 = scmp.ne.s32.totalorder %s31, %s32
      %p46 = scmp.eq.s32.totalorder %s24, 1
      %p47 = por %p45, %p46
      %p49 = scmp.ne.s32.totalorder %s32, %s48
      %p50 = scmp.eq.s32.totalorder %s24, 0
      %p51 = por %p49, %p50
      %s53 = sadd.s32 %s52, 1
      %p56 = scmp.eq.s32.totalorder %s18, 1
      %p57 = scmp.ne.s32.totalorder %s52, %s54
      %p58 = scmp.eq.s32.totalorder %s18, 0
      %p59 = por %p57, %p58
      %p60 = scmp.ne.s32.totalorder %s52, %s54
      %p61 = scmp.eq.s32.totalorder %s23, 1
      %p62 = por %p60, %p61
      %p63 = scmp.ne.s32.totalorder %s54, %s55
      %p64 = scmp.eq.s32.totalorder %s23, 0
      %p65 = por %p63, %p64
      %p66 = scmp.ne.s32.totalorder %s54, %s55
      %p67 = scmp.eq.s32.totalorder %s24, 1
      %p68 = por %p66, %p67
      %p70 = scmp.ne.s32.totalorder %s55, %s69
      %p71 = scmp.eq.s32.totalorder %s24, 0
      %p72 = por %p70, %p71
      %s74 = sadd.s32 %s73, 1
      %p77 = scmp.eq.s32.totalorder %s18, 1
      %p78 = scmp.ne.s32.totalorder %s73, %s75
      %p79 = scmp.eq.s32.totalorder %s18, 0
      %p80 = por %p78, %p79
      %p81 = scmp.ne.s32.totalorder %s73, %s75
      %p82 = scmp.eq.s32.totalorder %s23, 1
      %p83 = por %p81, %p82
      %p84 = scmp.ne.s32.totalorder %s75, %s76
      %p85 = scmp.eq.s32.totalorder %s23, 0
      %p86 = por %p84, %p85
      %p87 = scmp.ne.s32.totalorder %s75, %s76
      %p88 = scmp.eq.s32.totalorder %s24, 1
      %p89 = por %p87, %p88
      %p91 = scmp.ne.s32.totalorder %s76, %s90
      %p92 = scmp.eq.s32.totalorder %s24, 0
      %p93 = por %p91, %p92
      %s94 = ssub.s32 %s18, %s25
      %p95 = scmp.eq.s32.totalorder %s94, 0
      %s97 = sadd.s32 %s96, 1
      %s98 = scalar_select %p95, %s96, %s97
      %p101 = pneg %p95
      %p102 = scmp.eq.s32.totalorder %s18, 1
      %p103 = por %p101, %p102
      %p104 = scmp.ne.s32.totalorder %s96, %s99
      %p105 = scmp.eq.s32.totalorder %s18, 0
      %p106 = por %p104, %p105
      %p107 = scmp.ne.s32.totalorder %s96, %s99
      %p108 = scmp.eq.s32.totalorder %s23, 1
      %p109 = por %p107, %p108
      %p110 = scmp.ne.s32.totalorder %s99, %s100
      %p111 = scmp.eq.s32.totalorder %s23, 0
      %p112 = por %p110, %p111
      %p113 = scmp.ne.s32.totalorder %s99, %s100
      %p114 = scmp.eq.s32.totalorder %s24, 1
      %p115 = por %p113, %p114
      %p117 = scmp.ne.s32.totalorder %s100, %s116
      %p118 = scmp.eq.s32.totalorder %s24, 0
      %p119 = por %p117, %p118
      %s120 = ssub.s32 %s18, %s25
      %p121 = scmp.eq.s32.totalorder %s120, 0
      %s123 = sadd.s32 %s122, 1
      %s124 = scalar_select %p121, %s122, %s123
      %p127 = pneg %p121
      %p128 = scmp.eq.s32.totalorder %s18, 1
      %p129 = por %p127, %p128
      %p130 = scmp.ne.s32.totalorder %s122, %s125
      %p131 = scmp.eq.s32.totalorder %s18, 0
      %p132 = por %p130, %p131
      %p133 = scmp.ne.s32.totalorder %s122, %s125
      %p134 = scmp.eq.s32.totalorder %s23, 1
      %p135 = por %p133, %p134
      %p136 = scmp.ne.s32.totalorder %s125, %s126
      %p137 = scmp.eq.s32.totalorder %s23, 0
      %p138 = por %p136, %p137
      %p139 = scmp.ne.s32.totalorder %s125, %s126
      %p140 = scmp.eq.s32.totalorder %s24, 1
      %p141 = por %p139, %p140
      %p143 = scmp.ne.s32.totalorder %s126, %s142
      %p144 = scmp.eq.s32.totalorder %s24, 0
      %p145 = por %p143, %p144
      %s146 = ssub.s32 %s18, %s25
      %p147 = scmp.eq.s32.totalorder %s146, 0
      %s149 = sadd.s32 %s148, 1
      %s150 = scalar_select %p147, %s148, %s149
      %p153 = pneg %p147
      %p154 = scmp.eq.s32.totalorder %s18, 1
      %p155 = por %p153, %p154
      %p156 = scmp.ne.s32.totalorder %s148, %s151
      %p157 = scmp.eq.s32.totalorder %s18, 0
      %p158 = por %p156, %p157
      %p159 = scmp.ne.s32.totalorder %s148, %s151
      %p160 = scmp.eq.s32.totalorder %s23, 1
      %p161 = por %p159, %p160
      %p162 = scmp.ne.s32.totalorder %s151, %s152
      %p163 = scmp.eq.s32.totalorder %s23, 0
      %p164 = por %p162, %p163
      %p165 = scmp.ne.s32.totalorder %s151, %s152
      %p166 = scmp.eq.s32.totalorder %s24, 1
      %p167 = por %p165, %p166
      %p169 = scmp.ne.s32.totalorder %s152, %s168
      %p170 = scmp.eq.s32.totalorder %s24, 0
      %p171 = por %p169, %p170
      %p172 = scmp.le.s32.totalorder 1, %s18
      %p173 = scmp.lt.s32.totalorder %s18, 3
      %p174 = pnand %p172, %p173
      %p175 = pneg %p174
      // Predicated region
      $region9: #{tpu_custom_call.1} parent=5 // pred_check
        _
      $region10: #{tpu_custom_call.1} parent=5 // pred_check_branch
        %177 = sbr.rel (%p174) target = $region12
      $region11: #{tpu_custom_call.1} parent=5 // pred_region
        %s178 = ssub.s32 %s18, 1
        // Predicated region
        $region13: #{tpu_custom_call.1} parent=11 // pred_check
          %p179 = pneg %p65
        $region14: #{tpu_custom_call.1} parent=11 // pred_check_branch
          %181 = sbr.rel (%p179) target = $region16
        $region15: #{tpu_custom_call.1} parent=11 // pred_region
          _
        $region16: #{tpu_custom_call.1} parent=11 // pred_fallthru
          _
        // Predicated region
        $region17: #{tpu_custom_call.1} parent=11 // pred_check
          %p182 = pneg %p86
        $region18: #{tpu_custom_call.1} parent=11 // pred_check_branch
          %184 = sbr.rel (%p182) target = $region20
        $region19: #{tpu_custom_call.1} parent=11 // pred_region
          _
        $region20: #{tpu_custom_call.1} parent=11 // pred_fallthru
          _
      $region12: #{tpu_custom_call.1} parent=5 // pred_fallthru
        _
      %p185 = scmp.lt.s32.totalorder %s18, 2
      // Predicated region
      $region21: #{tpu_custom_call.1} parent=5 // pred_check
        %p186 = pneg %p185
      $region22: #{tpu_custom_call.1} parent=5 // pred_check_branch
        %188 = sbr.rel (%p186) target = $region24
      $region23: #{tpu_custom_call.1} parent=5 // pred_region
        // Predicated region
        $region25: #{tpu_custom_call.1} parent=23 // pred_check
          %p189 = pneg %p38
        $region26: #{tpu_custom_call.1} parent=23 // pred_check_branch
          %191 = sbr.rel (%p189) target = $region28
        $region27: #{tpu_custom_call.1} parent=23 // pred_region
          %p192 = scmp.lt.s32.totalorder %s18, 1
          %s193 = scalar_select %p192, %s18, 1
          %s194 = smul.addr %s193, 32
          %s195 = smul.addr %s194, 8
          %s196 = scalar_lea.vmem %s0, %s195
        $region28: #{tpu_custom_call.1} parent=23 // pred_fallthru
          _
      $region24: #{tpu_custom_call.1} parent=5 // pred_fallthru
        _
      %p197 = scmp.le.s32.totalorder 1, %s18
      %p198 = scmp.lt.s32.totalorder %s18, 3
      %p199 = pnand %p197, %p198
      %p200 = pneg %p199
      // Predicated region
      $region29: #{tpu_custom_call.1} parent=5 // pred_check
        _
      $region30: #{tpu_custom_call.1} parent=5 // pred_check_branch
        %202 = sbr.rel (%p199) target = $region32
      $region31: #{tpu_custom_call.1} parent=5 // pred_region
        %s203 = ssub.s32 %s18, 1
        %p204 = scmp.lt.s32.totalorder %s23, 1
        %s205 = scalar_select %p204, %s23, 1
        %s206 = smul.addr %s205, 32
        %s207 = smul.addr %s206, 8
        %s208 = scalar_lea.vmem %s0, %s207
        %p209 = pneg %p44
        %p210 = pneg %p41
        %p211 = pneg %p65
        %p212 = pneg %p62
        %p213 = pneg %p86
        %p214 = pneg %p83
        %p215 = pneg %p112
        %p216 = pneg %p109
        %p217 = scmp.lt.s32.totalorder %s23, 1
        %s218 = scalar_select %p217, %s23, 1
        %s219 = smul.addr %s218, 32
        %s220 = smul.addr %s219, 8
        %s221 = scalar_lea.vmem %s3, %s220
        %p222 = pneg %p138
        %p223 = pneg %p135
        %s224 = sand.u32 %s125, 1
        %s225 = scalar_lea.sflag [#allocation4], %s224
        %s226 = sand.u32 %s125, 1
        %s227 = scalar_lea.vmem [#allocation3], %s226
        %p228 = pneg %p164
        %p229 = pneg %p161
        %s230 = sand.u32 %s151, 1
        %s231 = scalar_lea.sflag [#allocation6], %s230
        %s232 = sand.u32 %s151, 1
        %s233 = scalar_lea.vmem [#allocation5], %s232
        %p234 = scmp.lt.s32.totalorder %s23, 1
        %s235 = scalar_select %p234, %s23, 1
        %s236 = smul.addr %s235, 32
        %s237 = smul.addr %s236, 8
        %s238 = scalar_lea.vmem %s0, %s237
        %p239 = scmp.lt.s32.totalorder %s23, 1
        %s240 = scalar_select %p239, %s23, 1
        %s241 = smul.addr %s240, 32
        %s242 = smul.addr %s241, 8
        %s243 = scalar_lea.vmem %s3, %s242
        %v244 = vld [vmem:[%s238] sm:$0xff]
        %v245 = vld [vmem:[%s238 + $0x8] sm:$0xff]
        %v246 = vld [vmem:[%s238 + $0x10] sm:$0xff]
        %v247 = vld [vmem:[%s238 + $0x18] sm:$0xff]
        %v248 = vld [vmem:[%s238 + $0x20] sm:$0xff]
        %v249 = vld [vmem:[%s238 + $0x28] sm:$0xff]
        %v250 = vld [vmem:[%s238 + $0x30] sm:$0xff]
        %v251 = vld [vmem:[%s238 + $0x38] sm:$0xff]
        %v252 = vld [vmem:[%s238 + $0x40] sm:$0xff]
        %v253 = vld [vmem:[%s238 + $0x48] sm:$0xff]
        %v254 = vld [vmem:[%s238 + $0x50] sm:$0xff]
        %v255 = vld [vmem:[%s238 + $0x58] sm:$0xff]
        %v256 = vld [vmem:[%s238 + $0x60] sm:$0xff]
        %v257 = vld [vmem:[%s238 + $0x68] sm:$0xff]
        %v258 = vld [vmem:[%s238 + $0x70] sm:$0xff]
        %v259 = vld [vmem:[%s238 + $0x78] sm:$0xff]
        %v260 = vld [vmem:[%s238 + $0x80] sm:$0xff]
        %v261 = vld [vmem:[%s238 + $0x88] sm:$0xff]
        %v262 = vld [vmem:[%s238 + $0x90] sm:$0xff]
        %v263 = vld [vmem:[%s238 + $0x98] sm:$0xff]
        %v264 = vld [vmem:[%s238 + $0xa0] sm:$0xff]
        %v265 = vld [vmem:[%s238 + $0xa8] sm:$0xff]
        %v266 = vld [vmem:[%s238 + $0xb0] sm:$0xff]
        %v267 = vld [vmem:[%s238 + $0xb8] sm:$0xff]
        %v268 = vld [vmem:[%s238 + $0xc0] sm:$0xff]
        %v269 = vld [vmem:[%s238 + $0xc8] sm:$0xff]
        %v270 = vld [vmem:[%s238 + $0xd0] sm:$0xff]
        %v271 = vld [vmem:[%s238 + $0xd8] sm:$0xff]
        %v272 = vld [vmem:[%s238 + $0xe0] sm:$0xff]
        %v273 = vld [vmem:[%s238 + $0xe8] sm:$0xff]
        %v274 = vld [vmem:[%s238 + $0xf0] sm:$0xff]
        %v275 = vld [vmem:[%s238 + $0xf8] sm:$0xff]
        %vm276 = vcmask 64512
        %277 = vst.msk [vmem:[#allocation2] sm:$0xff] %vm276, 0.0
        %278 = vst.msk [vmem:[#allocation2 + $0x8] sm:$0xff] %vm276, 0.0
        %vm279 = vcmask 58368
        %280 = vst.msk [vmem:[#allocation2 + $0x10] sm:$0x3] %vm279, 0.0
        %s281 = scalar_lea.vmem [#allocation2], 408
        %282 = vst.msk [vmem:[%s281] sm:$0xff] %vm276, 0.0
        %283 = vst.msk [vmem:[%s281 + $0x8] sm:$0xff] %vm276, 0.0
        %284 = vst.msk [vmem:[%s281 + $0x10] sm:$0x3] %vm279, 0.0
        %vm285 = vcmask 57344
        %286 = vst.msk [vmem:[#allocation2] sm:$0x1] %vm285, 0.0
        %287 = vst.msk [vmem:[#allocation2 + $0x18] sm:$0x1] %vm285, 0.0
        %288 = vst.msk [vmem:[#allocation2 + $0x30] sm:$0x1] %vm285, 0.0
        %289 = vst.msk [vmem:[#allocation2 + $0x48] sm:$0x1] %vm285, 0.0
        %290 = vst.msk [vmem:[#allocation2 + $0x60] sm:$0x1] %vm285, 0.0
        %291 = vst.msk [vmem:[#allocation2 + $0x78] sm:$0x1] %vm285, 0.0
        %292 = vst.msk [vmem:[#allocation2 + $0x90] sm:$0x1] %vm285, 0.0
        %293 = vst.msk [vmem:[#allocation2 + $0xa8] sm:$0x1] %vm285, 0.0
        %294 = vst.msk [vmem:[#allocation2 + $0xc0] sm:$0x1] %vm285, 0.0
        %295 = vst.msk [vmem:[#allocation2 + $0xd8] sm:$0x1] %vm285, 0.0
        %296 = vst.msk [vmem:[#allocation2 + $0xf0] sm:$0x1] %vm285, 0.0
        %297 = vst.msk [vmem:[#allocation2 + $0x108] sm:$0x1] %vm285, 0.0
        %298 = vst.msk [vmem:[#allocation2 + $0x120] sm:$0x1] %vm285, 0.0
        %299 = vst.msk [vmem:[#allocation2 + $0x138] sm:$0x1] %vm285, 0.0
        %300 = vst.msk [vmem:[#allocation2 + $0x150] sm:$0x1] %vm285, 0.0
        %301 = vst.msk [vmem:[#allocation2 + $0x168] sm:$0x1] %vm285, 0.0
        %302 = vst.msk [vmem:[#allocation2 + $0x180] sm:$0x1] %vm285, 0.0
        %303 = vst.msk [vmem:[#allocation2 + $0x198] sm:$0x1] %vm285, 0.0
        %304 = vst.msk [vmem:[#allocation2 + $0x11] sm:$0x1] %vm285, 0.0
        %305 = vst.msk [vmem:[#allocation2 + $0x29] sm:$0x1] %vm285, 0.0
        %306 = vst.msk [vmem:[#allocation2 + $0x41] sm:$0x1] %vm285, 0.0
        %307 = vst.msk [vmem:[#allocation2 + $0x59] sm:$0x1] %vm285, 0.0
        %308 = vst.msk [vmem:[#allocation2 + $0x71] sm:$0x1] %vm285, 0.0
        %309 = vst.msk [vmem:[#allocation2 + $0x89] sm:$0x1] %vm285, 0.0
        %310 = vst.msk [vmem:[#allocation2 + $0xa1] sm:$0x1] %vm285, 0.0
        %311 = vst.msk [vmem:[#allocation2 + $0xb9] sm:$0x1] %vm285, 0.0
        %312 = vst.msk [vmem:[#allocation2 + $0xd1] sm:$0x1] %vm285, 0.0
        %313 = vst.msk [vmem:[#allocation2 + $0xe9] sm:$0x1] %vm285, 0.0
        %314 = vst.msk [vmem:[#allocation2 + $0x101] sm:$0x1] %vm285, 0.0
        %315 = vst.msk [vmem:[#allocation2 + $0x119] sm:$0x1] %vm285, 0.0
        %316 = vst.msk [vmem:[#allocation2 + $0x131] sm:$0x1] %vm285, 0.0
        %317 = vst.msk [vmem:[#allocation2 + $0x149] sm:$0x1] %vm285, 0.0
        %318 = vst.msk [vmem:[#allocation2 + $0x161] sm:$0x1] %vm285, 0.0
        %319 = vst.msk [vmem:[#allocation2 + $0x179] sm:$0x1] %vm285, 0.0
        %320 = vst.msk [vmem:[#allocation2 + $0x191] sm:$0x1] %vm285, 0.0
        %321 = vst.msk [vmem:[#allocation2 + $0x1a9] sm:$0x1] %vm285, 0.0
        %s322 = scalar_lea.vmem [#allocation2], 24
        %323 = vst.msk [vmem:[%s322 + $0x1] sm:$0xff] %vm276, %v244
        %324 = vst.msk [vmem:[%s322 + $0x9] sm:$0xff] %vm276, %v245
        %325 = vst.msk [vmem:[%s322 + $0x19] sm:$0xff] %vm276, %v246
        %326 = vst.msk [vmem:[%s322 + $0x21] sm:$0xff] %vm276, %v247
        %327 = vst.msk [vmem:[%s322 + $0x31] sm:$0xff] %vm276, %v248
        %328 = vst.msk [vmem:[%s322 + $0x39] sm:$0xff] %vm276, %v249
        %329 = vst.msk [vmem:[%s322 + $0x49] sm:$0xff] %vm276, %v250
        %330 = vst.msk [vmem:[%s322 + $0x51] sm:$0xff] %vm276, %v251
        %331 = vst.msk [vmem:[%s322 + $0x61] sm:$0xff] %vm276, %v252
        %332 = vst.msk [vmem:[%s322 + $0x69] sm:$0xff] %vm276, %v253
        %333 = vst.msk [vmem:[%s322 + $0x79] sm:$0xff] %vm276, %v254
        %334 = vst.msk [vmem:[%s322 + $0x81] sm:$0xff] %vm276, %v255
        %335 = vst.msk [vmem:[%s322 + $0x91] sm:$0xff] %vm276, %v256
        %336 = vst.msk [vmem:[%s322 + $0x99] sm:$0xff] %vm276, %v257
        %337 = vst.msk [vmem:[%s322 + $0xa9] sm:$0xff] %vm276, %v258
        %338 = vst.msk [vmem:[%s322 + $0xb1] sm:$0xff] %vm276, %v259
        %339 = vst.msk [vmem:[%s322 + $0xc1] sm:$0xff] %vm276, %v260
        %340 = vst.msk [vmem:[%s322 + $0xc9] sm:$0xff] %vm276, %v261
        %341 = vst.msk [vmem:[%s322 + $0xd9] sm:$0xff] %vm276, %v262
        %342 = vst.msk [vmem:[%s322 + $0xe1] sm:$0xff] %vm276, %v263
        %343 = vst.msk [vmem:[%s322 + $0xf1] sm:$0xff] %vm276, %v264
        %344 = vst.msk [vmem:[%s322 + $0xf9] sm:$0xff] %vm276, %v265
        %345 = vst.msk [vmem:[%s322 + $0x109] sm:$0xff] %vm276, %v266
        %346 = vst.msk [vmem:[%s322 + $0x111] sm:$0xff] %vm276, %v267
        %347 = vst.msk [vmem:[%s322 + $0x121] sm:$0xff] %vm276, %v268
        %348 = vst.msk [vmem:[%s322 + $0x129] sm:$0xff] %vm276, %v269
        %349 = vst.msk [vmem:[%s322 + $0x139] sm:$0xff] %vm276, %v270
        %350 = vst.msk [vmem:[%s322 + $0x141] sm:$0xff] %vm276, %v271
        %351 = vst.msk [vmem:[%s322 + $0x151] sm:$0xff] %vm276, %v272
        %352 = vst.msk [vmem:[%s322 + $0x159] sm:$0xff] %vm276, %v273
        %353 = vst.msk [vmem:[%s322 + $0x169] sm:$0xff] %vm276, %v274
        %354 = vst.msk [vmem:[%s322 + $0x171] sm:$0xff] %vm276, %v275
        %v355 = vld [vmem:[%s1] sm:$0xff]
        %v356 = vld [vmem:[%s1 + $0x8] sm:$0xff]
        %v357 = vld [vmem:[%s1 + $0x10] sm:$0xff]
        %v358 = vld [vmem:[%s1 + $0x18] sm:$0xff]
        %v359 = vld [vmem:[%s1 + $0x20] sm:$0xff]
        %v360 = vld [vmem:[%s1 + $0x28] sm:$0xff]
        %v361 = vld [vmem:[%s1 + $0x30] sm:$0xff]
        %v362 = vld [vmem:[%s1 + $0x38] sm:$0xff]
        %v363 = vld [vmem:[%s1 + $0x40] sm:$0xff]
        %v364 = vld [vmem:[%s2] sm:$0x1]
        %v366 = vlaneseq
        %v367 = vshrl.u32 %v366, 7
        %v368 = vsub.s32 0, %v367
        %v369 = vrot.slane %v364, %v368
        %v371 = vld [vmem:[#allocation2] sm:$0xff]
        %v372 = vld [vmem:[#allocation2 + $0x8] sm:$0xff]
        %v373 = vld [vmem:[#allocation2 + $0x10] sm:$0x3]
        %v374 = vld [vmem:[#allocation2 + $0x18] sm:$0xff]
        %v375 = vld [vmem:[#allocation2 + $0x20] sm:$0xff]
        %v376 = vld [vmem:[#allocation2 + $0x28] sm:$0x3]
        %v377 = vld [vmem:[#allocation2 + $0x30] sm:$0xff]
        %v378 = vld [vmem:[#allocation2 + $0x38] sm:$0xff]
        %v379 = vld [vmem:[#allocation2 + $0x40] sm:$0x3]
        %v380 = vld [vmem:[#allocation2 + $0x48] sm:$0xff]
        %v381 = vld [vmem:[#allocation2 + $0x50] sm:$0xff]
        %v382 = vld [vmem:[#allocation2 + $0x58] sm:$0x3]
        %v383 = vld [vmem:[#allocation2 + $0x60] sm:$0xff]
        %v384 = vld [vmem:[#allocation2 + $0x68] sm:$0xff]
        %v385 = vld [vmem:[#allocation2 + $0x70] sm:$0x3]
        %v386 = vld [vmem:[#allocation2 + $0x78] sm:$0xff]
        %v387 = vld [vmem:[#allocation2 + $0x80] sm:$0xff]
        %v388 = vld [vmem:[#allocation2 + $0x88] sm:$0x3]
        %v389 = vld [vmem:[#allocation2 + $0x90] sm:$0xff]
        %v390 = vld [vmem:[#allocation2 + $0x98] sm:$0xff]
        %v391 = vld [vmem:[#allocation2 + $0xa0] sm:$0x3]
        %v392 = vld [vmem:[#allocation2 + $0xa8] sm:$0xff]
        %v393 = vld [vmem:[#allocation2 + $0xb0] sm:$0xff]
        %v394 = vld [vmem:[#allocation2 + $0xb8] sm:$0x3]
        %v395 = vld [vmem:[#allocation2 + $0xc0] sm:$0xff]
        %v396 = vld [vmem:[#allocation2 + $0xc8] sm:$0xff]
        %v397 = vld [vmem:[#allocation2 + $0xd0] sm:$0x3]
        %v398 = vld [vmem:[#allocation2 + $0xd8] sm:$0xff]
        %v399 = vld [vmem:[#allocation2 + $0xe0] sm:$0xff]
        %v400 = vld [vmem:[#allocation2 + $0xe8] sm:$0x3]
        %v401 = vld [vmem:[#allocation2 + $0xf0] sm:$0xff]
        %v402 = vld [vmem:[#allocation2 + $0xf8] sm:$0xff]
        %v403 = vld [vmem:[#allocation2 + $0x100] sm:$0x3]
        %v404 = vld [vmem:[#allocation2 + $0x108] sm:$0xff]
        %v405 = vld [vmem:[#allocation2 + $0x110] sm:$0xff]
        %v406 = vld [vmem:[#allocation2 + $0x118] sm:$0x3]
        %v407 = vld [vmem:[#allocation2 + $0x120] sm:$0xff]
        %v408 = vld [vmem:[#allocation2 + $0x128] sm:$0xff]
        %v409 = vld [vmem:[#allocation2 + $0x130] sm:$0x3]
        %v410 = vld [vmem:[#allocation2 + $0x138] sm:$0xff]
        %v411 = vld [vmem:[#allocation2 + $0x140] sm:$0xff]
        %v412 = vld [vmem:[#allocation2 + $0x148] sm:$0x3]
        %v413 = vld [vmem:[#allocation2 + $0x150] sm:$0xff]
        %v414 = vld [vmem:[#allocation2 + $0x158] sm:$0xff]
        %v415 = vld [vmem:[#allocation2 + $0x160] sm:$0x3]
        %v416 = vld [vmem:[#allocation2 + $0x168] sm:$0xff]
        %v417 = vld [vmem:[#allocation2 + $0x170] sm:$0xff]
        %v418 = vld [vmem:[#allocation2 + $0x178] sm:$0x3]
        %v419 = vld [vmem:[#allocation2 + $0x180] sm:$0xff]
        %v420 = vld [vmem:[#allocation2 + $0x188] sm:$0xff]
        %v421 = vld [vmem:[#allocation2 + $0x190] sm:$0x3]
        %v422 = vld [vmem:[#allocation2 + $0x198] sm:$0xff]
        %v423 = vld [vmem:[#allocation2 + $0x1a0] sm:$0xff]
        %v424 = vld [vmem:[#allocation2 + $0x1a8] sm:$0x3]
        %v426 = vsel %vm276, %v371, 0
        %v429 = vsel %vm276, %v372, 0
        %v432 = vsel %vm276, %v374, 0
        %v435 = vsel %vm276, %v375, 0
        %v438 = vsel %vm276, %v377, 0
        %v441 = vsel %vm276, %v378, 0
        %v444 = vsel %vm276, %v380, 0
        %v447 = vsel %vm276, %v381, 0
        %v450 = vsel %vm276, %v383, 0
        %v453 = vsel %vm276, %v384, 0
        %v456 = vsel %vm276, %v386, 0
        %v459 = vsel %vm276, %v387, 0
        %v462 = vsel %vm276, %v389, 0
        %v465 = vsel %vm276, %v390, 0
        %v468 = vsel %vm276, %v392, 0
        %v471 = vsel %vm276, %v393, 0
        %v474 = vsel %vm276, %v395, 0
        %v477 = vsel %vm276, %v396, 0
        %v480 = vsel %vm276, %v398, 0
        %v483 = vsel %vm276, %v399, 0
        %v486 = vsel %vm276, %v401, 0
        %v489 = vsel %vm276, %v402, 0
        %v492 = vsel %vm276, %v404, 0
        %v495 = vsel %vm276, %v405, 0
        %v498 = vsel %vm276, %v407, 0
        %v501 = vsel %vm276, %v408, 0
        %v504 = vsel %vm276, %v410, 0
        %v507 = vsel %vm276, %v411, 0
        %v510 = vsel %vm276, %v413, 0
        %v513 = vsel %vm276, %v414, 0
        %v516 = vsel %vm276, %v416, 0
        %v519 = vsel %vm276, %v417, 0
        %521 = vmatprep.subr.mxu0 0.0
        %522 = vmatpush1.msra.mxu0 %v355
        %523 = vmatprep.subr.mxu0 0.0
        %524 = vmatpush1.msra.mxu0 0.0
        %525 = vmatprep.subr.mxu0 0.0
        %526 = vmatpush1.msra.mxu0 0.0
        %527 = vmatprep.subr.mxu0 0.0
        %528 = vmatpush1.msra.mxu0 0.0
        %529 = vmatprep.subr.mxu0 0.0
        %530 = vmatpush1.msra.mxu0 0.0
        %531 = vmatprep.subr.mxu0 0.0
        %532 = vmatpush1.msra.mxu0 0.0
        %533 = vmatprep.subr.mxu0 0.0
        %534 = vmatpush1.msra.mxu0 0.0
        %535 = vmatprep.subr.mxu0 0.0
        %536 = vmatpush1.msra.mxu0 0.0
        %537 = vmatprep.subr.mxu0 0.0
        %538 = vmatpush1.msra.mxu0 0.0
        %539 = vmatprep.subr.mxu0 0.0
        %540 = vmatpush1.msra.mxu0 0.0
        %541 = vmatprep.subr.mxu0 0.0
        %542 = vmatpush1.msra.mxu0 0.0
        %543 = vmatprep.subr.mxu0 0.0
        %544 = vmatpush1.msra.mxu0 0.0
        %545 = vmatprep.subr.mxu0 0.0
        %546 = vmatpush1.msra.mxu0 0.0
        %547 = vmatprep.subr.mxu0 0.0
        %548 = vmatpush1.msra.mxu0 0.0
        %549 = vmatprep.subr.mxu0 0.0
        %550 = vmatpush1.msra.mxu0 0.0
        %551 = vmatprep.subr.mxu0 0.0
        %552 = vmatpush1.msra.mxu0 0.0
        %553 = vmatprep.subr.mxu0 0.0
        %554 = vmatpush1.msra.mxu0 0.0
        %555 = vmatprep.subr.mxu0 0.0
        %556 = vmatpush1.msra.mxu0 0.0
        %557 = vmatprep.subr.mxu0 0.0
        %558 = vmatpush1.msra.mxu0 0.0
        %559 = vmatprep.subr.mxu0 0.0
        %560 = vmatpush1.msra.mxu0 0.0
        %561 = vmatprep.subr.mxu0 0.0
        %562 = vmatpush1.msra.mxu0 0.0
        %563 = vmatprep.subr.mxu0 0.0
        %564 = vmatpush1.msra.mxu0 0.0
        %565 = vmatprep.subr.mxu0 0.0
        %566 = vmatpush1.msra.mxu0 0.0
        %567 = vmatprep.subr.mxu0 0.0
        %568 = vmatpush1.msra.mxu0 0.0
        %569 = vmatprep.subr.mxu0 0.0
        %570 = vmatpush1.msra.mxu0 0.0
        %571 = vmatprep.subr.mxu0 0.0
        %572 = vmatpush1.msra.mxu0 0.0
        %573 = vmatprep.subr.mxu0 0.0
        %574 = vmatpush1.msra.mxu0 0.0
        %575 = vmatprep.subr.mxu0 0.0
        %576 = vmatpush1.msra.mxu0 0.0
        %577 = vmatprep.subr.mxu0 0.0
        %578 = vmatpush1.msra.mxu0 0.0
        %579 = vmatprep.subr.mxu0 0.0
        %580 = vmatpush1.msra.mxu0 0.0
        %581 = vmatprep.subr.mxu0 0.0
        %582 = vmatpush1.msra.mxu0 0.0
        %583 = vmatprep.subr.mxu0 0.0
        %584 = vmatpush1.msra.mxu0 0.0
        %585 = vmatprep.mubr.f32.mxu0 0.0
        %586 = vmatmul.mubr.f32.gmra.mrb[0].mxu0 %v426
        %v587 = vpop.f32.mrb[0].mxu0
        %v588 = vadd.f32 0.0, %v587
        %v589 = vpop.f32.mrb[0].mxu0
        %590 = vmatprep.mubr.f32.mxu0 0.0
        %591 = vmatmul.mubr.f32.gmra.mrb[0].mxu0 %v429
        %v592 = vpop.f32.mrb[0].mxu0
        %v593 = vadd.f32 0.0, %v592
        %v594 = vpop.f32.mrb[0].mxu0
        %595 = vmatprep.mubr.f32.mxu0 0.0
        %596 = vmatmul.mubr.f32.gmra.mrb[0].mxu0 %v432
        %v597 = vpop.f32.mrb[0].mxu0
        %v598 = vadd.f32 0.0, %v597
        %v599 = vpop.f32.mrb[0].mxu0
        %600 = vmatprep.mubr.f32.mxu0 0.0
        %601 = vmatmul.mubr.f32.gmra.mrb[0].mxu0 %v435
        %v602 = vpop.f32.mrb[0].mxu0
        %v603 = vadd.f32 0.0, %v602
        %v604 = vpop.f32.mrb[0].mxu0
        %605 = vmatprep.mubr.f32.mxu0 0.0
        %606 = vmatmul.mubr.f32.gmra.mrb[0].mxu0 %v438
        %v607 = vpop.f32.mrb[0].mxu0
        %v608 = vadd.f32 0.0, %v607
        %v609 = vpop.f32.mrb[0].mxu0
        %610 = vmatprep.mubr.f32.mxu0 0.0
        %611 = vmatmul.mubr.f32.gmra.mrb[0].mxu0 %v441
        %v612 = vpop.f32.mrb[0].mxu0
        %v613 = vadd.f32 0.0, %v612
        %v614 = vpop.f32.mrb[0].mxu0
        %615 = vmatprep.mubr.f32.mxu0 0.0
        %616 = vmatmul.mubr.f32.gmra.mrb[0].mxu0 %v444
        %v617 = vpop.f32.mrb[0].mxu0
        %v618 = vadd.f32 0.0, %v617
        %v619 = vpop.f32.mrb[0].mxu0
        %620 = vmatprep.mubr.f32.mxu0 0.0
        %621 = vmatmul.mubr.f32.gmra.mrb[0].mxu0 %v447
        %v622 = vpop.f32.mrb[0].mxu0
        %v623 = vadd.f32 0.0, %v622
        %v624 = vpop.f32.mrb[0].mxu0
        %625 = vmatprep.mubr.f32.mxu0 0.0
        %626 = vmatmul.mubr.f32.gmra.mrb[0].mxu0 %v450
        %v627 = vpop.f32.mrb[0].mxu0
        %v628 = vadd.f32 0.0, %v627
        %v629 = vpop.f32.mrb[0].mxu0
        %630 = vmatprep.mubr.f32.mxu0 0.0
        %631 = vmatmul.mubr.f32.gmra.mrb[0].mxu0 %v453
        %v632 = vpop.f32.mrb[0].mxu0
        %v633 = vadd.f32 0.0, %v632
        %v634 = vpop.f32.mrb[0].mxu0
        %635 = vmatprep.mubr.f32.mxu0 0.0
        %636 = vmatmul.mubr.f32.gmra.mrb[0].mxu0 %v456
        %v637 = vpop.f32.mrb[0].mxu0
        %v638 = vadd.f32 0.0, %v637
        %v639 = vpop.f32.mrb[0].mxu0
        %640 = vmatprep.mubr.f32.mxu0 0.0
        %641 = vmatmul.mubr.f32.gmra.mrb[0].mxu0 %v459
        %v642 = vpop.f32.mrb[0].mxu0
        %v643 = vadd.f32 0.0, %v642
        %v644 = vpop.f32.mrb[0].mxu0
        %645 = vmatprep.mubr.f32.mxu0 0.0
        %646 = vmatmul.mubr.f32.gmra.mrb[0].mxu0 %v462
        %v647 = vpop.f32.mrb[0].mxu0
        %v648 = vadd.f32 0.0, %v647
        %v649 = vpop.f32.mrb[0].mxu0
        %650 = vmatprep.mubr.f32.mxu0 0.0
        %651 = vmatmul.mubr.f32.gmra.mrb[0].mxu0 %v465
        %v652 = vpop.f32.mrb[0].mxu0
        %v653 = vadd.f32 0.0, %v652
        %v654 = vpop.f32.mrb[0].mxu0
        %655 = vmatprep.mubr.f32.mxu0 0.0
        %656 = vmatmul.mubr.f32.gmra.mrb[0].mxu0 %v468
        %v657 = vpop.f32.mrb[0].mxu0
        %v658 = vadd.f32 0.0, %v657
        %v659 = vpop.f32.mrb[0].mxu0
        %660 = vmatprep.mubr.f32.mxu0 0.0
        %661 = vmatmul.mubr.f32.gmra.mrb[0].mxu0 %v471
        %v662 = vpop.f32.mrb[0].mxu0
        %v663 = vadd.f32 0.0, %v662
        %v664 = vpop.f32.mrb[0].mxu0
        %665 = vmatprep.mubr.f32.mxu0 0.0
        %666 = vmatmul.mubr.f32.gmra.mrb[0].mxu0 %v474
        %v667 = vpop.f32.mrb[0].mxu0
        %v668 = vadd.f32 0.0, %v667
        %v669 = vpop.f32.mrb[0].mxu0
        %670 = vmatprep.mubr.f32.mxu0 0.0
        %671 = vmatmul.mubr.f32.gmra.mrb[0].mxu0 %v477
        %v672 = vpop.f32.mrb[0].mxu0
        %v673 = vadd.f32 0.0, %v672
        %v674 = vpop.f32.mrb[0].mxu0
        %675 = vmatprep.mubr.f32.mxu0 0.0
        %676 = vmatmul.mubr.f32.gmra.mrb[0].mxu0 %v480
        %v677 = vpop.f32.mrb[0].mxu0
        %v678 = vadd.f32 0.0, %v677
        %v679 = vpop.f32.mrb[0].mxu0
        %680 = vmatprep.mubr.f32.mxu0 0.0
        %681 = vmatmul.mubr.f32.gmra.mrb[0].mxu0 %v483
        %v682 = vpop.f32.mrb[0].mxu0
        %v683 = vadd.f32 0.0, %v682
        %v684 = vpop.f32.mrb[0].mxu0
        %685 = vmatprep.mubr.f32.mxu0 0.0
        %686 = vmatmul.mubr.f32.gmra.mrb[0].mxu0 %v486
        %v687 = vpop.f32.mrb[0].mxu0
        %v688 = vadd.f32 0.0, %v687
        %v689 = vpop.f32.mrb[0].mxu0
        %690 = vmatprep.mubr.f32.mxu0 0.0
        %691 = vmatmul.mubr.f32.gmra.mrb[0].mxu0 %v489
        %v692 = vpop.f32.mrb[0].mxu0
        %v693 = vadd.f32 0.0, %v692
        %v694 = vpop.f32.mrb[0].mxu0
        %695 = vmatprep.mubr.f32.mxu0 0.0
        %696 = vmatmul.mubr.f32.gmra.mrb[0].mxu0 %v492
        %v697 = vpop.f32.mrb[0].mxu0
        %v698 = vadd.f32 0.0, %v697
        %v699 = vpop.f32.mrb[0].mxu0
        %700 = vmatprep.mubr.f32.mxu0 0.0
        %701 = vmatmul.mubr.f32.gmra.mrb[0].mxu0 %v495
        %v702 = vpop.f32.mrb[0].mxu0
        %v703 = vadd.f32 0.0, %v702
        %v704 = vpop.f32.mrb[0].mxu0
        %705 = vmatprep.mubr.f32.mxu0 0.0
        %706 = vmatmul.mubr.f32.gmra.mrb[0].mxu0 %v498
        %v707 = vpop.f32.mrb[0].mxu0
        %v708 = vadd.f32 0.0, %v707
        %v709 = vpop.f32.mrb[0].mxu0
        %710 = vmatprep.mubr.f32.mxu0 0.0
        %711 = vmatmul.mubr.f32.gmra.mrb[0].mxu0 %v501
        %v712 = vpop.f32.mrb[0].mxu0
        %v713 = vadd.f32 0.0, %v712
        %v714 = vpop.f32.mrb[0].mxu0
        %715 = vmatprep.mubr.f32.mxu0 0.0
        %716 = vmatmul.mubr.f32.gmra.mrb[0].mxu0 %v504
        %v717 = vpop.f32.mrb[0].mxu0
        %v718 = vadd.f32 0.0, %v717
        %v719 = vpop.f32.mrb[0].mxu0
        %720 = vmatprep.mubr.f32.mxu0 0.0
        %721 = vmatmul.mubr.f32.gmra.mrb[0].mxu0 %v507
        %v722 = vpop.f32.mrb[0].mxu0
        %v723 = vadd.f32 0.0, %v722
        %v724 = vpop.f32.mrb[0].mxu0
        %725 = vmatprep.mubr.f32.mxu0 0.0
        %726 = vmatmul.mubr.f32.gmra.mrb[0].mxu0 %v510
        %v727 = vpop.f32.mrb[0].mxu0
        %v728 = vadd.f32 0.0, %v727
        %v729 = vpop.f32.mrb[0].mxu0
        %730 = vmatprep.mubr.f32.mxu0 0.0
        %731 = vmatmul.mubr.f32.gmra.mrb[0].mxu0 %v513
        %v732 = vpop.f32.mrb[0].mxu0
        %v733 = vadd.f32 0.0, %v732
        %v734 = vpop.f32.mrb[0].mxu0
        %735 = vmatprep.mubr.f32.mxu0 0.0
        %736 = vmatmul.mubr.f32.gmra.mrb[0].mxu0 %v516
        %v737 = vpop.f32.mrb[0].mxu0
        %v738 = vadd.f32 0.0, %v737
        %v739 = vpop.f32.mrb[0].mxu0
        %740 = vmatprep.mubr.f32.mxu0 0.0
        %741 = vmatmul.mubr.f32.gmra.mrb[0].mxu0 %v519
        %v742 = vpop.f32.mrb[0].mxu0
        %v743 = vadd.f32 0.0, %v742
        %v744 = vpop.f32.mrb[0].mxu0
        %745 = vdwg.mxu0
        %v746 = vadd.f32 %v369, %v588
        %v747 = vadd.f32 %v369, %v593
        %v748 = vadd.f32 %v369, %v598
        %v749 = vadd.f32 %v369, %v603
        %v750 = vadd.f32 %v369, %v608
        %v751 = vadd.f32 %v369, %v613
        %v752 = vadd.f32 %v369, %v618
        %v753 = vadd.f32 %v369, %v623
        %v754 = vadd.f32 %v369, %v628
        %v755 = vadd.f32 %v369, %v633
        %v756 = vadd.f32 %v369, %v638
        %v757 = vadd.f32 %v369, %v643
        %v758 = vadd.f32 %v369, %v648
        %v759 = vadd.f32 %v369, %v653
        %v760 = vadd.f32 %v369, %v658
        %v761 = vadd.f32 %v369, %v663
        %v762 = vadd.f32 %v369, %v668
        %v763 = vadd.f32 %v369, %v673
        %v764 = vadd.f32 %v369, %v678
        %v765 = vadd.f32 %v369, %v683
        %v766 = vadd.f32 %v369, %v688
        %v767 = vadd.f32 %v369, %v693
        %v768 = vadd.f32 %v369, %v698
        %v769 = vadd.f32 %v369, %v703
        %v770 = vadd.f32 %v369, %v708
        %v771 = vadd.f32 %v369, %v713
        %v772 = vadd.f32 %v369, %v718
        %v773 = vadd.f32 %v369, %v723
        %v774 = vadd.f32 %v369, %v728
        %v775 = vadd.f32 %v369, %v733
        %v776 = vadd.f32 %v369, %v738
        %v777 = vadd.f32 %v369, %v743
        %vm794 = vcmask 1046528
        %v795 = vrot.slane %v371, 1
        %v796 = vrot.slane %v372, 1
        %v797 = vsel %vm794, %v795, %v796
        %v798 = vrot.slane %v373, 1
        %v799 = vsel %vm794, %v796, %v798
        %v800 = vrot.slane %v374, 1
        %v801 = vrot.slane %v375, 1
        %v802 = vsel %vm794, %v800, %v801
        %v803 = vrot.slane %v376, 1
        %v804 = vsel %vm794, %v801, %v803
        %v805 = vrot.slane %v377, 1
        %v806 = vrot.slane %v378, 1
        %v807 = vsel %vm794, %v805, %v806
        %v808 = vrot.slane %v379, 1
        %v809 = vsel %vm794, %v806, %v808
        %v810 = vrot.slane %v380, 1
        %v811 = vrot.slane %v381, 1
        %v812 = vsel %vm794, %v810, %v811
        %v813 = vrot.slane %v382, 1
        %v814 = vsel %vm794, %v811, %v813
        %v815 = vrot.slane %v383, 1
        %v816 = vrot.slane %v384, 1
        %v817 = vsel %vm794, %v815, %v816
        %v818 = vrot.slane %v385, 1
        %v819 = vsel %vm794, %v816, %v818
        %v820 = vrot.slane %v386, 1
        %v821 = vrot.slane %v387, 1
        %v822 = vsel %vm794, %v820, %v821
        %v823 = vrot.slane %v388, 1
        %v824 = vsel %vm794, %v821, %v823
        %v825 = vrot.slane %v389, 1
        %v826 = vrot.slane %v390, 1
        %v827 = vsel %vm794, %v825, %v826
        %v828 = vrot.slane %v391, 1
        %v829 = vsel %vm794, %v826, %v828
        %v830 = vrot.slane %v392, 1
        %v831 = vrot.slane %v393, 1
        %v832 = vsel %vm794, %v830, %v831
        %v833 = vrot.slane %v394, 1
        %v834 = vsel %vm794, %v831, %v833
        %v835 = vrot.slane %v395, 1
        %v836 = vrot.slane %v396, 1
        %v837 = vsel %vm794, %v835, %v836
        %v838 = vrot.slane %v397, 1
        %v839 = vsel %vm794, %v836, %v838
        %v840 = vrot.slane %v398, 1
        %v841 = vrot.slane %v399, 1
        %v842 = vsel %vm794, %v840, %v841
        %v843 = vrot.slane %v400, 1
        %v844 = vsel %vm794, %v841, %v843
        %v845 = vrot.slane %v401, 1
        %v846 = vrot.slane %v402, 1
        %v847 = vsel %vm794, %v845, %v846
        %v848 = vrot.slane %v403, 1
        %v849 = vsel %vm794, %v846, %v848
        %v850 = vrot.slane %v404, 1
        %v851 = vrot.slane %v405, 1
        %v852 = vsel %vm794, %v850, %v851
        %v853 = vrot.slane %v406, 1
        %v854 = vsel %vm794, %v851, %v853
        %v855 = vrot.slane %v407, 1
        %v856 = vrot.slane %v408, 1
        %v857 = vsel %vm794, %v855, %v856
        %v858 = vrot.slane %v409, 1
        %v859 = vsel %vm794, %v856, %v858
        %v860 = vrot.slane %v410, 1
        %v861 = vrot.slane %v411, 1
        %v862 = vsel %vm794, %v860, %v861
        %v863 = vrot.slane %v412, 1
        %v864 = vsel %vm794, %v861, %v863
        %v865 = vrot.slane %v413, 1
        %v866 = vrot.slane %v414, 1
        %v867 = vsel %vm794, %v865, %v866
        %v868 = vrot.slane %v415, 1
        %v869 = vsel %vm794, %v866, %v868
        %v870 = vrot.slane %v416, 1
        %v871 = vrot.slane %v417, 1
        %v872 = vsel %vm794, %v870, %v871
        %v873 = vrot.slane %v418, 1
        %v874 = vsel %vm794, %v871, %v873
        %v875 = vsel %vm276, %v797, 0
        %v877 = vsel %vm276, %v799, 0
        %v879 = vsel %vm276, %v802, 0
        %v881 = vsel %vm276, %v804, 0
        %v883 = vsel %vm276, %v807, 0
        %v885 = vsel %vm276, %v809, 0
        %v887 = vsel %vm276, %v812, 0
        %v889 = vsel %vm276, %v814, 0
        %v891 = vsel %vm276, %v817, 0
        %v893 = vsel %vm276, %v819, 0
        %v895 = vsel %vm276, %v822, 0
        %v897 = vsel %vm276, %v824, 0
        %v899 = vsel %vm276, %v827, 0
        %v901 = vsel %vm276, %v829, 0
        %v903 = vsel %vm276, %v832, 0
        %v905 = vsel %vm276, %v834, 0
        %v907 = vsel %vm276, %v837, 0
        %v909 = vsel %vm276, %v839, 0
        %v911 = vsel %vm276, %v842, 0
        %v913 = vsel %vm276, %v844, 0
        %v915 = vsel %vm276, %v847, 0
        %v917 = vsel %vm276, %v849, 0
        %v919 = vsel %vm276, %v852, 0
        %v921 = vsel %vm276, %v854, 0
        %v923 = vsel %vm276, %v857, 0
        %v925 = vsel %vm276, %v859, 0
        %v927 = vsel %vm276, %v862, 0
        %v929 = vsel %vm276, %v864, 0
        %v931 = vsel %vm276, %v867, 0
        %v933 = vsel %vm276, %v869, 0
        %v935 = vsel %vm276, %v872, 0
        %v937 = vsel %vm276, %v874, 0
        %939 = vmatprep.subr.mxu0 0.0
        %940 = vmatpush1.msra.mxu0 %v356
        %941 = vmatprep.subr.mxu0 0.0
        %942 = vmatpush1.msra.mxu0 0.0
        %943 = vmatprep.subr.mxu0 0.0
        %944 = vmatpush1.msra.mxu0 0.0
        %945 = vmatprep.subr.mxu0 0.0
        %946 = vmatpush1.msra.mxu0 0.0
        %947 = vmatprep.subr.mxu0 0.0
        %948 = vmatpush1.msra.mxu0 0.0
        %949 = vmatprep.subr.mxu0 0.0
        %950 = vmatpush1.msra.mxu0 0.0
        %951 = vmatprep.subr.mxu0 0.0
        %952 = vmatpush1.msra.mxu0 0.0
        %953 = vmatprep.subr.mxu0 0.0
        %954 = vmatpush1.msra.mxu0 0.0
        %955 = vmatprep.subr.mxu0 0.0
        %956 = vmatpush1.msra.mxu0 0.0
        %957 = vmatprep.subr.mxu0 0.0
        %958 = vmatpush1.msra.mxu0 0.0
        %959 = vmatprep.subr.mxu0 0.0
        %960 = vmatpush1.msra.mxu0 0.0
        %961 = vmatprep.subr.mxu0 0.0
        %962 = vmatpush1.msra.mxu0 0.0
        %963 = vmatprep.subr.mxu0 0.0
        %964 = vmatpush1.msra.mxu0 0.0
        %965 = vmatprep.subr.mxu0 0.0
        %966 = vmatpush1.msra.mxu0 0.0
        %967 = vmatprep.subr.mxu0 0.0
        %968 = vmatpush1.msra.mxu0 0.0
        %969 = vmatprep.subr.mxu0 0.0
        %970 = vmatpush1.msra.mxu0 0.0
        %971 = vmatprep.subr.mxu0 0.0
        %972 = vmatpush1.msra.mxu0 0.0
        %973 = vmatprep.subr.mxu0 0.0
        %974 = vmatpush1.msra.mxu0 0.0
        %975 = vmatprep.subr.mxu0 0.0
        %976 = vmatpush1.msra.mxu0 0.0
        %977 = vmatprep.subr.mxu0 0.0
        %978 = vmatpush1.msra.mxu0 0.0
        %979 = vmatprep.subr.mxu0 0.0
        %980 = vmatpush1.msra.mxu0 0.0
        %981 = vmatprep.subr.mxu0 0.0
        %982 = vmatpush1.msra.mxu0 0.0
        %983 = vmatprep.subr.mxu0 0.0
        %984 = vmatpush1.msra.mxu0 0.0
        %985 = vmatprep.subr.mxu0 0.0
        %986 = vmatpush1.msra.mxu0 0.0
        %987 = vmatprep.subr.mxu0 0.0
        %988 = vmatpush1.msra.mxu0 0.0
        %989 = vmatprep.subr.mxu0 0.0
        %990 = vmatpush1.msra.mxu0 0.0
        %991 = vmatprep.subr.mxu0 0.0
        %992 = vmatpush1.msra.mxu0 0.0
        %993 = vmatprep.subr.mxu0 0.0
        %994 = vmatpush1.msra.mxu0 0.0
        %995 = vmatprep.subr.mxu0 0.0
        %996 = vmatpush1.msra.mxu0 0.0
        %997 = vmatprep.subr.mxu0 0.0
        %998 = vmatpush1.msra.mxu0 0.0
        %999 = vmatprep.subr.mxu0 0.0
        %1000 = vmatpush1.msra.mxu0 0.0
        %1001 = vmatprep.subr.mxu0 0.0
        %1002 = vmatpush1.msra.mxu0 0.0
        %1003 = vmatprep.mubr.f32.mxu0 0.0
        %1004 = vmatmul.mubr.f32.gmra.mrb[0].mxu0 %v875
        %v1005 = vpop.f32.mrb[0].mxu0
        %v1006 = vadd.f32 0.0, %v1005
        %v1007 = vpop.f32.mrb[0].mxu0
        %1008 = vmatprep.mubr.f32.mxu0 0.0
        %1009 = vmatmul.mubr.f32.gmra.mrb[0].mxu0 %v877
        %v1010 = vpop.f32.mrb[0].mxu0
        %v1011 = vadd.f32 0.0, %v1010
        %v1012 = vpop.f32.mrb[0].mxu0
        %1013 = vmatprep.mubr.f32.mxu0 0.0
        %1014 = vmatmul.mubr.f32.gmra.mrb[0].mxu0 %v879
        %v1015 = vpop.f32.mrb[0].mxu0
        %v1016 = vadd.f32 0.0, %v1015
        %v1017 = vpop.f32.mrb[0].mxu0
        %1018 = vmatprep.mubr.f32.mxu0 0.0
        %1019 = vmatmul.mubr.f32.gmra.mrb[0].mxu0 %v881
        %v1020 = vpop.f32.mrb[0].mxu0
        %v1021 = vadd.f32 0.0, %v1020
        %v1022 = vpop.f32.mrb[0].mxu0
        %1023 = vmatprep.mubr.f32.mxu0 0.0
        %1024 = vmatmul.mubr.f32.gmra.mrb[0].mxu0 %v883
        %v1025 = vpop.f32.mrb[0].mxu0
        %v1026 = vadd.f32 0.0, %v1025
        %v1027 = vpop.f32.mrb[0].mxu0
        %1028 = vmatprep.mubr.f32.mxu0 0.0
        %1029 = vmatmul.mubr.f32.gmra.mrb[0].mxu0 %v885
        %v1030 = vpop.f32.mrb[0].mxu0
        %v1031 = vadd.f32 0.0, %v1030
        %v1032 = vpop.f32.mrb[0].mxu0
        %1033 = vmatprep.mubr.f32.mxu0 0.0
        %1034 = vmatmul.mubr.f32.gmra.mrb[0].mxu0 %v887
        %v1035 = vpop.f32.mrb[0].mxu0
        %v1036 = vadd.f32 0.0, %v1035
        %v1037 = vpop.f32.mrb[0].mxu0
        %1038 = vmatprep.mubr.f32.mxu0 0.0
        %1039 = vmatmul.mubr.f32.gmra.mrb[0].mxu0 %v889
        %v1040 = vpop.f32.mrb[0].mxu0
        %v1041 = vadd.f32 0.0, %v1040
        %v1042 = vpop.f32.mrb[0].mxu0
        %1043 = vmatprep.mubr.f32.mxu0 0.0
        %1044 = vmatmul.mubr.f32.gmra.mrb[0].mxu0 %v891
        %v1045 = vpop.f32.mrb[0].mxu0
        %v1046 = vadd.f32 0.0, %v1045
        %v1047 = vpop.f32.mrb[0].mxu0
        %1048 = vmatprep.mubr.f32.mxu0 0.0
        %1049 = vmatmul.mubr.f32.gmra.mrb[0].mxu0 %v893
        %v1050 = vpop.f32.mrb[0].mxu0
        %v1051 = vadd.f32 0.0, %v1050
        %v1052 = vpop.f32.mrb[0].mxu0
        %1053 = vmatprep.mubr.f32.mxu0 0.0
        %1054 = vmatmul.mubr.f32.gmra.mrb[0].mxu0 %v895
        %v1055 = vpop.f32.mrb[0].mxu0
        %v1056 = vadd.f32 0.0, %v1055
        %v1057 = vpop.f32.mrb[0].mxu0
        %1058 = vmatprep.mubr.f32.mxu0 0.0
        %1059 = vmatmul.mubr.f32.gmra.mrb[0].mxu0 %v897
        %v1060 = vpop.f32.mrb[0].mxu0
        %v1061 = vadd.f32 0.0, %v1060
        %v1062 = vpop.f32.mrb[0].mxu0
        %1063 = vmatprep.mubr.f32.mxu0 0.0
        %1064 = vmatmul.mubr.f32.gmra.mrb[0].mxu0 %v899
        %v1065 = vpop.f32.mrb[0].mxu0
        %v1066 = vadd.f32 0.0, %v1065
        %v1067 = vpop.f32.mrb[0].mxu0
        %1068 = vmatprep.mubr.f32.mxu0 0.0
        %1069 = vmatmul.mubr.f32.gmra.mrb[0].mxu0 %v901
        %v1070 = vpop.f32.mrb[0].mxu0
        %v1071 = vadd.f32 0.0, %v1070
        %v1072 = vpop.f32.mrb[0].mxu0
        %1073 = vmatprep.mubr.f32.mxu0 0.0
        %1074 = vmatmul.mubr.f32.gmra.mrb[0].mxu0 %v903
        %v1075 = vpop.f32.mrb[0].mxu0
        %v1076 = vadd.f32 0.0, %v1075
        %v1077 = vpop.f32.mrb[0].mxu0
        %1078 = vmatprep.mubr.f32.mxu0 0.0
        %1079 = vmatmul.mubr.f32.gmra.mrb[0].mxu0 %v905
        %v1080 = vpop.f32.mrb[0].mxu0
        %v1081 = vadd.f32 0.0, %v1080
        %v1082 = vpop.f32.mrb[0].mxu0
        %1083 = vmatprep.mubr.f32.mxu0 0.0
        %1084 = vmatmul.mubr.f32.gmra.mrb[0].mxu0 %v907
        %v1085 = vpop.f32.mrb[0].mxu0
        %v1086 = vadd.f32 0.0, %v1085
        %v1087 = vpop.f32.mrb[0].mxu0
        %1088 = vmatprep.mubr.f32.mxu0 0.0
        %1089 = vmatmul.mubr.f32.gmra.mrb[0].mxu0 %v909
        %v1090 = vpop.f32.mrb[0].mxu0
        %v1091 = vadd.f32 0.0, %v1090
        %v1092 = vpop.f32.mrb[0].mxu0
        %1093 = vmatprep.mubr.f32.mxu0 0.0
        %1094 = vmatmul.mubr.f32.gmra.mrb[0].mxu0 %v911
        %v1095 = vpop.f32.mrb[0].mxu0
        %v1096 = vadd.f32 0.0, %v1095
        %v1097 = vpop.f32.mrb[0].mxu0
        %1098 = vmatprep.mubr.f32.mxu0 0.0
        %1099 = vmatmul.mubr.f32.gmra.mrb[0].mxu0 %v913
        %v1100 = vpop.f32.mrb[0].mxu0
        %v1101 = vadd.f32 0.0, %v1100
        %v1102 = vpop.f32.mrb[0].mxu0
        %1103 = vmatprep.mubr.f32.mxu0 0.0
        %1104 = vmatmul.mubr.f32.gmra.mrb[0].mxu0 %v915
        %v1105 = vpop.f32.mrb[0].mxu0
        %v1106 = vadd.f32 0.0, %v1105
        %v1107 = vpop.f32.mrb[0].mxu0
        %1108 = vmatprep.mubr.f32.mxu0 0.0
        %1109 = vmatmul.mubr.f32.gmra.mrb[0].mxu0 %v917
        %v1110 = vpop.f32.mrb[0].mxu0
        %v1111 = vadd.f32 0.0, %v1110
        %v1112 = vpop.f32.mrb[0].mxu0
        %1113 = vmatprep.mubr.f32.mxu0 0.0
        %1114 = vmatmul.mubr.f32.gmra.mrb[0].mxu0 %v919
        %v1115 = vpop.f32.mrb[0].mxu0
        %v1116 = vadd.f32 0.0, %v1115
        %v1117 = vpop.f32.mrb[0].mxu0
        %1118 = vmatprep.mubr.f32.mxu0 0.0
        %1119 = vmatmul.mubr.f32.gmra.mrb[0].mxu0 %v921
        %v1120 = vpop.f32.mrb[0].mxu0
        %v1121 = vadd.f32 0.0, %v1120
        %v1122 = vpop.f32.mrb[0].mxu0
        %1123 = vmatprep.mubr.f32.mxu0 0.0
        %1124 = vmatmul.mubr.f32.gmra.mrb[0].mxu0 %v923
        %v1125 = vpop.f32.mrb[0].mxu0
        %v1126 = vadd.f32 0.0, %v1125
        %v1127 = vpop.f32.mrb[0].mxu0
        %1128 = vmatprep.mubr.f32.mxu0 0.0
        %1129 = vmatmul.mubr.f32.gmra.mrb[0].mxu0 %v925
        %v1130 = vpop.f32.mrb[0].mxu0
        %v1131 = vadd.f32 0.0, %v1130
        %v1132 = vpop.f32.mrb[0].mxu0
        %1133 = vmatprep.mubr.f32.mxu0 0.0
        %1134 = vmatmul.mubr.f32.gmra.mrb[0].mxu0 %v927
        %v1135 = vpop.f32.mrb[0].mxu0
        %v1136 = vadd.f32 0.0, %v1135
        %v1137 = vpop.f32.mrb[0].mxu0
        %1138 = vmatprep.mubr.f32.mxu0 0.0
        %1139 = vmatmul.mubr.f32.gmra.mrb[0].mxu0 %v929
        %v1140 = vpop.f32.mrb[0].mxu0
        %v1141 = vadd.f32 0.0, %v1140
        %v1142 = vpop.f32.mrb[0].mxu0
        %1143 = vmatprep.mubr.f32.mxu0 0.0
        %1144 = vmatmul.mubr.f32.gmra.mrb[0].mxu0 %v931
        %v1145 = vpop.f32.mrb[0].mxu0
        %v1146 = vadd.f32 0.0, %v1145
        %v1147 = vpop.f32.mrb[0].mxu0
        %1148 = vmatprep.mubr.f32.mxu0 0.0
        %1149 = vmatmul.mubr.f32.gmra.mrb[0].mxu0 %v933
        %v1150 = vpop.f32.mrb[0].mxu0
        %v1151 = vadd.f32 0.0, %v1150
        %v1152 = vpop.f32.mrb[0].mxu0
        %1153 = vmatprep.mubr.f32.mxu0 0.0
        %1154 = vmatmul.mubr.f32.gmra.mrb[0].mxu0 %v935
        %v1155 = vpop.f32.mrb[0].mxu0
        %v1156 = vadd.f32 0.0, %v1155
        %v1157 = vpop.f32.mrb[0].mxu0
        %1158 = vmatprep.mubr.f32.mxu0 0.0
        %1159 = vmatmul.mubr.f32.gmra.mrb[0].mxu0 %v937
        %v1160 = vpop.f32.mrb[0].mxu0
        %v1161 = vadd.f32 0.0, %v1160
        %v1162 = vpop.f32.mrb[0].mxu0
        %1163 = vdwg.mxu0
        %v1164 = vadd.f32 %v746, %v1006
        %v1165 = vadd.f32 %v747, %v1011
        %v1166 = vadd.f32 %v748, %v1016
        %v1167 = vadd.f32 %v749, %v1021
        %v1168 = vadd.f32 %v750, %v1026
        %v1169 = vadd.f32 %v751, %v1031
        %v1170 = vadd.f32 %v752, %v1036
        %v1171 = vadd.f32 %v753, %v1041
        %v1172 = vadd.f32 %v754, %v1046
        %v1173 = vadd.f32 %v755, %v1051
        %v1174 = vadd.f32 %v756, %v1056
        %v1175 = vadd.f32 %v757, %v1061
        %v1176 = vadd.f32 %v758, %v1066
        %v1177 = vadd.f32 %v759, %v1071
        %v1178 = vadd.f32 %v760, %v1076
        %v1179 = vadd.f32 %v761, %v1081
        %v1180 = vadd.f32 %v762, %v1086
        %v1181 = vadd.f32 %v763, %v1091
        %v1182 = vadd.f32 %v764, %v1096
        %v1183 = vadd.f32 %v765, %v1101
        %v1184 = vadd.f32 %v766, %v1106
        %v1185 = vadd.f32 %v767, %v1111
        %v1186 = vadd.f32 %v768, %v1116
        %v1187 = vadd.f32 %v769, %v1121
        %v1188 = vadd.f32 %v770, %v1126
        %v1189 = vadd.f32 %v771, %v1131
        %v1190 = vadd.f32 %v772, %v1136
        %v1191 = vadd.f32 %v773, %v1141
        %v1192 = vadd.f32 %v774, %v1146
        %v1193 = vadd.f32 %v775, %v1151
        %v1194 = vadd.f32 %v776, %v1156
        %v1195 = vadd.f32 %v777, %v1161
        %vm1196 = vcmask 1045504
        %v1197 = vrot.slane %v371, 2
        %v1198 = vrot.slane %v372, 2
        %v1199 = vsel %vm1196, %v1197, %v1198
        %v1200 = vrot.slane %v373, 2
        %v1201 = vsel %vm1196, %v1198, %v1200
        %v1202 = vrot.slane %v374, 2
        %v1203 = vrot.slane %v375, 2
        %v1204 = vsel %vm1196, %v1202, %v1203
        %v1205 = vrot.slane %v376, 2
        %v1206 = vsel %vm1196, %v1203, %v1205
        %v1207 = vrot.slane %v377, 2
        %v1208 = vrot.slane %v378, 2
        %v1209 = vsel %vm1196, %v1207, %v1208
        %v1210 = vrot.slane %v379, 2
        %v1211 = vsel %vm1196, %v1208, %v1210
        %v1212 = vrot.slane %v380, 2
        %v1213 = vrot.slane %v381, 2
        %v1214 = vsel %vm1196, %v1212, %v1213
        %v1215 = vrot.slane %v382, 2
        %v1216 = vsel %vm1196, %v1213, %v1215
        %v1217 = vrot.slane %v383, 2
        %v1218 = vrot.slane %v384, 2
        %v1219 = vsel %vm1196, %v1217, %v1218
        %v1220 = vrot.slane %v385, 2
        %v1221 = vsel %vm1196, %v1218, %v1220
        %v1222 = vrot.slane %v386, 2
        %v1223 = vrot.slane %v387, 2
        %v1224 = vsel %vm1196, %v1222, %v1223
        %v1225 = vrot.slane %v388, 2
        %v1226 = vsel %vm1196, %v1223, %v1225
        %v1227 = vrot.slane %v389, 2
        %v1228 = vrot.slane %v390, 2
        %v1229 = vsel %vm1196, %v1227, %v1228
        %v1230 = vrot.slane %v391, 2
        %v1231 = vsel %vm1196, %v1228, %v1230
        %v1232 = vrot.slane %v392, 2
        %v1233 = vrot.slane %v393, 2
        %v1234 = vsel %vm1196, %v1232, %v1233
        %v1235 = vrot.slane %v394, 2
        %v1236 = vsel %vm1196, %v1233, %v1235
        %v1237 = vrot.slane %v395, 2
        %v1238 = vrot.slane %v396, 2
        %v1239 = vsel %vm1196, %v1237, %v1238
        %v1240 = vrot.slane %v397, 2
        %v1241 = vsel %vm1196, %v1238, %v1240
        %v1242 = vrot.slane %v398, 2
        %v1243 = vrot.slane %v399, 2
        %v1244 = vsel %vm1196, %v1242, %v1243
        %v1245 = vrot.slane %v400, 2
        %v1246 = vsel %vm1196, %v1243, %v1245
        %v1247 = vrot.slane %v401, 2
        %v1248 = vrot.slane %v402, 2
        %v1249 = vsel %vm1196, %v1247, %v1248
        %v1250 = vrot.slane %v403, 2
        %v1251 = vsel %vm1196, %v1248, %v1250
        %v1252 = vrot.slane %v404, 2
        %v1253 = vrot.slane %v405, 2
        %v1254 = vsel %vm1196, %v1252, %v1253
        %v1255 = vrot.slane %v406, 2
        %v1256 = vsel %vm1196, %v1253, %v1255
        %v1257 = vrot.slane %v407, 2
        %v1258 = vrot.slane %v408, 2
        %v1259 = vsel %vm1196, %v1257, %v1258
        %v1260 = vrot.slane %v409, 2
        %v1261 = vsel %vm1196, %v1258, %v1260
        %v1262 = vrot.slane %v410, 2
        %v1263 = vrot.slane %v411, 2
        %v1264 = vsel %vm1196, %v1262, %v1263
        %v1265 = vrot.slane %v412, 2
        %v1266 = vsel %vm1196, %v1263, %v1265
        %v1267 = vrot.slane %v413, 2
        %v1268 = vrot.slane %v414, 2
        %v1269 = vsel %vm1196, %v1267, %v1268
        %v1270 = vrot.slane %v415, 2
        %v1271 = vsel %vm1196, %v1268, %v1270
        %v1272 = vrot.slane %v416, 2
        %v1273 = vrot.slane %v417, 2
        %v1274 = vsel %vm1196, %v1272, %v1273
        %v1275 = vrot.slane %v418, 2
        %v1276 = vsel %vm1196, %v1273, %v1275
        %v1277 = vsel %vm276, %v1199, 0
        %v1279 = vsel %vm276, %v1201, 0
        %v1281 = vsel %vm276, %v1204, 0
        %v1283 = vsel %vm276, %v1206, 0
        %v1285 = vsel %vm276, %v1209, 0
        %v1287 = vsel %vm276, %v1211, 0
        %v1289 = vsel %vm276, %v1214, 0
        %v1291 = vsel %vm276, %v1216, 0
        %v1293 = vsel %vm276, %v1219, 0
        %v1295 = vsel %vm276, %v1221, 0
        %v1297 = vsel %vm276, %v1224, 0
        %v1299 = vsel %vm276, %v1226, 0
        %v1301 = vsel %vm276, %v1229, 0
        %v1303 = vsel %vm276, %v1231, 0
        %v1305 = vsel %vm276, %v1234, 0
        %v1307 = vsel %vm276, %v1236, 0
        %v1309 = vsel %vm276, %v1239, 0
        %v1311 = vsel %vm276, %v1241, 0
        %v1313 = vsel %vm276, %v1244, 0
        %v1315 = vsel %vm276, %v1246, 0
        %v1317 = vsel %vm276, %v1249, 0
        %v1319 = vsel %vm276, %v1251, 0
        %v1321 = vsel %vm276, %v1254, 0
        %v1323 = vsel %vm276, %v1256, 0
        %v1325 = vsel %vm276, %v1259, 0
        %v1327 = vsel %vm276, %v1261, 0
        %v1329 = vsel %vm276, %v1264, 0
        %v1331 = vsel %vm276, %v1266, 0
        %v1333 = vsel %vm276, %v1269, 0
        %v1335 = vsel %vm276, %v1271, 0
        %v1337 = vsel %vm276, %v1274, 0
        %v1339 = vsel %vm276, %v1276, 0
        %1341 = vmatprep.subr.mxu0 0.0
        %1342 = vmatpush1.msra.mxu0 %v357
        %1343 = vmatprep.subr.mxu0 0.0
        %1344 = vmatpush1.msra.mxu0 0.0
        %1345 = vmatprep.subr.mxu0 0.0
        %1346 = vmatpush1.msra.mxu0 0.0
        %1347 = vmatprep.subr.mxu0 0.0
        %1348 = vmatpush1.msra.mxu0 0.0
        %1349 = vmatprep.subr.mxu0 0.0
        %1350 = vmatpush1.msra.mxu0 0.0
        %1351 = vmatprep.subr.mxu0 0.0
        %1352 = vmatpush1.msra.mxu0 0.0
        %1353 = vmatprep.subr.mxu0 0.0
        %1354 = vmatpush1.msra.mxu0 0.0
        %1355 = vmatprep.subr.mxu0 0.0
        %1356 = vmatpush1.msra.mxu0 0.0
        %1357 = vmatprep.subr.mxu0 0.0
        %1358 = vmatpush1.msra.mxu0 0.0
        %1359 = vmatprep.subr.mxu0 0.0
        %1360 = vmatpush1.msra.mxu0 0.0
        %1361 = vmatprep.subr.mxu0 0.0
        %1362 = vmatpush1.msra.mxu0 0.0
        %1363 = vmatprep.subr.mxu0 0.0
        %1364 = vmatpush1.msra.mxu0 0.0
        %1365 = vmatprep.subr.mxu0 0.0
        %1366 = vmatpush1.msra.mxu0 0.0
        %1367 = vmatprep.subr.mxu0 0.0
        %1368 = vmatpush1.msra.mxu0 0.0
        %1369 = vmatprep.subr.mxu0 0.0
        %1370 = vmatpush1.msra.mxu0 0.0
        %1371 = vmatprep.subr.mxu0 0.0
        %1372 = vmatpush1.msra.mxu0 0.0
        %1373 = vmatprep.subr.mxu0 0.0
        %1374 = vmatpush1.msra.mxu0 0.0
        %1375 = vmatprep.subr.mxu0 0.0
        %1376 = vmatpush1.msra.mxu0 0.0
        %1377 = vmatprep.subr.mxu0 0.0
        %1378 = vmatpush1.msra.mxu0 0.0
        %1379 = vmatprep.subr.mxu0 0.0
        %1380 = vmatpush1.msra.mxu0 0.0
        %1381 = vmatprep.subr.mxu0 0.0
        %1382 = vmatpush1.msra.mxu0 0.0
        %1383 = vmatprep.subr.mxu0 0.0
        %1384 = vmatpush1.msra.mxu0 0.0
        %1385 = vmatprep.subr.mxu0 0.0
        %1386 = vmatpush1.msra.mxu0 0.0
        %1387 = vmatprep.subr.mxu0 0.0
        %1388 = vmatpush1.msra.mxu0 0.0
        %1389 = vmatprep.subr.mxu0 0.0
        %1390 = vmatpush1.msra.mxu0 0.0
        %1391 = vmatprep.subr.mxu0 0.0
        %1392 = vmatpush1.msra.mxu0 0.0
        %1393 = vmatprep.subr.mxu0 0.0
        %1394 = vmatpush1.msra.mxu0 0.0
        %1395 = vmatprep.subr.mxu0 0.0
        %1396 = vmatpush1.msra.mxu0 0.0
        %1397 = vmatprep.subr.mxu0 0.0
        %1398 = vmatpush1.msra.mxu0 0.0
        %1399 = vmatprep.subr.mxu0 0.0
        %1400 = vmatpush1.msra.mxu0 0.0
        %1401 = vmatprep.subr.mxu0 0.0
        %1402 = vmatpush1.msra.mxu0 0.0
        %1403 = vmatprep.subr.mxu0 0.0
        %1404 = vmatpush1.msra.mxu0 0.0
        %1405 = vmatprep.mubr.f32.mxu0 0.0
        %1406 = vmatmul.mubr.f32.gmra.mrb[0].mxu0 %v1277
        %v1407 = vpop.f32.mrb[0].mxu0
        %v1408 = vadd.f32 0.0, %v1407
        %v1409 = vpop.f32.mrb[0].mxu0
        %1410 = vmatprep.mubr.f32.mxu0 0.0
        %1411 = vmatmul.mubr.f32.gmra.mrb[0].mxu0 %v1279
        %v1412 = vpop.f32.mrb[0].mxu0
        %v1413 = vadd.f32 0.0, %v1412
        %v1414 = vpop.f32.mrb[0].mxu0
        %1415 = vmatprep.mubr.f32.mxu0 0.0
        %1416 = vmatmul.mubr.f32.gmra.mrb[0].mxu0 %v1281
        %v1417 = vpop.f32.mrb[0].mxu0
        %v1418 = vadd.f32 0.0, %v1417
        %v1419 = vpop.f32.mrb[0].mxu0
        %1420 = vmatprep.mubr.f32.mxu0 0.0
        %1421 = vmatmul.mubr.f32.gmra.mrb[0].mxu0 %v1283
        %v1422 = vpop.f32.mrb[0].mxu0
        %v1423 = vadd.f32 0.0, %v1422
        %v1424 = vpop.f32.mrb[0].mxu0
        %1425 = vmatprep.mubr.f32.mxu0 0.0
        %1426 = vmatmul.mubr.f32.gmra.mrb[0].mxu0 %v1285
        %v1427 = vpop.f32.mrb[0].mxu0
        %v1428 = vadd.f32 0.0, %v1427
        %v1429 = vpop.f32.mrb[0].mxu0
        %1430 = vmatprep.mubr.f32.mxu0 0.0
        %1431 = vmatmul.mubr.f32.gmra.mrb[0].mxu0 %v1287
        %v1432 = vpop.f32.mrb[0].mxu0
        %v1433 = vadd.f32 0.0, %v1432
        %v1434 = vpop.f32.mrb[0].mxu0
        %1435 = vmatprep.mubr.f32.mxu0 0.0
        %1436 = vmatmul.mubr.f32.gmra.mrb[0].mxu0 %v1289
        %v1437 = vpop.f32.mrb[0].mxu0
        %v1438 = vadd.f32 0.0, %v1437
        %v1439 = vpop.f32.mrb[0].mxu0
        %1440 = vmatprep.mubr.f32.mxu0 0.0
        %1441 = vmatmul.mubr.f32.gmra.mrb[0].mxu0 %v1291
        %v1442 = vpop.f32.mrb[0].mxu0
        %v1443 = vadd.f32 0.0, %v1442
        %v1444 = vpop.f32.mrb[0].mxu0
        %1445 = vmatprep.mubr.f32.mxu0 0.0
        %1446 = vmatmul.mubr.f32.gmra.mrb[0].mxu0 %v1293
        %v1447 = vpop.f32.mrb[0].mxu0
        %v1448 = vadd.f32 0.0, %v1447
        %v1449 = vpop.f32.mrb[0].mxu0
        %1450 = vmatprep.mubr.f32.mxu0 0.0
        %1451 = vmatmul.mubr.f32.gmra.mrb[0].mxu0 %v1295
        %v1452 = vpop.f32.mrb[0].mxu0
        %v1453 = vadd.f32 0.0, %v1452
        %v1454 = vpop.f32.mrb[0].mxu0
        %1455 = vmatprep.mubr.f32.mxu0 0.0
        %1456 = vmatmul.mubr.f32.gmra.mrb[0].mxu0 %v1297
        %v1457 = vpop.f32.mrb[0].mxu0
        %v1458 = vadd.f32 0.0, %v1457
        %v1459 = vpop.f32.mrb[0].mxu0
        %1460 = vmatprep.mubr.f32.mxu0 0.0
        %1461 = vmatmul.mubr.f32.gmra.mrb[0].mxu0 %v1299
        %v1462 = vpop.f32.mrb[0].mxu0
        %v1463 = vadd.f32 0.0, %v1462
        %v1464 = vpop.f32.mrb[0].mxu0
        %1465 = vmatprep.mubr.f32.mxu0 0.0
        %1466 = vmatmul.mubr.f32.gmra.mrb[0].mxu0 %v1301
        %v1467 = vpop.f32.mrb[0].mxu0
        %v1468 = vadd.f32 0.0, %v1467
        %v1469 = vpop.f32.mrb[0].mxu0
        %1470 = vmatprep.mubr.f32.mxu0 0.0
        %1471 = vmatmul.mubr.f32.gmra.mrb[0].mxu0 %v1303
        %v1472 = vpop.f32.mrb[0].mxu0
        %v1473 = vadd.f32 0.0, %v1472
        %v1474 = vpop.f32.mrb[0].mxu0
        %1475 = vmatprep.mubr.f32.mxu0 0.0
        %1476 = vmatmul.mubr.f32.gmra.mrb[0].mxu0 %v1305
        %v1477 = vpop.f32.mrb[0].mxu0
        %v1478 = vadd.f32 0.0, %v1477
        %v1479 = vpop.f32.mrb[0].mxu0
        %1480 = vmatprep.mubr.f32.mxu0 0.0
        %1481 = vmatmul.mubr.f32.gmra.mrb[0].mxu0 %v1307
        %v1482 = vpop.f32.mrb[0].mxu0
        %v1483 = vadd.f32 0.0, %v1482
        %v1484 = vpop.f32.mrb[0].mxu0
        %1485 = vmatprep.mubr.f32.mxu0 0.0
        %1486 = vmatmul.mubr.f32.gmra.mrb[0].mxu0 %v1309
        %v1487 = vpop.f32.mrb[0].mxu0
        %v1488 = vadd.f32 0.0, %v1487
        %v1489 = vpop.f32.mrb[0].mxu0
        %1490 = vmatprep.mubr.f32.mxu0 0.0
        %1491 = vmatmul.mubr.f32.gmra.mrb[0].mxu0 %v1311
        %v1492 = vpop.f32.mrb[0].mxu0
        %v1493 = vadd.f32 0.0, %v1492
        %v1494 = vpop.f32.mrb[0].mxu0
        %1495 = vmatprep.mubr.f32.mxu0 0.0
        %1496 = vmatmul.mubr.f32.gmra.mrb[0].mxu0 %v1313
        %v1497 = vpop.f32.mrb[0].mxu0
        %v1498 = vadd.f32 0.0, %v1497
        %v1499 = vpop.f32.mrb[0].mxu0
        %1500 = vmatprep.mubr.f32.mxu0 0.0
        %1501 = vmatmul.mubr.f32.gmra.mrb[0].mxu0 %v1315
        %v1502 = vpop.f32.mrb[0].mxu0
        %v1503 = vadd.f32 0.0, %v1502
        %v1504 = vpop.f32.mrb[0].mxu0
        %1505 = vmatprep.mubr.f32.mxu0 0.0
        %1506 = vmatmul.mubr.f32.gmra.mrb[0].mxu0 %v1317
        %v1507 = vpop.f32.mrb[0].mxu0
        %v1508 = vadd.f32 0.0, %v1507
        %v1509 = vpop.f32.mrb[0].mxu0
        %1510 = vmatprep.mubr.f32.mxu0 0.0
        %1511 = vmatmul.mubr.f32.gmra.mrb[0].mxu0 %v1319
        %v1512 = vpop.f32.mrb[0].mxu0
        %v1513 = vadd.f32 0.0, %v1512
        %v1514 = vpop.f32.mrb[0].mxu0
        %1515 = vmatprep.mubr.f32.mxu0 0.0
        %1516 = vmatmul.mubr.f32.gmra.mrb[0].mxu0 %v1321
        %v1517 = vpop.f32.mrb[0].mxu0
        %v1518 = vadd.f32 0.0, %v1517
        %v1519 = vpop.f32.mrb[0].mxu0
        %1520 = vmatprep.mubr.f32.mxu0 0.0
        %1521 = vmatmul.mubr.f32.gmra.mrb[0].mxu0 %v1323
        %v1522 = vpop.f32.mrb[0].mxu0
        %v1523 = vadd.f32 0.0, %v1522
        %v1524 = vpop.f32.mrb[0].mxu0
        %1525 = vmatprep.mubr.f32.mxu0 0.0
        %1526 = vmatmul.mubr.f32.gmra.mrb[0].mxu0 %v1325
        %v1527 = vpop.f32.mrb[0].mxu0
        %v1528 = vadd.f32 0.0, %v1527
        %v1529 = vpop.f32.mrb[0].mxu0
        %1530 = vmatprep.mubr.f32.mxu0 0.0
        %1531 = vmatmul.mubr.f32.gmra.mrb[0].mxu0 %v1327
        %v1532 = vpop.f32.mrb[0].mxu0
        %v1533 = vadd.f32 0.0, %v1532
        %v1534 = vpop.f32.mrb[0].mxu0
        %1535 = vmatprep.mubr.f32.mxu0 0.0
        %1536 = vmatmul.mubr.f32.gmra.mrb[0].mxu0 %v1329
        %v1537 = vpop.f32.mrb[0].mxu0
        %v1538 = vadd.f32 0.0, %v1537
        %v1539 = vpop.f32.mrb[0].mxu0
        %1540 = vmatprep.mubr.f32.mxu0 0.0
        %1541 = vmatmul.mubr.f32.gmra.mrb[0].mxu0 %v1331
        %v1542 = vpop.f32.mrb[0].mxu0
        %v1543 = vadd.f32 0.0, %v1542
        %v1544 = vpop.f32.mrb[0].mxu0
        %1545 = vmatprep.mubr.f32.mxu0 0.0
        %1546 = vmatmul.mubr.f32.gmra.mrb[0].mxu0 %v1333
        %v1547 = vpop.f32.mrb[0].mxu0
        %v1548 = vadd.f32 0.0, %v1547
        %v1549 = vpop.f32.mrb[0].mxu0
        %1550 = vmatprep.mubr.f32.mxu0 0.0
        %1551 = vmatmul.mubr.f32.gmra.mrb[0].mxu0 %v1335
        %v1552 = vpop.f32.mrb[0].mxu0
        %v1553 = vadd.f32 0.0, %v1552
        %v1554 = vpop.f32.mrb[0].mxu0
        %1555 = vmatprep.mubr.f32.mxu0 0.0
        %1556 = vmatmul.mubr.f32.gmra.mrb[0].mxu0 %v1337
        %v1557 = vpop.f32.mrb[0].mxu0
        %v1558 = vadd.f32 0.0, %v1557
        %v1559 = vpop.f32.mrb[0].mxu0
        %1560 = vmatprep.mubr.f32.mxu0 0.0
        %1561 = vmatmul.mubr.f32.gmra.mrb[0].mxu0 %v1339
        %v1562 = vpop.f32.mrb[0].mxu0
        %v1563 = vadd.f32 0.0, %v1562
        %v1564 = vpop.f32.mrb[0].mxu0
        %1565 = vdwg.mxu0
        %v1566 = vadd.f32 %v1164, %v1408
        %v1567 = vadd.f32 %v1165, %v1413
        %v1568 = vadd.f32 %v1166, %v1418
        %v1569 = vadd.f32 %v1167, %v1423
        %v1570 = vadd.f32 %v1168, %v1428
        %v1571 = vadd.f32 %v1169, %v1433
        %v1572 = vadd.f32 %v1170, %v1438
        %v1573 = vadd.f32 %v1171, %v1443
        %v1574 = vadd.f32 %v1172, %v1448
        %v1575 = vadd.f32 %v1173, %v1453
        %v1576 = vadd.f32 %v1174, %v1458
        %v1577 = vadd.f32 %v1175, %v1463
        %v1578 = vadd.f32 %v1176, %v1468
        %v1579 = vadd.f32 %v1177, %v1473
        %v1580 = vadd.f32 %v1178, %v1478
        %v1581 = vadd.f32 %v1179, %v1483
        %v1582 = vadd.f32 %v1180, %v1488
        %v1583 = vadd.f32 %v1181, %v1493
        %v1584 = vadd.f32 %v1182, %v1498
        %v1585 = vadd.f32 %v1183, %v1503
        %v1586 = vadd.f32 %v1184, %v1508
        %v1587 = vadd.f32 %v1185, %v1513
        %v1588 = vadd.f32 %v1186, %v1518
        %v1589 = vadd.f32 %v1187, %v1523
        %v1590 = vadd.f32 %v1188, %v1528
        %v1591 = vadd.f32 %v1189, %v1533
        %v1592 = vadd.f32 %v1190, %v1538
        %v1593 = vadd.f32 %v1191, %v1543
        %v1594 = vadd.f32 %v1192, %v1548
        %v1595 = vadd.f32 %v1193, %v1553
        %v1596 = vadd.f32 %v1194, %v1558
        %v1597 = vadd.f32 %v1195, %v1563
        %v1599 = vsel %vm276, %v419, 0
        %v1602 = vsel %vm276, %v420, 0
        %1604 = vmatprep.subr.mxu0 0.0
        %1605 = vmatpush1.msra.mxu0 %v358
        %1606 = vmatprep.subr.mxu0 0.0
        %1607 = vmatpush1.msra.mxu0 0.0
        %1608 = vmatprep.subr.mxu0 0.0
        %1609 = vmatpush1.msra.mxu0 0.0
        %1610 = vmatprep.subr.mxu0 0.0
        %1611 = vmatpush1.msra.mxu0 0.0
        %1612 = vmatprep.subr.mxu0 0.0
        %1613 = vmatpush1.msra.mxu0 0.0
        %1614 = vmatprep.subr.mxu0 0.0
        %1615 = vmatpush1.msra.mxu0 0.0
        %1616 = vmatprep.subr.mxu0 0.0
        %1617 = vmatpush1.msra.mxu0 0.0
        %1618 = vmatprep.subr.mxu0 0.0
        %1619 = vmatpush1.msra.mxu0 0.0
        %1620 = vmatprep.subr.mxu0 0.0
        %1621 = vmatpush1.msra.mxu0 0.0
        %1622 = vmatprep.subr.mxu0 0.0
        %1623 = vmatpush1.msra.mxu0 0.0
        %1624 = vmatprep.subr.mxu0 0.0
        %1625 = vmatpush1.msra.mxu0 0.0
        %1626 = vmatprep.subr.mxu0 0.0
        %1627 = vmatpush1.msra.mxu0 0.0
        %1628 = vmatprep.subr.mxu0 0.0
        %1629 = vmatpush1.msra.mxu0 0.0
        %1630 = vmatprep.subr.mxu0 0.0
        %1631 = vmatpush1.msra.mxu0 0.0
        %1632 = vmatprep.subr.mxu0 0.0
        %1633 = vmatpush1.msra.mxu0 0.0
        %1634 = vmatprep.subr.mxu0 0.0
        %1635 = vmatpush1.msra.mxu0 0.0
        %1636 = vmatprep.subr.mxu0 0.0
        %1637 = vmatpush1.msra.mxu0 0.0
        %1638 = vmatprep.subr.mxu0 0.0
        %1639 = vmatpush1.msra.mxu0 0.0
        %1640 = vmatprep.subr.mxu0 0.0
        %1641 = vmatpush1.msra.mxu0 0.0
        %1642 = vmatprep.subr.mxu0 0.0
        %1643 = vmatpush1.msra.mxu0 0.0
        %1644 = vmatprep.subr.mxu0 0.0
        %1645 = vmatpush1.msra.mxu0 0.0
        %1646 = vmatprep.subr.mxu0 0.0
        %1647 = vmatpush1.msra.mxu0 0.0
        %1648 = vmatprep.subr.mxu0 0.0
        %1649 = vmatpush1.msra.mxu0 0.0
        %1650 = vmatprep.subr.mxu0 0.0
        %1651 = vmatpush1.msra.mxu0 0.0
        %1652 = vmatprep.subr.mxu0 0.0
        %1653 = vmatpush1.msra.mxu0 0.0
        %1654 = vmatprep.subr.mxu0 0.0
        %1655 = vmatpush1.msra.mxu0 0.0
        %1656 = vmatprep.subr.mxu0 0.0
        %1657 = vmatpush1.msra.mxu0 0.0
        %1658 = vmatprep.subr.mxu0 0.0
        %1659 = vmatpush1.msra.mxu0 0.0
        %1660 = vmatprep.subr.mxu0 0.0
        %1661 = vmatpush1.msra.mxu0 0.0
        %1662 = vmatprep.subr.mxu0 0.0
        %1663 = vmatpush1.msra.mxu0 0.0
        %1664 = vmatprep.subr.mxu0 0.0
        %1665 = vmatpush1.msra.mxu0 0.0
        %1666 = vmatprep.subr.mxu0 0.0
        %1667 = vmatpush1.msra.mxu0 0.0
        %1668 = vmatprep.mubr.f32.mxu0 0.0
        %1669 = vmatmul.mubr.f32.gmra.mrb[0].mxu0 %v432
        %v1670 = vpop.f32.mrb[0].mxu0
        %v1671 = vadd.f32 0.0, %v1670
        %v1672 = vpop.f32.mrb[0].mxu0
        %1673 = vmatprep.mubr.f32.mxu0 0.0
        %1674 = vmatmul.mubr.f32.gmra.mrb[0].mxu0 %v435
        %v1675 = vpop.f32.mrb[0].mxu0
        %v1676 = vadd.f32 0.0, %v1675
        %v1677 = vpop.f32.mrb[0].mxu0
        %1678 = vmatprep.mubr.f32.mxu0 0.0
        %1679 = vmatmul.mubr.f32.gmra.mrb[0].mxu0 %v438
        %v1680 = vpop.f32.mrb[0].mxu0
        %v1681 = vadd.f32 0.0, %v1680
        %v1682 = vpop.f32.mrb[0].mxu0
        %1683 = vmatprep.mubr.f32.mxu0 0.0
        %1684 = vmatmul.mubr.f32.gmra.mrb[0].mxu0 %v441
        %v1685 = vpop.f32.mrb[0].mxu0
        %v1686 = vadd.f32 0.0, %v1685
        %v1687 = vpop.f32.mrb[0].mxu0
        %1688 = vmatprep.mubr.f32.mxu0 0.0
        %1689 = vmatmul.mubr.f32.gmra.mrb[0].mxu0 %v444
        %v1690 = vpop.f32.mrb[0].mxu0
        %v1691 = vadd.f32 0.0, %v1690
        %v1692 = vpop.f32.mrb[0].mxu0
        %1693 = vmatprep.mubr.f32.mxu0 0.0
        %1694 = vmatmul.mubr.f32.gmra.mrb[0].mxu0 %v447
        %v1695 = vpop.f32.mrb[0].mxu0
        %v1696 = vadd.f32 0.0, %v1695
        %v1697 = vpop.f32.mrb[0].mxu0
        %1698 = vmatprep.mubr.f32.mxu0 0.0
        %1699 = vmatmul.mubr.f32.gmra.mrb[0].mxu0 %v450
        %v1700 = vpop.f32.mrb[0].mxu0
        %v1701 = vadd.f32 0.0, %v1700
        %v1702 = vpop.f32.mrb[0].mxu0
        %1703 = vmatprep.mubr.f32.mxu0 0.0
        %1704 = vmatmul.mubr.f32.gmra.mrb[0].mxu0 %v453
        %v1705 = vpop.f32.mrb[0].mxu0
        %v1706 = vadd.f32 0.0, %v1705
        %v1707 = vpop.f32.mrb[0].mxu0
        %1708 = vmatprep.mubr.f32.mxu0 0.0
        %1709 = vmatmul.mubr.f32.gmra.mrb[0].mxu0 %v456
        %v1710 = vpop.f32.mrb[0].mxu0
        %v1711 = vadd.f32 0.0, %v1710
        %v1712 = vpop.f32.mrb[0].mxu0
        %1713 = vmatprep.mubr.f32.mxu0 0.0
        %1714 = vmatmul.mubr.f32.gmra.mrb[0].mxu0 %v459
        %v1715 = vpop.f32.mrb[0].mxu0
        %v1716 = vadd.f32 0.0, %v1715
        %v1717 = vpop.f32.mrb[0].mxu0
        %1718 = vmatprep.mubr.f32.mxu0 0.0
        %1719 = vmatmul.mubr.f32.gmra.mrb[0].mxu0 %v462
        %v1720 = vpop.f32.mrb[0].mxu0
        %v1721 = vadd.f32 0.0, %v1720
        %v1722 = vpop.f32.mrb[0].mxu0
        %1723 = vmatprep.mubr.f32.mxu0 0.0
        %1724 = vmatmul.mubr.f32.gmra.mrb[0].mxu0 %v465
        %v1725 = vpop.f32.mrb[0].mxu0
        %v1726 = vadd.f32 0.0, %v1725
        %v1727 = vpop.f32.mrb[0].mxu0
        %1728 = vmatprep.mubr.f32.mxu0 0.0
        %1729 = vmatmul.mubr.f32.gmra.mrb[0].mxu0 %v468
        %v1730 = vpop.f32.mrb[0].mxu0
        %v1731 = vadd.f32 0.0, %v1730
        %v1732 = vpop.f32.mrb[0].mxu0
        %1733 = vmatprep.mubr.f32.mxu0 0.0
        %1734 = vmatmul.mubr.f32.gmra.mrb[0].mxu0 %v471
        %v1735 = vpop.f32.mrb[0].mxu0
        %v1736 = vadd.f32 0.0, %v1735
        %v1737 = vpop.f32.mrb[0].mxu0
        %1738 = vmatprep.mubr.f32.mxu0 0.0
        %1739 = vmatmul.mubr.f32.gmra.mrb[0].mxu0 %v474
        %v1740 = vpop.f32.mrb[0].mxu0
        %v1741 = vadd.f32 0.0, %v1740
        %v1742 = vpop.f32.mrb[0].mxu0
        %1743 = vmatprep.mubr.f32.mxu0 0.0
        %1744 = vmatmul.mubr.f32.gmra.mrb[0].mxu0 %v477
        %v1745 = vpop.f32.mrb[0].mxu0
        %v1746 = vadd.f32 0.0, %v1745
        %v1747 = vpop.f32.mrb[0].mxu0
        %1748 = vmatprep.mubr.f32.mxu0 0.0
        %1749 = vmatmul.mubr.f32.gmra.mrb[0].mxu0 %v480
        %v1750 = vpop.f32.mrb[0].mxu0
        %v1751 = vadd.f32 0.0, %v1750
        %v1752 = vpop.f32.mrb[0].mxu0
        %1753 = vmatprep.mubr.f32.mxu0 0.0
        %1754 = vmatmul.mubr.f32.gmra.mrb[0].mxu0 %v483
        %v1755 = vpop.f32.mrb[0].mxu0
        %v1756 = vadd.f32 0.0, %v1755
        %v1757 = vpop.f32.mrb[0].mxu0
        %1758 = vmatprep.mubr.f32.mxu0 0.0
        %1759 = vmatmul.mubr.f32.gmra.mrb[0].mxu0 %v486
        %v1760 = vpop.f32.mrb[0].mxu0
        %v1761 = vadd.f32 0.0, %v1760
        %v1762 = vpop.f32.mrb[0].mxu0
        %1763 = vmatprep.mubr.f32.mxu0 0.0
        %1764 = vmatmul.mubr.f32.gmra.mrb[0].mxu0 %v489
        %v1765 = vpop.f32.mrb[0].mxu0
        %v1766 = vadd.f32 0.0, %v1765
        %v1767 = vpop.f32.mrb[0].mxu0
        %1768 = vmatprep.mubr.f32.mxu0 0.0
        %1769 = vmatmul.mubr.f32.gmra.mrb[0].mxu0 %v492
        %v1770 = vpop.f32.mrb[0].mxu0
        %v1771 = vadd.f32 0.0, %v1770
        %v1772 = vpop.f32.mrb[0].mxu0
        %1773 = vmatprep.mubr.f32.mxu0 0.0
        %1774 = vmatmul.mubr.f32.gmra.mrb[0].mxu0 %v495
        %v1775 = vpop.f32.mrb[0].mxu0
        %v1776 = vadd.f32 0.0, %v1775
        %v1777 = vpop.f32.mrb[0].mxu0
        %1778 = vmatprep.mubr.f32.mxu0 0.0
        %1779 = vmatmul.mubr.f32.gmra.mrb[0].mxu0 %v498
        %v1780 = vpop.f32.mrb[0].mxu0
        %v1781 = vadd.f32 0.0, %v1780
        %v1782 = vpop.f32.mrb[0].mxu0
        %1783 = vmatprep.mubr.f32.mxu0 0.0
        %1784 = vmatmul.mubr.f32.gmra.mrb[0].mxu0 %v501
        %v1785 = vpop.f32.mrb[0].mxu0
        %v1786 = vadd.f32 0.0, %v1785
        %v1787 = vpop.f32.mrb[0].mxu0
        %1788 = vmatprep.mubr.f32.mxu0 0.0
        %1789 = vmatmul.mubr.f32.gmra.mrb[0].mxu0 %v504
        %v1790 = vpop.f32.mrb[0].mxu0
        %v1791 = vadd.f32 0.0, %v1790
        %v1792 = vpop.f32.mrb[0].mxu0
        %1793 = vmatprep.mubr.f32.mxu0 0.0
        %1794 = vmatmul.mubr.f32.gmra.mrb[0].mxu0 %v507
        %v1795 = vpop.f32.mrb[0].mxu0
        %v1796 = vadd.f32 0.0, %v1795
        %v1797 = vpop.f32.mrb[0].mxu0
        %1798 = vmatprep.mubr.f32.mxu0 0.0
        %1799 = vmatmul.mubr.f32.gmra.mrb[0].mxu0 %v510
        %v1800 = vpop.f32.mrb[0].mxu0
        %v1801 = vadd.f32 0.0, %v1800
        %v1802 = vpop.f32.mrb[0].mxu0
        %1803 = vmatprep.mubr.f32.mxu0 0.0
        %1804 = vmatmul.mubr.f32.gmra.mrb[0].mxu0 %v513
        %v1805 = vpop.f32.mrb[0].mxu0
        %v1806 = vadd.f32 0.0, %v1805
        %v1807 = vpop.f32.mrb[0].mxu0
        %1808 = vmatprep.mubr.f32.mxu0 0.0
        %1809 = vmatmul.mubr.f32.gmra.mrb[0].mxu0 %v516
        %v1810 = vpop.f32.mrb[0].mxu0
        %v1811 = vadd.f32 0.0, %v1810
        %v1812 = vpop.f32.mrb[0].mxu0
        %1813 = vmatprep.mubr.f32.mxu0 0.0
        %1814 = vmatmul.mubr.f32.gmra.mrb[0].mxu0 %v519
        %v1815 = vpop.f32.mrb[0].mxu0
        %v1816 = vadd.f32 0.0, %v1815
        %v1817 = vpop.f32.mrb[0].mxu0
        %1818 = vmatprep.mubr.f32.mxu0 0.0
        %1819 = vmatmul.mubr.f32.gmra.mrb[0].mxu0 %v1599
        %v1820 = vpop.f32.mrb[0].mxu0
        %v1821 = vadd.f32 0.0, %v1820
        %v1822 = vpop.f32.mrb[0].mxu0
        %1823 = vmatprep.mubr.f32.mxu0 0.0
        %1824 = vmatmul.mubr.f32.gmra.mrb[0].mxu0 %v1602
        %v1825 = vpop.f32.mrb[0].mxu0
        %v1826 = vadd.f32 0.0, %v1825
        %v1827 = vpop.f32.mrb[0].mxu0
        %1828 = vdwg.mxu0
        %v1829 = vadd.f32 %v1566, %v1671
        %v1830 = vadd.f32 %v1567, %v1676
        %v1831 = vadd.f32 %v1568, %v1681
        %v1832 = vadd.f32 %v1569, %v1686
        %v1833 = vadd.f32 %v1570, %v1691
        %v1834 = vadd.f32 %v1571, %v1696
        %v1835 = vadd.f32 %v1572, %v1701
        %v1836 = vadd.f32 %v1573, %v1706
        %v1837 = vadd.f32 %v1574, %v1711
        %v1838 = vadd.f32 %v1575, %v1716
        %v1839 = vadd.f32 %v1576, %v1721
        %v1840 = vadd.f32 %v1577, %v1726
        %v1841 = vadd.f32 %v1578, %v1731
        %v1842 = vadd.f32 %v1579, %v1736
        %v1843 = vadd.f32 %v1580, %v1741
        %v1844 = vadd.f32 %v1581, %v1746
        %v1845 = vadd.f32 %v1582, %v1751
        %v1846 = vadd.f32 %v1583, %v1756
        %v1847 = vadd.f32 %v1584, %v1761
        %v1848 = vadd.f32 %v1585, %v1766
        %v1849 = vadd.f32 %v1586, %v1771
        %v1850 = vadd.f32 %v1587, %v1776
        %v1851 = vadd.f32 %v1588, %v1781
        %v1852 = vadd.f32 %v1589, %v1786
        %v1853 = vadd.f32 %v1590, %v1791
        %v1854 = vadd.f32 %v1591, %v1796
        %v1855 = vadd.f32 %v1592, %v1801
        %v1856 = vadd.f32 %v1593, %v1806
        %v1857 = vadd.f32 %v1594, %v1811
        %v1858 = vadd.f32 %v1595, %v1816
        %v1859 = vadd.f32 %v1596, %v1821
        %v1860 = vadd.f32 %v1597, %v1826
        %v1862 = vrot.slane %v419, 1
        %v1863 = vrot.slane %v420, 1
        %v1864 = vsel %vm794, %v1862, %v1863
        %v1865 = vrot.slane %v421, 1
        %v1866 = vsel %vm794, %v1863, %v1865
        %v1867 = vsel %vm276, %v1864, 0
        %v1869 = vsel %vm276, %v1866, 0
        %1871 = vmatprep.subr.mxu0 0.0
        %1872 = vmatpush1.msra.mxu0 %v359
        %1873 = vmatprep.subr.mxu0 0.0
        %1874 = vmatpush1.msra.mxu0 0.0
        %1875 = vmatprep.subr.mxu0 0.0
        %1876 = vmatpush1.msra.mxu0 0.0
        %1877 = vmatprep.subr.mxu0 0.0
        %1878 = vmatpush1.msra.mxu0 0.0
        %1879 = vmatprep.subr.mxu0 0.0
        %1880 = vmatpush1.msra.mxu0 0.0
        %1881 = vmatprep.subr.mxu0 0.0
        %1882 = vmatpush1.msra.mxu0 0.0
        %1883 = vmatprep.subr.mxu0 0.0
        %1884 = vmatpush1.msra.mxu0 0.0
        %1885 = vmatprep.subr.mxu0 0.0
        %1886 = vmatpush1.msra.mxu0 0.0
        %1887 = vmatprep.subr.mxu0 0.0
        %1888 = vmatpush1.msra.mxu0 0.0
        %1889 = vmatprep.subr.mxu0 0.0
        %1890 = vmatpush1.msra.mxu0 0.0
        %1891 = vmatprep.subr.mxu0 0.0
        %1892 = vmatpush1.msra.mxu0 0.0
        %1893 = vmatprep.subr.mxu0 0.0
        %1894 = vmatpush1.msra.mxu0 0.0
        %1895 = vmatprep.subr.mxu0 0.0
        %1896 = vmatpush1.msra.mxu0 0.0
        %1897 = vmatprep.subr.mxu0 0.0
        %1898 = vmatpush1.msra.mxu0 0.0
        %1899 = vmatprep.subr.mxu0 0.0
        %1900 = vmatpush1.msra.mxu0 0.0
        %1901 = vmatprep.subr.mxu0 0.0
        %1902 = vmatpush1.msra.mxu0 0.0
        %1903 = vmatprep.subr.mxu0 0.0
        %1904 = vmatpush1.msra.mxu0 0.0
        %1905 = vmatprep.subr.mxu0 0.0
        %1906 = vmatpush1.msra.mxu0 0.0
        %1907 = vmatprep.subr.mxu0 0.0
        %1908 = vmatpush1.msra.mxu0 0.0
        %1909 = vmatprep.subr.mxu0 0.0
        %1910 = vmatpush1.msra.mxu0 0.0
        %1911 = vmatprep.subr.mxu0 0.0
        %1912 = vmatpush1.msra.mxu0 0.0
        %1913 = vmatprep.subr.mxu0 0.0
        %1914 = vmatpush1.msra.mxu0 0.0
        %1915 = vmatprep.subr.mxu0 0.0
        %1916 = vmatpush1.msra.mxu0 0.0
        %1917 = vmatprep.subr.mxu0 0.0
        %1918 = vmatpush1.msra.mxu0 0.0
        %1919 = vmatprep.subr.mxu0 0.0
        %1920 = vmatpush1.msra.mxu0 0.0
        %1921 = vmatprep.subr.mxu0 0.0
        %1922 = vmatpush1.msra.mxu0 0.0
        %1923 = vmatprep.subr.mxu0 0.0
        %1924 = vmatpush1.msra.mxu0 0.0
        %1925 = vmatprep.subr.mxu0 0.0
        %1926 = vmatpush1.msra.mxu0 0.0
        %1927 = vmatprep.subr.mxu0 0.0
        %1928 = vmatpush1.msra.mxu0 0.0
        %1929 = vmatprep.subr.mxu0 0.0
        %1930 = vmatpush1.msra.mxu0 0.0
        %1931 = vmatprep.subr.mxu0 0.0
        %1932 = vmatpush1.msra.mxu0 0.0
        %1933 = vmatprep.subr.mxu0 0.0
        %1934 = vmatpush1.msra.mxu0 0.0
        %1935 = vmatprep.mubr.f32.mxu0 0.0
        %1936 = vmatmul.mubr.f32.gmra.mrb[0].mxu0 %v879
        %v1937 = vpop.f32.mrb[0].mxu0
        %v1938 = vadd.f32 0.0, %v1937
        %v1939 = vpop.f32.mrb[0].mxu0
        %1940 = vmatprep.mubr.f32.mxu0 0.0
        %1941 = vmatmul.mubr.f32.gmra.mrb[0].mxu0 %v881
        %v1942 = vpop.f32.mrb[0].mxu0
        %v1943 = vadd.f32 0.0, %v1942
        %v1944 = vpop.f32.mrb[0].mxu0
        %1945 = vmatprep.mubr.f32.mxu0 0.0
        %1946 = vmatmul.mubr.f32.gmra.mrb[0].mxu0 %v883
        %v1947 = vpop.f32.mrb[0].mxu0
        %v1948 = vadd.f32 0.0, %v1947
        %v1949 = vpop.f32.mrb[0].mxu0
        %1950 = vmatprep.mubr.f32.mxu0 0.0
        %1951 = vmatmul.mubr.f32.gmra.mrb[0].mxu0 %v885
        %v1952 = vpop.f32.mrb[0].mxu0
        %v1953 = vadd.f32 0.0, %v1952
        %v1954 = vpop.f32.mrb[0].mxu0
        %1955 = vmatprep.mubr.f32.mxu0 0.0
        %1956 = vmatmul.mubr.f32.gmra.mrb[0].mxu0 %v887
        %v1957 = vpop.f32.mrb[0].mxu0
        %v1958 = vadd.f32 0.0, %v1957
        %v1959 = vpop.f32.mrb[0].mxu0
        %1960 = vmatprep.mubr.f32.mxu0 0.0
        %1961 = vmatmul.mubr.f32.gmra.mrb[0].mxu0 %v889
        %v1962 = vpop.f32.mrb[0].mxu0
        %v1963 = vadd.f32 0.0, %v1962
        %v1964 = vpop.f32.mrb[0].mxu0
        %1965 = vmatprep.mubr.f32.mxu0 0.0
        %1966 = vmatmul.mubr.f32.gmra.mrb[0].mxu0 %v891
        %v1967 = vpop.f32.mrb[0].mxu0
        %v1968 = vadd.f32 0.0, %v1967
        %v1969 = vpop.f32.mrb[0].mxu0
        %1970 = vmatprep.mubr.f32.mxu0 0.0
        %1971 = vmatmul.mubr.f32.gmra.mrb[0].mxu0 %v893
        %v1972 = vpop.f32.mrb[0].mxu0
        %v1973 = vadd.f32 0.0, %v1972
        %v1974 = vpop.f32.mrb[0].mxu0
        %1975 = vmatprep.mubr.f32.mxu0 0.0
        %1976 = vmatmul.mubr.f32.gmra.mrb[0].mxu0 %v895
        %v1977 = vpop.f32.mrb[0].mxu0
        %v1978 = vadd.f32 0.0, %v1977
        %v1979 = vpop.f32.mrb[0].mxu0
        %1980 = vmatprep.mubr.f32.mxu0 0.0
        %1981 = vmatmul.mubr.f32.gmra.mrb[0].mxu0 %v897
        %v1982 = vpop.f32.mrb[0].mxu0
        %v1983 = vadd.f32 0.0, %v1982
        %v1984 = vpop.f32.mrb[0].mxu0
        %1985 = vmatprep.mubr.f32.mxu0 0.0
        %1986 = vmatmul.mubr.f32.gmra.mrb[0].mxu0 %v899
        %v1987 = vpop.f32.mrb[0].mxu0
        %v1988 = vadd.f32 0.0, %v1987
        %v1989 = vpop.f32.mrb[0].mxu0
        %1990 = vmatprep.mubr.f32.mxu0 0.0
        %1991 = vmatmul.mubr.f32.gmra.mrb[0].mxu0 %v901
        %v1992 = vpop.f32.mrb[0].mxu0
        %v1993 = vadd.f32 0.0, %v1992
        %v1994 = vpop.f32.mrb[0].mxu0
        %1995 = vmatprep.mubr.f32.mxu0 0.0
        %1996 = vmatmul.mubr.f32.gmra.mrb[0].mxu0 %v903
        %v1997 = vpop.f32.mrb[0].mxu0
        %v1998 = vadd.f32 0.0, %v1997
        %v1999 = vpop.f32.mrb[0].mxu0
        %2000 = vmatprep.mubr.f32.mxu0 0.0
        %2001 = vmatmul.mubr.f32.gmra.mrb[0].mxu0 %v905
        %v2002 = vpop.f32.mrb[0].mxu0
        %v2003 = vadd.f32 0.0, %v2002
        %v2004 = vpop.f32.mrb[0].mxu0
        %2005 = vmatprep.mubr.f32.mxu0 0.0
        %2006 = vmatmul.mubr.f32.gmra.mrb[0].mxu0 %v907
        %v2007 = vpop.f32.mrb[0].mxu0
        %v2008 = vadd.f32 0.0, %v2007
        %v2009 = vpop.f32.mrb[0].mxu0
        %2010 = vmatprep.mubr.f32.mxu0 0.0
        %2011 = vmatmul.mubr.f32.gmra.mrb[0].mxu0 %v909
        %v2012 = vpop.f32.mrb[0].mxu0
        %v2013 = vadd.f32 0.0, %v2012
        %v2014 = vpop.f32.mrb[0].mxu0
        %2015 = vmatprep.mubr.f32.mxu0 0.0
        %2016 = vmatmul.mubr.f32.gmra.mrb[0].mxu0 %v911
        %v2017 = vpop.f32.mrb[0].mxu0
        %v2018 = vadd.f32 0.0, %v2017
        %v2019 = vpop.f32.mrb[0].mxu0
        %2020 = vmatprep.mubr.f32.mxu0 0.0
        %2021 = vmatmul.mubr.f32.gmra.mrb[0].mxu0 %v913
        %v2022 = vpop.f32.mrb[0].mxu0
        %v2023 = vadd.f32 0.0, %v2022
        %v2024 = vpop.f32.mrb[0].mxu0
        %2025 = vmatprep.mubr.f32.mxu0 0.0
        %2026 = vmatmul.mubr.f32.gmra.mrb[0].mxu0 %v915
        %v2027 = vpop.f32.mrb[0].mxu0
        %v2028 = vadd.f32 0.0, %v2027
        %v2029 = vpop.f32.mrb[0].mxu0
        %2030 = vmatprep.mubr.f32.mxu0 0.0
        %2031 = vmatmul.mubr.f32.gmra.mrb[0].mxu0 %v917
        %v2032 = vpop.f32.mrb[0].mxu0
        %v2033 = vadd.f32 0.0, %v2032
        %v2034 = vpop.f32.mrb[0].mxu0
        %2035 = vmatprep.mubr.f32.mxu0 0.0
        %2036 = vmatmul.mubr.f32.gmra.mrb[0].mxu0 %v919
        %v2037 = vpop.f32.mrb[0].mxu0
        %v2038 = vadd.f32 0.0, %v2037
        %v2039 = vpop.f32.mrb[0].mxu0
        %2040 = vmatprep.mubr.f32.mxu0 0.0
        %2041 = vmatmul.mubr.f32.gmra.mrb[0].mxu0 %v921
        %v2042 = vpop.f32.mrb[0].mxu0
        %v2043 = vadd.f32 0.0, %v2042
        %v2044 = vpop.f32.mrb[0].mxu0
        %2045 = vmatprep.mubr.f32.mxu0 0.0
        %2046 = vmatmul.mubr.f32.gmra.mrb[0].mxu0 %v923
        %v2047 = vpop.f32.mrb[0].mxu0
        %v2048 = vadd.f32 0.0, %v2047
        %v2049 = vpop.f32.mrb[0].mxu0
        %2050 = vmatprep.mubr.f32.mxu0 0.0
        %2051 = vmatmul.mubr.f32.gmra.mrb[0].mxu0 %v925
        %v2052 = vpop.f32.mrb[0].mxu0
        %v2053 = vadd.f32 0.0, %v2052
        %v2054 = vpop.f32.mrb[0].mxu0
        %2055 = vmatprep.mubr.f32.mxu0 0.0
        %2056 = vmatmul.mubr.f32.gmra.mrb[0].mxu0 %v927
        %v2057 = vpop.f32.mrb[0].mxu0
        %v2058 = vadd.f32 0.0, %v2057
        %v2059 = vpop.f32.mrb[0].mxu0
        %2060 = vmatprep.mubr.f32.mxu0 0.0
        %2061 = vmatmul.mubr.f32.gmra.mrb[0].mxu0 %v929
        %v2062 = vpop.f32.mrb[0].mxu0
        %v2063 = vadd.f32 0.0, %v2062
        %v2064 = vpop.f32.mrb[0].mxu0
        %2065 = vmatprep.mubr.f32.mxu0 0.0
        %2066 = vmatmul.mubr.f32.gmra.mrb[0].mxu0 %v931
        %v2067 = vpop.f32.mrb[0].mxu0
        %v2068 = vadd.f32 0.0, %v2067
        %v2069 = vpop.f32.mrb[0].mxu0
        %2070 = vmatprep.mubr.f32.mxu0 0.0
        %2071 = vmatmul.mubr.f32.gmra.mrb[0].mxu0 %v933
        %v2072 = vpop.f32.mrb[0].mxu0
        %v2073 = vadd.f32 0.0, %v2072
        %v2074 = vpop.f32.mrb[0].mxu0
        %2075 = vmatprep.mubr.f32.mxu0 0.0
        %2076 = vmatmul.mubr.f32.gmra.mrb[0].mxu0 %v935
        %v2077 = vpop.f32.mrb[0].mxu0
        %v2078 = vadd.f32 0.0, %v2077
        %v2079 = vpop.f32.mrb[0].mxu0
        %2080 = vmatprep.mubr.f32.mxu0 0.0
        %2081 = vmatmul.mubr.f32.gmra.mrb[0].mxu0 %v937
        %v2082 = vpop.f32.mrb[0].mxu0
        %v2083 = vadd.f32 0.0, %v2082
        %v2084 = vpop.f32.mrb[0].mxu0
        %2085 = vmatprep.mubr.f32.mxu0 0.0
        %2086 = vmatmul.mubr.f32.gmra.mrb[0].mxu0 %v1867
        %v2087 = vpop.f32.mrb[0].mxu0
        %v2088 = vadd.f32 0.0, %v2087
        %v2089 = vpop.f32.mrb[0].mxu0
        %2090 = vmatprep.mubr.f32.mxu0 0.0
        %2091 = vmatmul.mubr.f32.gmra.mrb[0].mxu0 %v1869
        %v2092 = vpop.f32.mrb[0].mxu0
        %v2093 = vadd.f32 0.0, %v2092
        %v2094 = vpop.f32.mrb[0].mxu0
        %2095 = vdwg.mxu0
        %v2096 = vadd.f32 %v1829, %v1938
        %v2097 = vadd.f32 %v1830, %v1943
        %v2098 = vadd.f32 %v1831, %v1948
        %v2099 = vadd.f32 %v1832, %v1953
        %v2100 = vadd.f32 %v1833, %v1958
        %v2101 = vadd.f32 %v1834, %v1963
        %v2102 = vadd.f32 %v1835, %v1968
        %v2103 = vadd.f32 %v1836, %v1973
        %v2104 = vadd.f32 %v1837, %v1978
        %v2105 = vadd.f32 %v1838, %v1983
        %v2106 = vadd.f32 %v1839, %v1988
        %v2107 = vadd.f32 %v1840, %v1993
        %v2108 = vadd.f32 %v1841, %v1998
        %v2109 = vadd.f32 %v1842, %v2003
        %v2110 = vadd.f32 %v1843, %v2008
        %v2111 = vadd.f32 %v1844, %v2013
        %v2112 = vadd.f32 %v1845, %v2018
        %v2113 = vadd.f32 %v1846, %v2023
        %v2114 = vadd.f32 %v1847, %v2028
        %v2115 = vadd.f32 %v1848, %v2033
        %v2116 = vadd.f32 %v1849, %v2038
        %v2117 = vadd.f32 %v1850, %v2043
        %v2118 = vadd.f32 %v1851, %v2048
        %v2119 = vadd.f32 %v1852, %v2053
        %v2120 = vadd.f32 %v1853, %v2058
        %v2121 = vadd.f32 %v1854, %v2063
        %v2122 = vadd.f32 %v1855, %v2068
        %v2123 = vadd.f32 %v1856, %v2073
        %v2124 = vadd.f32 %v1857, %v2078
        %v2125 = vadd.f32 %v1858, %v2083
        %v2126 = vadd.f32 %v1859, %v2088
        %v2127 = vadd.f32 %v1860, %v2093
        %v2128 = vrot.slane %v419, 2
        %v2129 = vrot.slane %v420, 2
        %v2130 = vsel %vm1196, %v2128, %v2129
        %v2131 = vrot.slane %v421, 2
        %v2132 = vsel %vm1196, %v2129, %v2131
        %v2133 = vsel %vm276, %v2130, 0
        %v2135 = vsel %vm276, %v2132, 0
        %2137 = vmatprep.subr.mxu0 0.0
        %2138 = vmatpush1.msra.mxu0 %v360
        %2139 = vmatprep.subr.mxu0 0.0
        %2140 = vmatpush1.msra.mxu0 0.0
        %2141 = vmatprep.subr.mxu0 0.0
        %2142 = vmatpush1.msra.mxu0 0.0
        %2143 = vmatprep.subr.mxu0 0.0
        %2144 = vmatpush1.msra.mxu0 0.0
        %2145 = vmatprep.subr.mxu0 0.0
        %2146 = vmatpush1.msra.mxu0 0.0
        %2147 = vmatprep.subr.mxu0 0.0
        %2148 = vmatpush1.msra.mxu0 0.0
        %2149 = vmatprep.subr.mxu0 0.0
        %2150 = vmatpush1.msra.mxu0 0.0
        %2151 = vmatprep.subr.mxu0 0.0
        %2152 = vmatpush1.msra.mxu0 0.0
        %2153 = vmatprep.subr.mxu0 0.0
        %2154 = vmatpush1.msra.mxu0 0.0
        %2155 = vmatprep.subr.mxu0 0.0
        %2156 = vmatpush1.msra.mxu0 0.0
        %2157 = vmatprep.subr.mxu0 0.0
        %2158 = vmatpush1.msra.mxu0 0.0
        %2159 = vmatprep.subr.mxu0 0.0
        %2160 = vmatpush1.msra.mxu0 0.0
        %2161 = vmatprep.subr.mxu0 0.0
        %2162 = vmatpush1.msra.mxu0 0.0
        %2163 = vmatprep.subr.mxu0 0.0
        %2164 = vmatpush1.msra.mxu0 0.0
        %2165 = vmatprep.subr.mxu0 0.0
        %2166 = vmatpush1.msra.mxu0 0.0
        %2167 = vmatprep.subr.mxu0 0.0
        %2168 = vmatpush1.msra.mxu0 0.0
        %2169 = vmatprep.subr.mxu0 0.0
        %2170 = vmatpush1.msra.mxu0 0.0
        %2171 = vmatprep.subr.mxu0 0.0
        %2172 = vmatpush1.msra.mxu0 0.0
        %2173 = vmatprep.subr.mxu0 0.0
        %2174 = vmatpush1.msra.mxu0 0.0
        %2175 = vmatprep.subr.mxu0 0.0
        %2176 = vmatpush1.msra.mxu0 0.0
        %2177 = vmatprep.subr.mxu0 0.0
        %2178 = vmatpush1.msra.mxu0 0.0
        %2179 = vmatprep.subr.mxu0 0.0
        %2180 = vmatpush1.msra.mxu0 0.0
        %2181 = vmatprep.subr.mxu0 0.0
        %2182 = vmatpush1.msra.mxu0 0.0
        %2183 = vmatprep.subr.mxu0 0.0
        %2184 = vmatpush1.msra.mxu0 0.0
        %2185 = vmatprep.subr.mxu0 0.0
        %2186 = vmatpush1.msra.mxu0 0.0
        %2187 = vmatprep.subr.mxu0 0.0
        %2188 = vmatpush1.msra.mxu0 0.0
        %2189 = vmatprep.subr.mxu0 0.0
        %2190 = vmatpush1.msra.mxu0 0.0
        %2191 = vmatprep.subr.mxu0 0.0
        %2192 = vmatpush1.msra.mxu0 0.0
        %2193 = vmatprep.subr.mxu0 0.0
        %2194 = vmatpush1.msra.mxu0 0.0
        %2195 = vmatprep.subr.mxu0 0.0
        %2196 = vmatpush1.msra.mxu0 0.0
        %2197 = vmatprep.subr.mxu0 0.0
        %2198 = vmatpush1.msra.mxu0 0.0
        %2199 = vmatprep.subr.mxu0 0.0
        %2200 = vmatpush1.msra.mxu0 0.0
        %2201 = vmatprep.mubr.f32.mxu0 0.0
        %2202 = vmatmul.mubr.f32.gmra.mrb[0].mxu0 %v1281
        %v2203 = vpop.f32.mrb[0].mxu0
        %v2204 = vadd.f32 0.0, %v2203
        %v2205 = vpop.f32.mrb[0].mxu0
        %2206 = vmatprep.mubr.f32.mxu0 0.0
        %2207 = vmatmul.mubr.f32.gmra.mrb[0].mxu0 %v1283
        %v2208 = vpop.f32.mrb[0].mxu0
        %v2209 = vadd.f32 0.0, %v2208
        %v2210 = vpop.f32.mrb[0].mxu0
        %2211 = vmatprep.mubr.f32.mxu0 0.0
        %2212 = vmatmul.mubr.f32.gmra.mrb[0].mxu0 %v1285
        %v2213 = vpop.f32.mrb[0].mxu0
        %v2214 = vadd.f32 0.0, %v2213
        %v2215 = vpop.f32.mrb[0].mxu0
        %2216 = vmatprep.mubr.f32.mxu0 0.0
        %2217 = vmatmul.mubr.f32.gmra.mrb[0].mxu0 %v1287
        %v2218 = vpop.f32.mrb[0].mxu0
        %v2219 = vadd.f32 0.0, %v2218
        %v2220 = vpop.f32.mrb[0].mxu0
        %2221 = vmatprep.mubr.f32.mxu0 0.0
        %2222 = vmatmul.mubr.f32.gmra.mrb[0].mxu0 %v1289
        %v2223 = vpop.f32.mrb[0].mxu0
        %v2224 = vadd.f32 0.0, %v2223
        %v2225 = vpop.f32.mrb[0].mxu0
        %2226 = vmatprep.mubr.f32.mxu0 0.0
        %2227 = vmatmul.mubr.f32.gmra.mrb[0].mxu0 %v1291
        %v2228 = vpop.f32.mrb[0].mxu0
        %v2229 = vadd.f32 0.0, %v2228
        %v2230 = vpop.f32.mrb[0].mxu0
        %2231 = vmatprep.mubr.f32.mxu0 0.0
        %2232 = vmatmul.mubr.f32.gmra.mrb[0].mxu0 %v1293
        %v2233 = vpop.f32.mrb[0].mxu0
        %v2234 = vadd.f32 0.0, %v2233
        %v2235 = vpop.f32.mrb[0].mxu0
        %2236 = vmatprep.mubr.f32.mxu0 0.0
        %2237 = vmatmul.mubr.f32.gmra.mrb[0].mxu0 %v1295
        %v2238 = vpop.f32.mrb[0].mxu0
        %v2239 = vadd.f32 0.0, %v2238
        %v2240 = vpop.f32.mrb[0].mxu0
        %2241 = vmatprep.mubr.f32.mxu0 0.0
        %2242 = vmatmul.mubr.f32.gmra.mrb[0].mxu0 %v1297
        %v2243 = vpop.f32.mrb[0].mxu0
        %v2244 = vadd.f32 0.0, %v2243
        %v2245 = vpop.f32.mrb[0].mxu0
        %2246 = vmatprep.mubr.f32.mxu0 0.0
        %2247 = vmatmul.mubr.f32.gmra.mrb[0].mxu0 %v1299
        %v2248 = vpop.f32.mrb[0].mxu0
        %v2249 = vadd.f32 0.0, %v2248
        %v2250 = vpop.f32.mrb[0].mxu0
        %2251 = vmatprep.mubr.f32.mxu0 0.0
        %2252 = vmatmul.mubr.f32.gmra.mrb[0].mxu0 %v1301
        %v2253 = vpop.f32.mrb[0].mxu0
        %v2254 = vadd.f32 0.0, %v2253
        %v2255 = vpop.f32.mrb[0].mxu0
        %2256 = vmatprep.mubr.f32.mxu0 0.0
        %2257 = vmatmul.mubr.f32.gmra.mrb[0].mxu0 %v1303
        %v2258 = vpop.f32.mrb[0].mxu0
        %v2259 = vadd.f32 0.0, %v2258
        %v2260 = vpop.f32.mrb[0].mxu0
        %2261 = vmatprep.mubr.f32.mxu0 0.0
        %2262 = vmatmul.mubr.f32.gmra.mrb[0].mxu0 %v1305
        %v2263 = vpop.f32.mrb[0].mxu0
        %v2264 = vadd.f32 0.0, %v2263
        %v2265 = vpop.f32.mrb[0].mxu0
        %2266 = vmatprep.mubr.f32.mxu0 0.0
        %2267 = vmatmul.mubr.f32.gmra.mrb[0].mxu0 %v1307
        %v2268 = vpop.f32.mrb[0].mxu0
        %v2269 = vadd.f32 0.0, %v2268
        %v2270 = vpop.f32.mrb[0].mxu0
        %2271 = vmatprep.mubr.f32.mxu0 0.0
        %2272 = vmatmul.mubr.f32.gmra.mrb[0].mxu0 %v1309
        %v2273 = vpop.f32.mrb[0].mxu0
        %v2274 = vadd.f32 0.0, %v2273
        %v2275 = vpop.f32.mrb[0].mxu0
        %2276 = vmatprep.mubr.f32.mxu0 0.0
        %2277 = vmatmul.mubr.f32.gmra.mrb[0].mxu0 %v1311
        %v2278 = vpop.f32.mrb[0].mxu0
        %v2279 = vadd.f32 0.0, %v2278
        %v2280 = vpop.f32.mrb[0].mxu0
        %2281 = vmatprep.mubr.f32.mxu0 0.0
        %2282 = vmatmul.mubr.f32.gmra.mrb[0].mxu0 %v1313
        %v2283 = vpop.f32.mrb[0].mxu0
        %v2284 = vadd.f32 0.0, %v2283
        %v2285 = vpop.f32.mrb[0].mxu0
        %2286 = vmatprep.mubr.f32.mxu0 0.0
        %2287 = vmatmul.mubr.f32.gmra.mrb[0].mxu0 %v1315
        %v2288 = vpop.f32.mrb[0].mxu0
        %v2289 = vadd.f32 0.0, %v2288
        %v2290 = vpop.f32.mrb[0].mxu0
        %2291 = vmatprep.mubr.f32.mxu0 0.0
        %2292 = vmatmul.mubr.f32.gmra.mrb[0].mxu0 %v1317
        %v2293 = vpop.f32.mrb[0].mxu0
        %v2294 = vadd.f32 0.0, %v2293
        %v2295 = vpop.f32.mrb[0].mxu0
        %2296 = vmatprep.mubr.f32.mxu0 0.0
        %2297 = vmatmul.mubr.f32.gmra.mrb[0].mxu0 %v1319
        %v2298 = vpop.f32.mrb[0].mxu0
        %v2299 = vadd.f32 0.0, %v2298
        %v2300 = vpop.f32.mrb[0].mxu0
        %2301 = vmatprep.mubr.f32.mxu0 0.0
        %2302 = vmatmul.mubr.f32.gmra.mrb[0].mxu0 %v1321
        %v2303 = vpop.f32.mrb[0].mxu0
        %v2304 = vadd.f32 0.0, %v2303
        %v2305 = vpop.f32.mrb[0].mxu0
        %2306 = vmatprep.mubr.f32.mxu0 0.0
        %2307 = vmatmul.mubr.f32.gmra.mrb[0].mxu0 %v1323
        %v2308 = vpop.f32.mrb[0].mxu0
        %v2309 = vadd.f32 0.0, %v2308
        %v2310 = vpop.f32.mrb[0].mxu0
        %2311 = vmatprep.mubr.f32.mxu0 0.0
        %2312 = vmatmul.mubr.f32.gmra.mrb[0].mxu0 %v1325
        %v2313 = vpop.f32.mrb[0].mxu0
        %v2314 = vadd.f32 0.0, %v2313
        %v2315 = vpop.f32.mrb[0].mxu0
        %2316 = vmatprep.mubr.f32.mxu0 0.0
        %2317 = vmatmul.mubr.f32.gmra.mrb[0].mxu0 %v1327
        %v2318 = vpop.f32.mrb[0].mxu0
        %v2319 = vadd.f32 0.0, %v2318
        %v2320 = vpop.f32.mrb[0].mxu0
        %2321 = vmatprep.mubr.f32.mxu0 0.0
        %2322 = vmatmul.mubr.f32.gmra.mrb[0].mxu0 %v1329
        %v2323 = vpop.f32.mrb[0].mxu0
        %v2324 = vadd.f32 0.0, %v2323
        %v2325 = vpop.f32.mrb[0].mxu0
        %2326 = vmatprep.mubr.f32.mxu0 0.0
        %2327 = vmatmul.mubr.f32.gmra.mrb[0].mxu0 %v1331
        %v2328 = vpop.f32.mrb[0].mxu0
        %v2329 = vadd.f32 0.0, %v2328
        %v2330 = vpop.f32.mrb[0].mxu0
        %2331 = vmatprep.mubr.f32.mxu0 0.0
        %2332 = vmatmul.mubr.f32.gmra.mrb[0].mxu0 %v1333
        %v2333 = vpop.f32.mrb[0].mxu0
        %v2334 = vadd.f32 0.0, %v2333
        %v2335 = vpop.f32.mrb[0].mxu0
        %2336 = vmatprep.mubr.f32.mxu0 0.0
        %2337 = vmatmul.mubr.f32.gmra.mrb[0].mxu0 %v1335
        %v2338 = vpop.f32.mrb[0].mxu0
        %v2339 = vadd.f32 0.0, %v2338
        %v2340 = vpop.f32.mrb[0].mxu0
        %2341 = vmatprep.mubr.f32.mxu0 0.0
        %2342 = vmatmul.mubr.f32.gmra.mrb[0].mxu0 %v1337
        %v2343 = vpop.f32.mrb[0].mxu0
        %v2344 = vadd.f32 0.0, %v2343
        %v2345 = vpop.f32.mrb[0].mxu0
        %2346 = vmatprep.mubr.f32.mxu0 0.0
        %2347 = vmatmul.mubr.f32.gmra.mrb[0].mxu0 %v1339
        %v2348 = vpop.f32.mrb[0].mxu0
        %v2349 = vadd.f32 0.0, %v2348
        %v2350 = vpop.f32.mrb[0].mxu0
        %2351 = vmatprep.mubr.f32.mxu0 0.0
        %2352 = vmatmul.mubr.f32.gmra.mrb[0].mxu0 %v2133
        %v2353 = vpop.f32.mrb[0].mxu0
        %v2354 = vadd.f32 0.0, %v2353
        %v2355 = vpop.f32.mrb[0].mxu0
        %2356 = vmatprep.mubr.f32.mxu0 0.0
        %2357 = vmatmul.mubr.f32.gmra.mrb[0].mxu0 %v2135
        %v2358 = vpop.f32.mrb[0].mxu0
        %v2359 = vadd.f32 0.0, %v2358
        %v2360 = vpop.f32.mrb[0].mxu0
        %2361 = vdwg.mxu0
        %v2362 = vadd.f32 %v2096, %v2204
        %v2363 = vadd.f32 %v2097, %v2209
        %v2364 = vadd.f32 %v2098, %v2214
        %v2365 = vadd.f32 %v2099, %v2219
        %v2366 = vadd.f32 %v2100, %v2224
        %v2367 = vadd.f32 %v2101, %v2229
        %v2368 = vadd.f32 %v2102, %v2234
        %v2369 = vadd.f32 %v2103, %v2239
        %v2370 = vadd.f32 %v2104, %v2244
        %v2371 = vadd.f32 %v2105, %v2249
        %v2372 = vadd.f32 %v2106, %v2254
        %v2373 = vadd.f32 %v2107, %v2259
        %v2374 = vadd.f32 %v2108, %v2264
        %v2375 = vadd.f32 %v2109, %v2269
        %v2376 = vadd.f32 %v2110, %v2274
        %v2377 = vadd.f32 %v2111, %v2279
        %v2378 = vadd.f32 %v2112, %v2284
        %v2379 = vadd.f32 %v2113, %v2289
        %v2380 = vadd.f32 %v2114, %v2294
        %v2381 = vadd.f32 %v2115, %v2299
        %v2382 = vadd.f32 %v2116, %v2304
        %v2383 = vadd.f32 %v2117, %v2309
        %v2384 = vadd.f32 %v2118, %v2314
        %v2385 = vadd.f32 %v2119, %v2319
        %v2386 = vadd.f32 %v2120, %v2324
        %v2387 = vadd.f32 %v2121, %v2329
        %v2388 = vadd.f32 %v2122, %v2334
        %v2389 = vadd.f32 %v2123, %v2339
        %v2390 = vadd.f32 %v2124, %v2344
        %v2391 = vadd.f32 %v2125, %v2349
        %v2392 = vadd.f32 %v2126, %v2354
        %v2393 = vadd.f32 %v2127, %v2359
        %v2395 = vsel %vm276, %v422, 0
        %v2398 = vsel %vm276, %v423, 0
        %2400 = vmatprep.subr.mxu0 0.0
        %2401 = vmatpush1.msra.mxu0 %v361
        %2402 = vmatprep.subr.mxu0 0.0
        %2403 = vmatpush1.msra.mxu0 0.0
        %2404 = vmatprep.subr.mxu0 0.0
        %2405 = vmatpush1.msra.mxu0 0.0
        %2406 = vmatprep.subr.mxu0 0.0
        %2407 = vmatpush1.msra.mxu0 0.0
        %2408 = vmatprep.subr.mxu0 0.0
        %2409 = vmatpush1.msra.mxu0 0.0
        %2410 = vmatprep.subr.mxu0 0.0
        %2411 = vmatpush1.msra.mxu0 0.0
        %2412 = vmatprep.subr.mxu0 0.0
        %2413 = vmatpush1.msra.mxu0 0.0
        %2414 = vmatprep.subr.mxu0 0.0
        %2415 = vmatpush1.msra.mxu0 0.0
        %2416 = vmatprep.subr.mxu0 0.0
        %2417 = vmatpush1.msra.mxu0 0.0
        %2418 = vmatprep.subr.mxu0 0.0
        %2419 = vmatpush1.msra.mxu0 0.0
        %2420 = vmatprep.subr.mxu0 0.0
        %2421 = vmatpush1.msra.mxu0 0.0
        %2422 = vmatprep.subr.mxu0 0.0
        %2423 = vmatpush1.msra.mxu0 0.0
        %2424 = vmatprep.subr.mxu0 0.0
        %2425 = vmatpush1.msra.mxu0 0.0
        %2426 = vmatprep.subr.mxu0 0.0
        %2427 = vmatpush1.msra.mxu0 0.0
        %2428 = vmatprep.subr.mxu0 0.0
        %2429 = vmatpush1.msra.mxu0 0.0
        %2430 = vmatprep.subr.mxu0 0.0
        %2431 = vmatpush1.msra.mxu0 0.0
        %2432 = vmatprep.subr.mxu0 0.0
        %2433 = vmatpush1.msra.mxu0 0.0
        %2434 = vmatprep.subr.mxu0 0.0
        %2435 = vmatpush1.msra.mxu0 0.0
        %2436 = vmatprep.subr.mxu0 0.0
        %2437 = vmatpush1.msra.mxu0 0.0
        %2438 = vmatprep.subr.mxu0 0.0
        %2439 = vmatpush1.msra.mxu0 0.0
        %2440 = vmatprep.subr.mxu0 0.0
        %2441 = vmatpush1.msra.mxu0 0.0
        %2442 = vmatprep.subr.mxu0 0.0
        %2443 = vmatpush1.msra.mxu0 0.0
        %2444 = vmatprep.subr.mxu0 0.0
        %2445 = vmatpush1.msra.mxu0 0.0
        %2446 = vmatprep.subr.mxu0 0.0
        %2447 = vmatpush1.msra.mxu0 0.0
        %2448 = vmatprep.subr.mxu0 0.0
        %2449 = vmatpush1.msra.mxu0 0.0
        %2450 = vmatprep.subr.mxu0 0.0
        %2451 = vmatpush1.msra.mxu0 0.0
        %2452 = vmatprep.subr.mxu0 0.0
        %2453 = vmatpush1.msra.mxu0 0.0
        %2454 = vmatprep.subr.mxu0 0.0
        %2455 = vmatpush1.msra.mxu0 0.0
        %2456 = vmatprep.subr.mxu0 0.0
        %2457 = vmatpush1.msra.mxu0 0.0
        %2458 = vmatprep.subr.mxu0 0.0
        %2459 = vmatpush1.msra.mxu0 0.0
        %2460 = vmatprep.subr.mxu0 0.0
        %2461 = vmatpush1.msra.mxu0 0.0
        %2462 = vmatprep.subr.mxu0 0.0
        %2463 = vmatpush1.msra.mxu0 0.0
        %2464 = vmatprep.mubr.f32.mxu0 0.0
        %2465 = vmatmul.mubr.f32.gmra.mrb[0].mxu0 %v438
        %v2466 = vpop.f32.mrb[0].mxu0
        %v2467 = vadd.f32 0.0, %v2466
        %v2468 = vpop.f32.mrb[0].mxu0
        %2469 = vmatprep.mubr.f32.mxu0 0.0
        %2470 = vmatmul.mubr.f32.gmra.mrb[0].mxu0 %v441
        %v2471 = vpop.f32.mrb[0].mxu0
        %v2472 = vadd.f32 0.0, %v2471
        %v2473 = vpop.f32.mrb[0].mxu0
        %2474 = vmatprep.mubr.f32.mxu0 0.0
        %2475 = vmatmul.mubr.f32.gmra.mrb[0].mxu0 %v444
        %v2476 = vpop.f32.mrb[0].mxu0
        %v2477 = vadd.f32 0.0, %v2476
        %v2478 = vpop.f32.mrb[0].mxu0
        %2479 = vmatprep.mubr.f32.mxu0 0.0
        %2480 = vmatmul.mubr.f32.gmra.mrb[0].mxu0 %v447
        %v2481 = vpop.f32.mrb[0].mxu0
        %v2482 = vadd.f32 0.0, %v2481
        %v2483 = vpop.f32.mrb[0].mxu0
        %2484 = vmatprep.mubr.f32.mxu0 0.0
        %2485 = vmatmul.mubr.f32.gmra.mrb[0].mxu0 %v450
        %v2486 = vpop.f32.mrb[0].mxu0
        %v2487 = vadd.f32 0.0, %v2486
        %v2488 = vpop.f32.mrb[0].mxu0
        %2489 = vmatprep.mubr.f32.mxu0 0.0
        %2490 = vmatmul.mubr.f32.gmra.mrb[0].mxu0 %v453
        %v2491 = vpop.f32.mrb[0].mxu0
        %v2492 = vadd.f32 0.0, %v2491
        %v2493 = vpop.f32.mrb[0].mxu0
        %2494 = vmatprep.mubr.f32.mxu0 0.0
        %2495 = vmatmul.mubr.f32.gmra.mrb[0].mxu0 %v456
        %v2496 = vpop.f32.mrb[0].mxu0
        %v2497 = vadd.f32 0.0, %v2496
        %v2498 = vpop.f32.mrb[0].mxu0
        %2499 = vmatprep.mubr.f32.mxu0 0.0
        %2500 = vmatmul.mubr.f32.gmra.mrb[0].mxu0 %v459
        %v2501 = vpop.f32.mrb[0].mxu0
        %v2502 = vadd.f32 0.0, %v2501
        %v2503 = vpop.f32.mrb[0].mxu0
        %2504 = vmatprep.mubr.f32.mxu0 0.0
        %2505 = vmatmul.mubr.f32.gmra.mrb[0].mxu0 %v462
        %v2506 = vpop.f32.mrb[0].mxu0
        %v2507 = vadd.f32 0.0, %v2506
        %v2508 = vpop.f32.mrb[0].mxu0
        %2509 = vmatprep.mubr.f32.mxu0 0.0
        %2510 = vmatmul.mubr.f32.gmra.mrb[0].mxu0 %v465
        %v2511 = vpop.f32.mrb[0].mxu0
        %v2512 = vadd.f32 0.0, %v2511
        %v2513 = vpop.f32.mrb[0].mxu0
        %2514 = vmatprep.mubr.f32.mxu0 0.0
        %2515 = vmatmul.mubr.f32.gmra.mrb[0].mxu0 %v468
        %v2516 = vpop.f32.mrb[0].mxu0
        %v2517 = vadd.f32 0.0, %v2516
        %v2518 = vpop.f32.mrb[0].mxu0
        %2519 = vmatprep.mubr.f32.mxu0 0.0
        %2520 = vmatmul.mubr.f32.gmra.mrb[0].mxu0 %v471
        %v2521 = vpop.f32.mrb[0].mxu0
        %v2522 = vadd.f32 0.0, %v2521
        %v2523 = vpop.f32.mrb[0].mxu0
        %2524 = vmatprep.mubr.f32.mxu0 0.0
        %2525 = vmatmul.mubr.f32.gmra.mrb[0].mxu0 %v474
        %v2526 = vpop.f32.mrb[0].mxu0
        %v2527 = vadd.f32 0.0, %v2526
        %v2528 = vpop.f32.mrb[0].mxu0
        %2529 = vmatprep.mubr.f32.mxu0 0.0
        %2530 = vmatmul.mubr.f32.gmra.mrb[0].mxu0 %v477
        %v2531 = vpop.f32.mrb[0].mxu0
        %v2532 = vadd.f32 0.0, %v2531
        %v2533 = vpop.f32.mrb[0].mxu0
        %2534 = vmatprep.mubr.f32.mxu0 0.0
        %2535 = vmatmul.mubr.f32.gmra.mrb[0].mxu0 %v480
        %v2536 = vpop.f32.mrb[0].mxu0
        %v2537 = vadd.f32 0.0, %v2536
        %v2538 = vpop.f32.mrb[0].mxu0
        %2539 = vmatprep.mubr.f32.mxu0 0.0
        %2540 = vmatmul.mubr.f32.gmra.mrb[0].mxu0 %v483
        %v2541 = vpop.f32.mrb[0].mxu0
        %v2542 = vadd.f32 0.0, %v2541
        %v2543 = vpop.f32.mrb[0].mxu0
        %2544 = vmatprep.mubr.f32.mxu0 0.0
        %2545 = vmatmul.mubr.f32.gmra.mrb[0].mxu0 %v486
        %v2546 = vpop.f32.mrb[0].mxu0
        %v2547 = vadd.f32 0.0, %v2546
        %v2548 = vpop.f32.mrb[0].mxu0
        %2549 = vmatprep.mubr.f32.mxu0 0.0
        %2550 = vmatmul.mubr.f32.gmra.mrb[0].mxu0 %v489
        %v2551 = vpop.f32.mrb[0].mxu0
        %v2552 = vadd.f32 0.0, %v2551
        %v2553 = vpop.f32.mrb[0].mxu0
        %2554 = vmatprep.mubr.f32.mxu0 0.0
        %2555 = vmatmul.mubr.f32.gmra.mrb[0].mxu0 %v492
        %v2556 = vpop.f32.mrb[0].mxu0
        %v2557 = vadd.f32 0.0, %v2556
        %v2558 = vpop.f32.mrb[0].mxu0
        %2559 = vmatprep.mubr.f32.mxu0 0.0
        %2560 = vmatmul.mubr.f32.gmra.mrb[0].mxu0 %v495
        %v2561 = vpop.f32.mrb[0].mxu0
        %v2562 = vadd.f32 0.0, %v2561
        %v2563 = vpop.f32.mrb[0].mxu0
        %2564 = vmatprep.mubr.f32.mxu0 0.0
        %2565 = vmatmul.mubr.f32.gmra.mrb[0].mxu0 %v498
        %v2566 = vpop.f32.mrb[0].mxu0
        %v2567 = vadd.f32 0.0, %v2566
        %v2568 = vpop.f32.mrb[0].mxu0
        %2569 = vmatprep.mubr.f32.mxu0 0.0
        %2570 = vmatmul.mubr.f32.gmra.mrb[0].mxu0 %v501
        %v2571 = vpop.f32.mrb[0].mxu0
        %v2572 = vadd.f32 0.0, %v2571
        %v2573 = vpop.f32.mrb[0].mxu0
        %2574 = vmatprep.mubr.f32.mxu0 0.0
        %2575 = vmatmul.mubr.f32.gmra.mrb[0].mxu0 %v504
        %v2576 = vpop.f32.mrb[0].mxu0
        %v2577 = vadd.f32 0.0, %v2576
        %v2578 = vpop.f32.mrb[0].mxu0
        %2579 = vmatprep.mubr.f32.mxu0 0.0
        %2580 = vmatmul.mubr.f32.gmra.mrb[0].mxu0 %v507
        %v2581 = vpop.f32.mrb[0].mxu0
        %v2582 = vadd.f32 0.0, %v2581
        %v2583 = vpop.f32.mrb[0].mxu0
        %2584 = vmatprep.mubr.f32.mxu0 0.0
        %2585 = vmatmul.mubr.f32.gmra.mrb[0].mxu0 %v510
        %v2586 = vpop.f32.mrb[0].mxu0
        %v2587 = vadd.f32 0.0, %v2586
        %v2588 = vpop.f32.mrb[0].mxu0
        %2589 = vmatprep.mubr.f32.mxu0 0.0
        %2590 = vmatmul.mubr.f32.gmra.mrb[0].mxu0 %v513
        %v2591 = vpop.f32.mrb[0].mxu0
        %v2592 = vadd.f32 0.0, %v2591
        %v2593 = vpop.f32.mrb[0].mxu0
        %2594 = vmatprep.mubr.f32.mxu0 0.0
        %2595 = vmatmul.mubr.f32.gmra.mrb[0].mxu0 %v516
        %v2596 = vpop.f32.mrb[0].mxu0
        %v2597 = vadd.f32 0.0, %v2596
        %v2598 = vpop.f32.mrb[0].mxu0
        %2599 = vmatprep.mubr.f32.mxu0 0.0
        %2600 = vmatmul.mubr.f32.gmra.mrb[0].mxu0 %v519
        %v2601 = vpop.f32.mrb[0].mxu0
        %v2602 = vadd.f32 0.0, %v2601
        %v2603 = vpop.f32.mrb[0].mxu0
        %2604 = vmatprep.mubr.f32.mxu0 0.0
        %2605 = vmatmul.mubr.f32.gmra.mrb[0].mxu0 %v1599
        %v2606 = vpop.f32.mrb[0].mxu0
        %v2607 = vadd.f32 0.0, %v2606
        %v2608 = vpop.f32.mrb[0].mxu0
        %2609 = vmatprep.mubr.f32.mxu0 0.0
        %2610 = vmatmul.mubr.f32.gmra.mrb[0].mxu0 %v1602
        %v2611 = vpop.f32.mrb[0].mxu0
        %v2612 = vadd.f32 0.0, %v2611
        %v2613 = vpop.f32.mrb[0].mxu0
        %2614 = vmatprep.mubr.f32.mxu0 0.0
        %2615 = vmatmul.mubr.f32.gmra.mrb[0].mxu0 %v2395
        %v2616 = vpop.f32.mrb[0].mxu0
        %v2617 = vadd.f32 0.0, %v2616
        %v2618 = vpop.f32.mrb[0].mxu0
        %2619 = vmatprep.mubr.f32.mxu0 0.0
        %2620 = vmatmul.mubr.f32.gmra.mrb[0].mxu0 %v2398
        %v2621 = vpop.f32.mrb[0].mxu0
        %v2622 = vadd.f32 0.0, %v2621
        %v2623 = vpop.f32.mrb[0].mxu0
        %2624 = vdwg.mxu0
        %v2625 = vadd.f32 %v2362, %v2467
        %v2626 = vadd.f32 %v2363, %v2472
        %v2627 = vadd.f32 %v2364, %v2477
        %v2628 = vadd.f32 %v2365, %v2482
        %v2629 = vadd.f32 %v2366, %v2487
        %v2630 = vadd.f32 %v2367, %v2492
        %v2631 = vadd.f32 %v2368, %v2497
        %v2632 = vadd.f32 %v2369, %v2502
        %v2633 = vadd.f32 %v2370, %v2507
        %v2634 = vadd.f32 %v2371, %v2512
        %v2635 = vadd.f32 %v2372, %v2517
        %v2636 = vadd.f32 %v2373, %v2522
        %v2637 = vadd.f32 %v2374, %v2527
        %v2638 = vadd.f32 %v2375, %v2532
        %v2639 = vadd.f32 %v2376, %v2537
        %v2640 = vadd.f32 %v2377, %v2542
        %v2641 = vadd.f32 %v2378, %v2547
        %v2642 = vadd.f32 %v2379, %v2552
        %v2643 = vadd.f32 %v2380, %v2557
        %v2644 = vadd.f32 %v2381, %v2562
        %v2645 = vadd.f32 %v2382, %v2567
        %v2646 = vadd.f32 %v2383, %v2572
        %v2647 = vadd.f32 %v2384, %v2577
        %v2648 = vadd.f32 %v2385, %v2582
        %v2649 = vadd.f32 %v2386, %v2587
        %v2650 = vadd.f32 %v2387, %v2592
        %v2651 = vadd.f32 %v2388, %v2597
        %v2652 = vadd.f32 %v2389, %v2602
        %v2653 = vadd.f32 %v2390, %v2607
        %v2654 = vadd.f32 %v2391, %v2612
        %v2655 = vadd.f32 %v2392, %v2617
        %v2656 = vadd.f32 %v2393, %v2622
        %v2658 = vrot.slane %v422, 1
        %v2659 = vrot.slane %v423, 1
        %v2660 = vsel %vm794, %v2658, %v2659
        %v2661 = vrot.slane %v424, 1
        %v2662 = vsel %vm794, %v2659, %v2661
        %v2663 = vsel %vm276, %v2660, 0
        %v2665 = vsel %vm276, %v2662, 0
        %2667 = vmatprep.subr.mxu0 0.0
        %2668 = vmatpush1.msra.mxu0 %v362
        %2669 = vmatprep.subr.mxu0 0.0
        %2670 = vmatpush1.msra.mxu0 0.0
        %2671 = vmatprep.subr.mxu0 0.0
        %2672 = vmatpush1.msra.mxu0 0.0
        %2673 = vmatprep.subr.mxu0 0.0
        %2674 = vmatpush1.msra.mxu0 0.0
        %2675 = vmatprep.subr.mxu0 0.0
        %2676 = vmatpush1.msra.mxu0 0.0
        %2677 = vmatprep.subr.mxu0 0.0
        %2678 = vmatpush1.msra.mxu0 0.0
        %2679 = vmatprep.subr.mxu0 0.0
        %2680 = vmatpush1.msra.mxu0 0.0
        %2681 = vmatprep.subr.mxu0 0.0
        %2682 = vmatpush1.msra.mxu0 0.0
        %2683 = vmatprep.subr.mxu0 0.0
        %2684 = vmatpush1.msra.mxu0 0.0
        %2685 = vmatprep.subr.mxu0 0.0
        %2686 = vmatpush1.msra.mxu0 0.0
        %2687 = vmatprep.subr.mxu0 0.0
        %2688 = vmatpush1.msra.mxu0 0.0
        %2689 = vmatprep.subr.mxu0 0.0
        %2690 = vmatpush1.msra.mxu0 0.0
        %2691 = vmatprep.subr.mxu0 0.0
        %2692 = vmatpush1.msra.mxu0 0.0
        %2693 = vmatprep.subr.mxu0 0.0
        %2694 = vmatpush1.msra.mxu0 0.0
        %2695 = vmatprep.subr.mxu0 0.0
        %2696 = vmatpush1.msra.mxu0 0.0
        %2697 = vmatprep.subr.mxu0 0.0
        %2698 = vmatpush1.msra.mxu0 0.0
        %2699 = vmatprep.subr.mxu0 0.0
        %2700 = vmatpush1.msra.mxu0 0.0
        %2701 = vmatprep.subr.mxu0 0.0
        %2702 = vmatpush1.msra.mxu0 0.0
        %2703 = vmatprep.subr.mxu0 0.0
        %2704 = vmatpush1.msra.mxu0 0.0
        %2705 = vmatprep.subr.mxu0 0.0
        %2706 = vmatpush1.msra.mxu0 0.0
        %2707 = vmatprep.subr.mxu0 0.0
        %2708 = vmatpush1.msra.mxu0 0.0
        %2709 = vmatprep.subr.mxu0 0.0
        %2710 = vmatpush1.msra.mxu0 0.0
        %2711 = vmatprep.subr.mxu0 0.0
        %2712 = vmatpush1.msra.mxu0 0.0
        %2713 = vmatprep.subr.mxu0 0.0
        %2714 = vmatpush1.msra.mxu0 0.0
        %2715 = vmatprep.subr.mxu0 0.0
        %2716 = vmatpush1.msra.mxu0 0.0
        %2717 = vmatprep.subr.mxu0 0.0
        %2718 = vmatpush1.msra.mxu0 0.0
        %2719 = vmatprep.subr.mxu0 0.0
        %2720 = vmatpush1.msra.mxu0 0.0
        %2721 = vmatprep.subr.mxu0 0.0
        %2722 = vmatpush1.msra.mxu0 0.0
        %2723 = vmatprep.subr.mxu0 0.0
        %2724 = vmatpush1.msra.mxu0 0.0
        %2725 = vmatprep.subr.mxu0 0.0
        %2726 = vmatpush1.msra.mxu0 0.0
        %2727 = vmatprep.subr.mxu0 0.0
        %2728 = vmatpush1.msra.mxu0 0.0
        %2729 = vmatprep.subr.mxu0 0.0
        %2730 = vmatpush1.msra.mxu0 0.0
        %2731 = vmatprep.mubr.f32.mxu0 0.0
        %2732 = vmatmul.mubr.f32.gmra.mrb[0].mxu0 %v883
        %v2733 = vpop.f32.mrb[0].mxu0
        %v2734 = vadd.f32 0.0, %v2733
        %v2735 = vpop.f32.mrb[0].mxu0
        %2736 = vmatprep.mubr.f32.mxu0 0.0
        %2737 = vmatmul.mubr.f32.gmra.mrb[0].mxu0 %v885
        %v2738 = vpop.f32.mrb[0].mxu0
        %v2739 = vadd.f32 0.0, %v2738
        %v2740 = vpop.f32.mrb[0].mxu0
        %2741 = vmatprep.mubr.f32.mxu0 0.0
        %2742 = vmatmul.mubr.f32.gmra.mrb[0].mxu0 %v887
        %v2743 = vpop.f32.mrb[0].mxu0
        %v2744 = vadd.f32 0.0, %v2743
        %v2745 = vpop.f32.mrb[0].mxu0
        %2746 = vmatprep.mubr.f32.mxu0 0.0
        %2747 = vmatmul.mubr.f32.gmra.mrb[0].mxu0 %v889
        %v2748 = vpop.f32.mrb[0].mxu0
        %v2749 = vadd.f32 0.0, %v2748
        %v2750 = vpop.f32.mrb[0].mxu0
        %2751 = vmatprep.mubr.f32.mxu0 0.0
        %2752 = vmatmul.mubr.f32.gmra.mrb[0].mxu0 %v891
        %v2753 = vpop.f32.mrb[0].mxu0
        %v2754 = vadd.f32 0.0, %v2753
        %v2755 = vpop.f32.mrb[0].mxu0
        %2756 = vmatprep.mubr.f32.mxu0 0.0
        %2757 = vmatmul.mubr.f32.gmra.mrb[0].mxu0 %v893
        %v2758 = vpop.f32.mrb[0].mxu0
        %v2759 = vadd.f32 0.0, %v2758
        %v2760 = vpop.f32.mrb[0].mxu0
        %2761 = vmatprep.mubr.f32.mxu0 0.0
        %2762 = vmatmul.mubr.f32.gmra.mrb[0].mxu0 %v895
        %v2763 = vpop.f32.mrb[0].mxu0
        %v2764 = vadd.f32 0.0, %v2763
        %v2765 = vpop.f32.mrb[0].mxu0
        %2766 = vmatprep.mubr.f32.mxu0 0.0
        %2767 = vmatmul.mubr.f32.gmra.mrb[0].mxu0 %v897
        %v2768 = vpop.f32.mrb[0].mxu0
        %v2769 = vadd.f32 0.0, %v2768
        %v2770 = vpop.f32.mrb[0].mxu0
        %2771 = vmatprep.mubr.f32.mxu0 0.0
        %2772 = vmatmul.mubr.f32.gmra.mrb[0].mxu0 %v899
        %v2773 = vpop.f32.mrb[0].mxu0
        %v2774 = vadd.f32 0.0, %v2773
        %v2775 = vpop.f32.mrb[0].mxu0
        %2776 = vmatprep.mubr.f32.mxu0 0.0
        %2777 = vmatmul.mubr.f32.gmra.mrb[0].mxu0 %v901
        %v2778 = vpop.f32.mrb[0].mxu0
        %v2779 = vadd.f32 0.0, %v2778
        %v2780 = vpop.f32.mrb[0].mxu0
        %2781 = vmatprep.mubr.f32.mxu0 0.0
        %2782 = vmatmul.mubr.f32.gmra.mrb[0].mxu0 %v903
        %v2783 = vpop.f32.mrb[0].mxu0
        %v2784 = vadd.f32 0.0, %v2783
        %v2785 = vpop.f32.mrb[0].mxu0
        %2786 = vmatprep.mubr.f32.mxu0 0.0
        %2787 = vmatmul.mubr.f32.gmra.mrb[0].mxu0 %v905
        %v2788 = vpop.f32.mrb[0].mxu0
        %v2789 = vadd.f32 0.0, %v2788
        %v2790 = vpop.f32.mrb[0].mxu0
        %2791 = vmatprep.mubr.f32.mxu0 0.0
        %2792 = vmatmul.mubr.f32.gmra.mrb[0].mxu0 %v907
        %v2793 = vpop.f32.mrb[0].mxu0
        %v2794 = vadd.f32 0.0, %v2793
        %v2795 = vpop.f32.mrb[0].mxu0
        %2796 = vmatprep.mubr.f32.mxu0 0.0
        %2797 = vmatmul.mubr.f32.gmra.mrb[0].mxu0 %v909
        %v2798 = vpop.f32.mrb[0].mxu0
        %v2799 = vadd.f32 0.0, %v2798
        %v2800 = vpop.f32.mrb[0].mxu0
        %2801 = vmatprep.mubr.f32.mxu0 0.0
        %2802 = vmatmul.mubr.f32.gmra.mrb[0].mxu0 %v911
        %v2803 = vpop.f32.mrb[0].mxu0
        %v2804 = vadd.f32 0.0, %v2803
        %v2805 = vpop.f32.mrb[0].mxu0
        %2806 = vmatprep.mubr.f32.mxu0 0.0
        %2807 = vmatmul.mubr.f32.gmra.mrb[0].mxu0 %v913
        %v2808 = vpop.f32.mrb[0].mxu0
        %v2809 = vadd.f32 0.0, %v2808
        %v2810 = vpop.f32.mrb[0].mxu0
        %2811 = vmatprep.mubr.f32.mxu0 0.0
        %2812 = vmatmul.mubr.f32.gmra.mrb[0].mxu0 %v915
        %v2813 = vpop.f32.mrb[0].mxu0
        %v2814 = vadd.f32 0.0, %v2813
        %v2815 = vpop.f32.mrb[0].mxu0
        %2816 = vmatprep.mubr.f32.mxu0 0.0
        %2817 = vmatmul.mubr.f32.gmra.mrb[0].mxu0 %v917
        %v2818 = vpop.f32.mrb[0].mxu0
        %v2819 = vadd.f32 0.0, %v2818
        %v2820 = vpop.f32.mrb[0].mxu0
        %2821 = vmatprep.mubr.f32.mxu0 0.0
        %2822 = vmatmul.mubr.f32.gmra.mrb[0].mxu0 %v919
        %v2823 = vpop.f32.mrb[0].mxu0
        %v2824 = vadd.f32 0.0, %v2823
        %v2825 = vpop.f32.mrb[0].mxu0
        %2826 = vmatprep.mubr.f32.mxu0 0.0
        %2827 = vmatmul.mubr.f32.gmra.mrb[0].mxu0 %v921
        %v2828 = vpop.f32.mrb[0].mxu0
        %v2829 = vadd.f32 0.0, %v2828
        %v2830 = vpop.f32.mrb[0].mxu0
        %2831 = vmatprep.mubr.f32.mxu0 0.0
        %2832 = vmatmul.mubr.f32.gmra.mrb[0].mxu0 %v923
        %v2833 = vpop.f32.mrb[0].mxu0
        %v2834 = vadd.f32 0.0, %v2833
        %v2835 = vpop.f32.mrb[0].mxu0
        %2836 = vmatprep.mubr.f32.mxu0 0.0
        %2837 = vmatmul.mubr.f32.gmra.mrb[0].mxu0 %v925
        %v2838 = vpop.f32.mrb[0].mxu0
        %v2839 = vadd.f32 0.0, %v2838
        %v2840 = vpop.f32.mrb[0].mxu0
        %2841 = vmatprep.mubr.f32.mxu0 0.0
        %2842 = vmatmul.mubr.f32.gmra.mrb[0].mxu0 %v927
        %v2843 = vpop.f32.mrb[0].mxu0
        %v2844 = vadd.f32 0.0, %v2843
        %v2845 = vpop.f32.mrb[0].mxu0
        %2846 = vmatprep.mubr.f32.mxu0 0.0
        %2847 = vmatmul.mubr.f32.gmra.mrb[0].mxu0 %v929
        %v2848 = vpop.f32.mrb[0].mxu0
        %v2849 = vadd.f32 0.0, %v2848
        %v2850 = vpop.f32.mrb[0].mxu0
        %2851 = vmatprep.mubr.f32.mxu0 0.0
        %2852 = vmatmul.mubr.f32.gmra.mrb[0].mxu0 %v931
        %v2853 = vpop.f32.mrb[0].mxu0
        %v2854 = vadd.f32 0.0, %v2853
        %v2855 = vpop.f32.mrb[0].mxu0
        %2856 = vmatprep.mubr.f32.mxu0 0.0
        %2857 = vmatmul.mubr.f32.gmra.mrb[0].mxu0 %v933
        %v2858 = vpop.f32.mrb[0].mxu0
        %v2859 = vadd.f32 0.0, %v2858
        %v2860 = vpop.f32.mrb[0].mxu0
        %2861 = vmatprep.mubr.f32.mxu0 0.0
        %2862 = vmatmul.mubr.f32.gmra.mrb[0].mxu0 %v935
        %v2863 = vpop.f32.mrb[0].mxu0
        %v2864 = vadd.f32 0.0, %v2863
        %v2865 = vpop.f32.mrb[0].mxu0
        %2866 = vmatprep.mubr.f32.mxu0 0.0
        %2867 = vmatmul.mubr.f32.gmra.mrb[0].mxu0 %v937
        %v2868 = vpop.f32.mrb[0].mxu0
        %v2869 = vadd.f32 0.0, %v2868
        %v2870 = vpop.f32.mrb[0].mxu0
        %2871 = vmatprep.mubr.f32.mxu0 0.0
        %2872 = vmatmul.mubr.f32.gmra.mrb[0].mxu0 %v1867
        %v2873 = vpop.f32.mrb[0].mxu0
        %v2874 = vadd.f32 0.0, %v2873
        %v2875 = vpop.f32.mrb[0].mxu0
        %2876 = vmatprep.mubr.f32.mxu0 0.0
        %2877 = vmatmul.mubr.f32.gmra.mrb[0].mxu0 %v1869
        %v2878 = vpop.f32.mrb[0].mxu0
        %v2879 = vadd.f32 0.0, %v2878
        %v2880 = vpop.f32.mrb[0].mxu0
        %2881 = vmatprep.mubr.f32.mxu0 0.0
        %2882 = vmatmul.mubr.f32.gmra.mrb[0].mxu0 %v2663
        %v2883 = vpop.f32.mrb[0].mxu0
        %v2884 = vadd.f32 0.0, %v2883
        %v2885 = vpop.f32.mrb[0].mxu0
        %2886 = vmatprep.mubr.f32.mxu0 0.0
        %2887 = vmatmul.mubr.f32.gmra.mrb[0].mxu0 %v2665
        %v2888 = vpop.f32.mrb[0].mxu0
        %v2889 = vadd.f32 0.0, %v2888
        %v2890 = vpop.f32.mrb[0].mxu0
        %2891 = vdwg.mxu0
        %v2892 = vadd.f32 %v2625, %v2734
        %v2893 = vadd.f32 %v2626, %v2739
        %v2894 = vadd.f32 %v2627, %v2744
        %v2895 = vadd.f32 %v2628, %v2749
        %v2896 = vadd.f32 %v2629, %v2754
        %v2897 = vadd.f32 %v2630, %v2759
        %v2898 = vadd.f32 %v2631, %v2764
        %v2899 = vadd.f32 %v2632, %v2769
        %v2900 = vadd.f32 %v2633, %v2774
        %v2901 = vadd.f32 %v2634, %v2779
        %v2902 = vadd.f32 %v2635, %v2784
        %v2903 = vadd.f32 %v2636, %v2789
        %v2904 = vadd.f32 %v2637, %v2794
        %v2905 = vadd.f32 %v2638, %v2799
        %v2906 = vadd.f32 %v2639, %v2804
        %v2907 = vadd.f32 %v2640, %v2809
        %v2908 = vadd.f32 %v2641, %v2814
        %v2909 = vadd.f32 %v2642, %v2819
        %v2910 = vadd.f32 %v2643, %v2824
        %v2911 = vadd.f32 %v2644, %v2829
        %v2912 = vadd.f32 %v2645, %v2834
        %v2913 = vadd.f32 %v2646, %v2839
        %v2914 = vadd.f32 %v2647, %v2844
        %v2915 = vadd.f32 %v2648, %v2849
        %v2916 = vadd.f32 %v2649, %v2854
        %v2917 = vadd.f32 %v2650, %v2859
        %v2918 = vadd.f32 %v2651, %v2864
        %v2919 = vadd.f32 %v2652, %v2869
        %v2920 = vadd.f32 %v2653, %v2874
        %v2921 = vadd.f32 %v2654, %v2879
        %v2922 = vadd.f32 %v2655, %v2884
        %v2923 = vadd.f32 %v2656, %v2889
        %v2924 = vrot.slane %v422, 2
        %v2925 = vrot.slane %v423, 2
        %v2926 = vsel %vm1196, %v2924, %v2925
        %v2927 = vrot.slane %v424, 2
        %v2928 = vsel %vm1196, %v2925, %v2927
        %v2929 = vsel %vm276, %v2926, 0
        %v2931 = vsel %vm276, %v2928, 0
        %2933 = vmatprep.subr.mxu0 0.0
        %2934 = vmatpush1.msra.mxu0 %v363
        %2935 = vmatprep.subr.mxu0 0.0
        %2936 = vmatpush1.msra.mxu0 0.0
        %2937 = vmatprep.subr.mxu0 0.0
        %2938 = vmatpush1.msra.mxu0 0.0
        %2939 = vmatprep.subr.mxu0 0.0
        %2940 = vmatpush1.msra.mxu0 0.0
        %2941 = vmatprep.subr.mxu0 0.0
        %2942 = vmatpush1.msra.mxu0 0.0
        %2943 = vmatprep.subr.mxu0 0.0
        %2944 = vmatpush1.msra.mxu0 0.0
        %2945 = vmatprep.subr.mxu0 0.0
        %2946 = vmatpush1.msra.mxu0 0.0
        %2947 = vmatprep.subr.mxu0 0.0
        %2948 = vmatpush1.msra.mxu0 0.0
        %2949 = vmatprep.subr.mxu0 0.0
        %2950 = vmatpush1.msra.mxu0 0.0
        %2951 = vmatprep.subr.mxu0 0.0
        %2952 = vmatpush1.msra.mxu0 0.0
        %2953 = vmatprep.subr.mxu0 0.0
        %2954 = vmatpush1.msra.mxu0 0.0
        %2955 = vmatprep.subr.mxu0 0.0
        %2956 = vmatpush1.msra.mxu0 0.0
        %2957 = vmatprep.subr.mxu0 0.0
        %2958 = vmatpush1.msra.mxu0 0.0
        %2959 = vmatprep.subr.mxu0 0.0
        %2960 = vmatpush1.msra.mxu0 0.0
        %2961 = vmatprep.subr.mxu0 0.0
        %2962 = vmatpush1.msra.mxu0 0.0
        %2963 = vmatprep.subr.mxu0 0.0
        %2964 = vmatpush1.msra.mxu0 0.0
        %2965 = vmatprep.subr.mxu0 0.0
        %2966 = vmatpush1.msra.mxu0 0.0
        %2967 = vmatprep.subr.mxu0 0.0
        %2968 = vmatpush1.msra.mxu0 0.0
        %2969 = vmatprep.subr.mxu0 0.0
        %2970 = vmatpush1.msra.mxu0 0.0
        %2971 = vmatprep.subr.mxu0 0.0
        %2972 = vmatpush1.msra.mxu0 0.0
        %2973 = vmatprep.subr.mxu0 0.0
        %2974 = vmatpush1.msra.mxu0 0.0
        %2975 = vmatprep.subr.mxu0 0.0
        %2976 = vmatpush1.msra.mxu0 0.0
        %2977 = vmatprep.subr.mxu0 0.0
        %2978 = vmatpush1.msra.mxu0 0.0
        %2979 = vmatprep.subr.mxu0 0.0
        %2980 = vmatpush1.msra.mxu0 0.0
        %2981 = vmatprep.subr.mxu0 0.0
        %2982 = vmatpush1.msra.mxu0 0.0
        %2983 = vmatprep.subr.mxu0 0.0
        %2984 = vmatpush1.msra.mxu0 0.0
        %2985 = vmatprep.subr.mxu0 0.0
        %2986 = vmatpush1.msra.mxu0 0.0
        %2987 = vmatprep.subr.mxu0 0.0
        %2988 = vmatpush1.msra.mxu0 0.0
        %2989 = vmatprep.subr.mxu0 0.0
        %2990 = vmatpush1.msra.mxu0 0.0
        %2991 = vmatprep.subr.mxu0 0.0
        %2992 = vmatpush1.msra.mxu0 0.0
        %2993 = vmatprep.subr.mxu0 0.0
        %2994 = vmatpush1.msra.mxu0 0.0
        %2995 = vmatprep.subr.mxu0 0.0
        %2996 = vmatpush1.msra.mxu0 0.0
        %2997 = vmatprep.mubr.f32.mxu0 0.0
        %2998 = vmatmul.mubr.f32.gmra.mrb[0].mxu0 %v1285
        %v2999 = vpop.f32.mrb[0].mxu0
        %v3000 = vadd.f32 0.0, %v2999
        %v3001 = vpop.f32.mrb[0].mxu0
        %3002 = vmatprep.mubr.f32.mxu0 0.0
        %3003 = vmatmul.mubr.f32.gmra.mrb[0].mxu0 %v1287
        %v3004 = vpop.f32.mrb[0].mxu0
        %v3005 = vadd.f32 0.0, %v3004
        %v3006 = vpop.f32.mrb[0].mxu0
        %3007 = vmatprep.mubr.f32.mxu0 0.0
        %3008 = vmatmul.mubr.f32.gmra.mrb[0].mxu0 %v1289
        %v3009 = vpop.f32.mrb[0].mxu0
        %v3010 = vadd.f32 0.0, %v3009
        %v3011 = vpop.f32.mrb[0].mxu0
        %3012 = vmatprep.mubr.f32.mxu0 0.0
        %3013 = vmatmul.mubr.f32.gmra.mrb[0].mxu0 %v1291
        %v3014 = vpop.f32.mrb[0].mxu0
        %v3015 = vadd.f32 0.0, %v3014
        %v3016 = vpop.f32.mrb[0].mxu0
        %3017 = vmatprep.mubr.f32.mxu0 0.0
        %3018 = vmatmul.mubr.f32.gmra.mrb[0].mxu0 %v1293
        %v3019 = vpop.f32.mrb[0].mxu0
        %v3020 = vadd.f32 0.0, %v3019
        %v3021 = vpop.f32.mrb[0].mxu0
        %3022 = vmatprep.mubr.f32.mxu0 0.0
        %3023 = vmatmul.mubr.f32.gmra.mrb[0].mxu0 %v1295
        %v3024 = vpop.f32.mrb[0].mxu0
        %v3025 = vadd.f32 0.0, %v3024
        %v3026 = vpop.f32.mrb[0].mxu0
        %3027 = vmatprep.mubr.f32.mxu0 0.0
        %3028 = vmatmul.mubr.f32.gmra.mrb[0].mxu0 %v1297
        %v3029 = vpop.f32.mrb[0].mxu0
        %v3030 = vadd.f32 0.0, %v3029
        %v3031 = vpop.f32.mrb[0].mxu0
        %3032 = vmatprep.mubr.f32.mxu0 0.0
        %3033 = vmatmul.mubr.f32.gmra.mrb[0].mxu0 %v1299
        %v3034 = vpop.f32.mrb[0].mxu0
        %v3035 = vadd.f32 0.0, %v3034
        %v3036 = vpop.f32.mrb[0].mxu0
        %3037 = vmatprep.mubr.f32.mxu0 0.0
        %3038 = vmatmul.mubr.f32.gmra.mrb[0].mxu0 %v1301
        %v3039 = vpop.f32.mrb[0].mxu0
        %v3040 = vadd.f32 0.0, %v3039
        %v3041 = vpop.f32.mrb[0].mxu0
        %3042 = vmatprep.mubr.f32.mxu0 0.0
        %3043 = vmatmul.mubr.f32.gmra.mrb[0].mxu0 %v1303
        %v3044 = vpop.f32.mrb[0].mxu0
        %v3045 = vadd.f32 0.0, %v3044
        %v3046 = vpop.f32.mrb[0].mxu0
        %3047 = vmatprep.mubr.f32.mxu0 0.0
        %3048 = vmatmul.mubr.f32.gmra.mrb[0].mxu0 %v1305
        %v3049 = vpop.f32.mrb[0].mxu0
        %v3050 = vadd.f32 0.0, %v3049
        %v3051 = vpop.f32.mrb[0].mxu0
        %3052 = vmatprep.mubr.f32.mxu0 0.0
        %3053 = vmatmul.mubr.f32.gmra.mrb[0].mxu0 %v1307
        %v3054 = vpop.f32.mrb[0].mxu0
        %v3055 = vadd.f32 0.0, %v3054
        %v3056 = vpop.f32.mrb[0].mxu0
        %3057 = vmatprep.mubr.f32.mxu0 0.0
        %3058 = vmatmul.mubr.f32.gmra.mrb[0].mxu0 %v1309
        %v3059 = vpop.f32.mrb[0].mxu0
        %v3060 = vadd.f32 0.0, %v3059
        %v3061 = vpop.f32.mrb[0].mxu0
        %3062 = vmatprep.mubr.f32.mxu0 0.0
        %3063 = vmatmul.mubr.f32.gmra.mrb[0].mxu0 %v1311
        %v3064 = vpop.f32.mrb[0].mxu0
        %v3065 = vadd.f32 0.0, %v3064
        %v3066 = vpop.f32.mrb[0].mxu0
        %3067 = vmatprep.mubr.f32.mxu0 0.0
        %3068 = vmatmul.mubr.f32.gmra.mrb[0].mxu0 %v1313
        %v3069 = vpop.f32.mrb[0].mxu0
        %v3070 = vadd.f32 0.0, %v3069
        %v3071 = vpop.f32.mrb[0].mxu0
        %3072 = vmatprep.mubr.f32.mxu0 0.0
        %3073 = vmatmul.mubr.f32.gmra.mrb[0].mxu0 %v1315
        %v3074 = vpop.f32.mrb[0].mxu0
        %v3075 = vadd.f32 0.0, %v3074
        %v3076 = vpop.f32.mrb[0].mxu0
        %3077 = vmatprep.mubr.f32.mxu0 0.0
        %3078 = vmatmul.mubr.f32.gmra.mrb[0].mxu0 %v1317
        %v3079 = vpop.f32.mrb[0].mxu0
        %v3080 = vadd.f32 0.0, %v3079
        %v3081 = vpop.f32.mrb[0].mxu0
        %3082 = vmatprep.mubr.f32.mxu0 0.0
        %3083 = vmatmul.mubr.f32.gmra.mrb[0].mxu0 %v1319
        %v3084 = vpop.f32.mrb[0].mxu0
        %v3085 = vadd.f32 0.0, %v3084
        %v3086 = vpop.f32.mrb[0].mxu0
        %3087 = vmatprep.mubr.f32.mxu0 0.0
        %3088 = vmatmul.mubr.f32.gmra.mrb[0].mxu0 %v1321
        %v3089 = vpop.f32.mrb[0].mxu0
        %v3090 = vadd.f32 0.0, %v3089
        %v3091 = vpop.f32.mrb[0].mxu0
        %3092 = vmatprep.mubr.f32.mxu0 0.0
        %3093 = vmatmul.mubr.f32.gmra.mrb[0].mxu0 %v1323
        %v3094 = vpop.f32.mrb[0].mxu0
        %v3095 = vadd.f32 0.0, %v3094
        %v3096 = vpop.f32.mrb[0].mxu0
        %3097 = vmatprep.mubr.f32.mxu0 0.0
        %3098 = vmatmul.mubr.f32.gmra.mrb[0].mxu0 %v1325
        %v3099 = vpop.f32.mrb[0].mxu0
        %v3100 = vadd.f32 0.0, %v3099
        %v3101 = vpop.f32.mrb[0].mxu0
        %3102 = vmatprep.mubr.f32.mxu0 0.0
        %3103 = vmatmul.mubr.f32.gmra.mrb[0].mxu0 %v1327
        %v3104 = vpop.f32.mrb[0].mxu0
        %v3105 = vadd.f32 0.0, %v3104
        %v3106 = vpop.f32.mrb[0].mxu0
        %3107 = vmatprep.mubr.f32.mxu0 0.0
        %3108 = vmatmul.mubr.f32.gmra.mrb[0].mxu0 %v1329
        %v3109 = vpop.f32.mrb[0].mxu0
        %v3110 = vadd.f32 0.0, %v3109
        %v3111 = vpop.f32.mrb[0].mxu0
        %3112 = vmatprep.mubr.f32.mxu0 0.0
        %3113 = vmatmul.mubr.f32.gmra.mrb[0].mxu0 %v1331
        %v3114 = vpop.f32.mrb[0].mxu0
        %v3115 = vadd.f32 0.0, %v3114
        %v3116 = vpop.f32.mrb[0].mxu0
        %3117 = vmatprep.mubr.f32.mxu0 0.0
        %3118 = vmatmul.mubr.f32.gmra.mrb[0].mxu0 %v1333
        %v3119 = vpop.f32.mrb[0].mxu0
        %v3120 = vadd.f32 0.0, %v3119
        %v3121 = vpop.f32.mrb[0].mxu0
        %3122 = vmatprep.mubr.f32.mxu0 0.0
        %3123 = vmatmul.mubr.f32.gmra.mrb[0].mxu0 %v1335
        %v3124 = vpop.f32.mrb[0].mxu0
        %v3125 = vadd.f32 0.0, %v3124
        %v3126 = vpop.f32.mrb[0].mxu0
        %3127 = vmatprep.mubr.f32.mxu0 0.0
        %3128 = vmatmul.mubr.f32.gmra.mrb[0].mxu0 %v1337
        %v3129 = vpop.f32.mrb[0].mxu0
        %v3130 = vadd.f32 0.0, %v3129
        %v3131 = vpop.f32.mrb[0].mxu0
        %3132 = vmatprep.mubr.f32.mxu0 0.0
        %3133 = vmatmul.mubr.f32.gmra.mrb[0].mxu0 %v1339
        %v3134 = vpop.f32.mrb[0].mxu0
        %v3135 = vadd.f32 0.0, %v3134
        %v3136 = vpop.f32.mrb[0].mxu0
        %3137 = vmatprep.mubr.f32.mxu0 0.0
        %3138 = vmatmul.mubr.f32.gmra.mrb[0].mxu0 %v2133
        %v3139 = vpop.f32.mrb[0].mxu0
        %v3140 = vadd.f32 0.0, %v3139
        %v3141 = vpop.f32.mrb[0].mxu0
        %3142 = vmatprep.mubr.f32.mxu0 0.0
        %3143 = vmatmul.mubr.f32.gmra.mrb[0].mxu0 %v2135
        %v3144 = vpop.f32.mrb[0].mxu0
        %v3145 = vadd.f32 0.0, %v3144
        %v3146 = vpop.f32.mrb[0].mxu0
        %3147 = vmatprep.mubr.f32.mxu0 0.0
        %3148 = vmatmul.mubr.f32.gmra.mrb[0].mxu0 %v2929
        %v3149 = vpop.f32.mrb[0].mxu0
        %v3150 = vadd.f32 0.0, %v3149
        %v3151 = vpop.f32.mrb[0].mxu0
        %3152 = vmatprep.mubr.f32.mxu0 0.0
        %3153 = vmatmul.mubr.f32.gmra.mrb[0].mxu0 %v2931
        %v3154 = vpop.f32.mrb[0].mxu0
        %v3155 = vadd.f32 0.0, %v3154
        %v3156 = vpop.f32.mrb[0].mxu0
        %3157 = vdwg.mxu0
        %v3158 = vadd.f32 %v2892, %v3000
        %v3159 = vadd.f32 %v2893, %v3005
        %v3160 = vadd.f32 %v2894, %v3010
        %v3161 = vadd.f32 %v2895, %v3015
        %v3162 = vadd.f32 %v2896, %v3020
        %v3163 = vadd.f32 %v2897, %v3025
        %v3164 = vadd.f32 %v2898, %v3030
        %v3165 = vadd.f32 %v2899, %v3035
        %v3166 = vadd.f32 %v2900, %v3040
        %v3167 = vadd.f32 %v2901, %v3045
        %v3168 = vadd.f32 %v2902, %v3050
        %v3169 = vadd.f32 %v2903, %v3055
        %v3170 = vadd.f32 %v2904, %v3060
        %v3171 = vadd.f32 %v2905, %v3065
        %v3172 = vadd.f32 %v2906, %v3070
        %v3173 = vadd.f32 %v2907, %v3075
        %v3174 = vadd.f32 %v2908, %v3080
        %v3175 = vadd.f32 %v2909, %v3085
        %v3176 = vadd.f32 %v2910, %v3090
        %v3177 = vadd.f32 %v2911, %v3095
        %v3178 = vadd.f32 %v2912, %v3100
        %v3179 = vadd.f32 %v2913, %v3105
        %v3180 = vadd.f32 %v2914, %v3110
        %v3181 = vadd.f32 %v2915, %v3115
        %v3182 = vadd.f32 %v2916, %v3120
        %v3183 = vadd.f32 %v2917, %v3125
        %v3184 = vadd.f32 %v2918, %v3130
        %v3185 = vadd.f32 %v2919, %v3135
        %v3186 = vadd.f32 %v2920, %v3140
        %v3187 = vadd.f32 %v2921, %v3145
        %v3188 = vadd.f32 %v2922, %v3150
        %v3189 = vadd.f32 %v2923, %v3155
        %3190 = vst.msk [vmem:[%s243] sm:$0xff] %vm276, %v3158
        %3191 = vst.msk [vmem:[%s243 + $0x8] sm:$0xff] %vm276, %v3159
        %3192 = vst.msk [vmem:[%s243 + $0x10] sm:$0xff] %vm276, %v3160
        %3193 = vst.msk [vmem:[%s243 + $0x18] sm:$0xff] %vm276, %v3161
        %3194 = vst.msk [vmem:[%s243 + $0x20] sm:$0xff] %vm276, %v3162
        %3195 = vst.msk [vmem:[%s243 + $0x28] sm:$0xff] %vm276, %v3163
        %3196 = vst.msk [vmem:[%s243 + $0x30] sm:$0xff] %vm276, %v3164
        %3197 = vst.msk [vmem:[%s243 + $0x38] sm:$0xff] %vm276, %v3165
        %3198 = vst.msk [vmem:[%s243 + $0x40] sm:$0xff] %vm276, %v3166
        %3199 = vst.msk [vmem:[%s243 + $0x48] sm:$0xff] %vm276, %v3167
        %3200 = vst.msk [vmem:[%s243 + $0x50] sm:$0xff] %vm276, %v3168
        %3201 = vst.msk [vmem:[%s243 + $0x58] sm:$0xff] %vm276, %v3169
        %3202 = vst.msk [vmem:[%s243 + $0x60] sm:$0xff] %vm276, %v3170
        %3203 = vst.msk [vmem:[%s243 + $0x68] sm:$0xff] %vm276, %v3171
        %3204 = vst.msk [vmem:[%s243 + $0x70] sm:$0xff] %vm276, %v3172
        %3205 = vst.msk [vmem:[%s243 + $0x78] sm:$0xff] %vm276, %v3173
        %3206 = vst.msk [vmem:[%s243 + $0x80] sm:$0xff] %vm276, %v3174
        %3207 = vst.msk [vmem:[%s243 + $0x88] sm:$0xff] %vm276, %v3175
        %3208 = vst.msk [vmem:[%s243 + $0x90] sm:$0xff] %vm276, %v3176
        %3209 = vst.msk [vmem:[%s243 + $0x98] sm:$0xff] %vm276, %v3177
        %3210 = vst.msk [vmem:[%s243 + $0xa0] sm:$0xff] %vm276, %v3178
        %3211 = vst.msk [vmem:[%s243 + $0xa8] sm:$0xff] %vm276, %v3179
        %3212 = vst.msk [vmem:[%s243 + $0xb0] sm:$0xff] %vm276, %v3180
        %3213 = vst.msk [vmem:[%s243 + $0xb8] sm:$0xff] %vm276, %v3181
        %3214 = vst.msk [vmem:[%s243 + $0xc0] sm:$0xff] %vm276, %v3182
        %3215 = vst.msk [vmem:[%s243 + $0xc8] sm:$0xff] %vm276, %v3183
        %3216 = vst.msk [vmem:[%s243 + $0xd0] sm:$0xff] %vm276, %v3184
        %3217 = vst.msk [vmem:[%s243 + $0xd8] sm:$0xff] %vm276, %v3185
        %3218 = vst.msk [vmem:[%s243 + $0xe0] sm:$0xff] %vm276, %v3186
        %3219 = vst.msk [vmem:[%s243 + $0xe8] sm:$0xff] %vm276, %v3187
        %3220 = vst.msk [vmem:[%s243 + $0xf0] sm:$0xff] %vm276, %v3188
        %3221 = vst.msk [vmem:[%s243 + $0xf8] sm:$0xff] %vm276, %v3189
        %v3222 = vsel %vm276, %v3158, 0.0
        %v3223 = vsel %vm276, %v3159, 0.0
        %v3224 = vadd.f32 %v3222, %v3223
        %v3225 = vsel %vm276, %v3160, 0.0
        %v3226 = vadd.f32 %v3224, %v3225
        %v3227 = vsel %vm276, %v3161, 0.0
        %v3228 = vadd.f32 %v3226, %v3227
        %v3229 = vsel %vm276, %v3162, 0.0
        %v3230 = vadd.f32 %v3228, %v3229
        %v3231 = vsel %vm276, %v3163, 0.0
        %v3232 = vadd.f32 %v3230, %v3231
        %v3233 = vsel %vm276, %v3164, 0.0
        %v3234 = vadd.f32 %v3232, %v3233
        %v3235 = vsel %vm276, %v3165, 0.0
        %v3236 = vadd.f32 %v3234, %v3235
        %v3237 = vsel %vm276, %v3166, 0.0
        %v3238 = vadd.f32 %v3236, %v3237
        %v3239 = vsel %vm276, %v3167, 0.0
        %v3240 = vadd.f32 %v3238, %v3239
        %v3241 = vsel %vm276, %v3168, 0.0
        %v3242 = vadd.f32 %v3240, %v3241
        %v3243 = vsel %vm276, %v3169, 0.0
        %v3244 = vadd.f32 %v3242, %v3243
        %v3245 = vsel %vm276, %v3170, 0.0
        %v3246 = vadd.f32 %v3244, %v3245
        %v3247 = vsel %vm276, %v3171, 0.0
        %v3248 = vadd.f32 %v3246, %v3247
        %v3249 = vsel %vm276, %v3172, 0.0
        %v3250 = vadd.f32 %v3248, %v3249
        %v3251 = vsel %vm276, %v3173, 0.0
        %v3252 = vadd.f32 %v3250, %v3251
        %v3253 = vsel %vm276, %v3174, 0.0
        %v3254 = vadd.f32 %v3252, %v3253
        %v3255 = vsel %vm276, %v3175, 0.0
        %v3256 = vadd.f32 %v3254, %v3255
        %v3257 = vsel %vm276, %v3176, 0.0
        %v3258 = vadd.f32 %v3256, %v3257
        %v3259 = vsel %vm276, %v3177, 0.0
        %v3260 = vadd.f32 %v3258, %v3259
        %v3261 = vsel %vm276, %v3178, 0.0
        %v3262 = vadd.f32 %v3260, %v3261
        %v3263 = vsel %vm276, %v3179, 0.0
        %v3264 = vadd.f32 %v3262, %v3263
        %v3265 = vsel %vm276, %v3180, 0.0
        %v3266 = vadd.f32 %v3264, %v3265
        %v3267 = vsel %vm276, %v3181, 0.0
        %v3268 = vadd.f32 %v3266, %v3267
        %v3269 = vsel %vm276, %v3182, 0.0
        %v3270 = vadd.f32 %v3268, %v3269
        %v3271 = vsel %vm276, %v3183, 0.0
        %v3272 = vadd.f32 %v3270, %v3271
        %v3273 = vsel %vm276, %v3184, 0.0
        %v3274 = vadd.f32 %v3272, %v3273
        %v3275 = vsel %vm276, %v3185, 0.0
        %v3276 = vadd.f32 %v3274, %v3275
        %v3277 = vsel %vm276, %v3186, 0.0
        %v3278 = vadd.f32 %v3276, %v3277
        %v3279 = vsel %vm276, %v3187, 0.0
        %v3280 = vadd.f32 %v3278, %v3279
        %v3281 = vsel %vm276, %v3188, 0.0
        %v3282 = vadd.f32 %v3280, %v3281
        %v3283 = vsel %vm276, %v3189, 0.0
        %v3284 = vadd.f32 %v3282, %v3283
        %v3285 = vrot.slane %v3284, 4
        %v3286 = vadd.f32 %v3284, %v3285
        %v3287 = vrot.slane %v3286, 2
        %v3288 = vadd.f32 %v3286, %v3287
        %v3289 = vrot.slane %v3288, 1
        %v3290 = vadd.f32 %v3288, %v3289
        %v3291 = vadd.f32 %v3290, 0.0
        %v3292 = vmul.f32 %v3158, %v3158
        %v3293 = vmul.f32 %v3159, %v3159
        %v3294 = vmul.f32 %v3160, %v3160
        %v3295 = vmul.f32 %v3161, %v3161
        %v3296 = vmul.f32 %v3162, %v3162
        %v3297 = vmul.f32 %v3163, %v3163
        %v3298 = vmul.f32 %v3164, %v3164
        %v3299 = vmul.f32 %v3165, %v3165
        %v3300 = vmul.f32 %v3166, %v3166
        %v3301 = vmul.f32 %v3167, %v3167
        %v3302 = vmul.f32 %v3168, %v3168
        %v3303 = vmul.f32 %v3169, %v3169
        %v3304 = vmul.f32 %v3170, %v3170
        %v3305 = vmul.f32 %v3171, %v3171
        %v3306 = vmul.f32 %v3172, %v3172
        %v3307 = vmul.f32 %v3173, %v3173
        %v3308 = vmul.f32 %v3174, %v3174
        %v3309 = vmul.f32 %v3175, %v3175
        %v3310 = vmul.f32 %v3176, %v3176
        %v3311 = vmul.f32 %v3177, %v3177
        %v3312 = vmul.f32 %v3178, %v3178
        %v3313 = vmul.f32 %v3179, %v3179
        %v3314 = vmul.f32 %v3180, %v3180
        %v3315 = vmul.f32 %v3181, %v3181
        %v3316 = vmul.f32 %v3182, %v3182
        %v3317 = vmul.f32 %v3183, %v3183
        %v3318 = vmul.f32 %v3184, %v3184
        %v3319 = vmul.f32 %v3185, %v3185
        %v3320 = vmul.f32 %v3186, %v3186
        %v3321 = vmul.f32 %v3187, %v3187
        %v3322 = vmul.f32 %v3188, %v3188
        %v3323 = vmul.f32 %v3189, %v3189
        %v3324 = vsel %vm276, %v3292, 0.0
        %v3325 = vsel %vm276, %v3293, 0.0
        %v3326 = vadd.f32 %v3324, %v3325
        %v3327 = vsel %vm276, %v3294, 0.0
        %v3328 = vadd.f32 %v3326, %v3327
        %v3329 = vsel %vm276, %v3295, 0.0
        %v3330 = vadd.f32 %v3328, %v3329
        %v3331 = vsel %vm276, %v3296, 0.0
        %v3332 = vadd.f32 %v3330, %v3331
        %v3333 = vsel %vm276, %v3297, 0.0
        %v3334 = vadd.f32 %v3332, %v3333
        %v3335 = vsel %vm276, %v3298, 0.0
        %v3336 = vadd.f32 %v3334, %v3335
        %v3337 = vsel %vm276, %v3299, 0.0
        %v3338 = vadd.f32 %v3336, %v3337
        %v3339 = vsel %vm276, %v3300, 0.0
        %v3340 = vadd.f32 %v3338, %v3339
        %v3341 = vsel %vm276, %v3301, 0.0
        %v3342 = vadd.f32 %v3340, %v3341
        %v3343 = vsel %vm276, %v3302, 0.0
        %v3344 = vadd.f32 %v3342, %v3343
        %v3345 = vsel %vm276, %v3303, 0.0
        %v3346 = vadd.f32 %v3344, %v3345
        %v3347 = vsel %vm276, %v3304, 0.0
        %v3348 = vadd.f32 %v3346, %v3347
        %v3349 = vsel %vm276, %v3305, 0.0
        %v3350 = vadd.f32 %v3348, %v3349
        %v3351 = vsel %vm276, %v3306, 0.0
        %v3352 = vadd.f32 %v3350, %v3351
        %v3353 = vsel %vm276, %v3307, 0.0
        %v3354 = vadd.f32 %v3352, %v3353
        %v3355 = vsel %vm276, %v3308, 0.0
        %v3356 = vadd.f32 %v3354, %v3355
        %v3357 = vsel %vm276, %v3309, 0.0
        %v3358 = vadd.f32 %v3356, %v3357
        %v3359 = vsel %vm276, %v3310, 0.0
        %v3360 = vadd.f32 %v3358, %v3359
        %v3361 = vsel %vm276, %v3311, 0.0
        %v3362 = vadd.f32 %v3360, %v3361
        %v3363 = vsel %vm276, %v3312, 0.0
        %v3364 = vadd.f32 %v3362, %v3363
        %v3365 = vsel %vm276, %v3313, 0.0
        %v3366 = vadd.f32 %v3364, %v3365
        %v3367 = vsel %vm276, %v3314, 0.0
        %v3368 = vadd.f32 %v3366, %v3367
        %v3369 = vsel %vm276, %v3315, 0.0
        %v3370 = vadd.f32 %v3368, %v3369
        %v3371 = vsel %vm276, %v3316, 0.0
        %v3372 = vadd.f32 %v3370, %v3371
        %v3373 = vsel %vm276, %v3317, 0.0
        %v3374 = vadd.f32 %v3372, %v3373
        %v3375 = vsel %vm276, %v3318, 0.0
        %v3376 = vadd.f32 %v3374, %v3375
        %v3377 = vsel %vm276, %v3319, 0.0
        %v3378 = vadd.f32 %v3376, %v3377
        %v3379 = vsel %vm276, %v3320, 0.0
        %v3380 = vadd.f32 %v3378, %v3379
        %v3381 = vsel %vm276, %v3321, 0.0
        %v3382 = vadd.f32 %v3380, %v3381
        %v3383 = vsel %vm276, %v3322, 0.0
        %v3384 = vadd.f32 %v3382, %v3383
        %v3385 = vsel %vm276, %v3323, 0.0
        %v3386 = vadd.f32 %v3384, %v3385
        %v3387 = vrot.slane %v3386, 4
        %v3388 = vadd.f32 %v3386, %v3387
        %v3389 = vrot.slane %v3388, 2
        %v3390 = vadd.f32 %v3388, %v3389
        %v3391 = vrot.slane %v3390, 1
        %v3392 = vadd.f32 %v3390, %v3391
        %v3393 = vadd.f32 %v3392, 0.0
        %3394 = vst.msk [vmem:[%s227] sm:$0x1] %vm285, %v3291
        %3395 = vst.msk [vmem:[%s233] sm:$0x1] %vm285, %v3393
        %p3396 = scmp.lt.s32.totalorder %s23, 1
        %s3397 = scalar_select %p3396, %s23, 1
        %s3398 = smul.addr %s3397, 32
        %s3399 = smul.addr %s3398, 8
        %s3400 = scalar_lea.vmem %s3, %s3399
        %s3401 = sand.u32 %s125, 1
        %s3402 = scalar_lea.sflag [#allocation4], %s3401
        %s3403 = sand.u32 %s125, 1
        %s3404 = scalar_lea.vmem [#allocation3], %s3403
        %s3405 = sand.u32 %s151, 1
        %s3406 = scalar_lea.sflag [#allocation6], %s3405
        %s3407 = sand.u32 %s151, 1
        %s3408 = scalar_lea.vmem [#allocation5], %s3407
        // Predicated region
        $region33: #{tpu_custom_call.1} parent=31 // pred_check
          %p3409 = pneg %p109
        $region34: #{tpu_custom_call.1} parent=31 // pred_check_branch
          %3411 = sbr.rel (%p3409) target = $region36
        $region35: #{tpu_custom_call.1} parent=31 // pred_region
          _
        $region36: #{tpu_custom_call.1} parent=31 // pred_fallthru
          _
        // Predicated region
        $region37: #{tpu_custom_call.1} parent=31 // pred_check
          %p3412 = pneg %p135
        $region38: #{tpu_custom_call.1} parent=31 // pred_check_branch
          %3414 = sbr.rel (%p3412) target = $region40
        $region39: #{tpu_custom_call.1} parent=31 // pred_region
          %s3416 = ssub.s32 16, 16
          %3417 = vsyncadd %s3402, %s3416
          %s3418 = smul.addr %s23, 16
          %s3419 = scalar_lea.hbm %s4, %s3418
          %s3421 = sshll.u32 %s3404, 4
          %s3422 = int_to_ptr.vmem [resolvable:$true] %s3421
          %3424 = dma.vmem_to_hbm [thread:$0]  %s3422, 16, %s3419, %s3402
        $region40: #{tpu_custom_call.1} parent=31 // pred_fallthru
          _
        // Predicated region
        $region41: #{tpu_custom_call.1} parent=31 // pred_check
          %p3425 = pneg %p161
        $region42: #{tpu_custom_call.1} parent=31 // pred_check_branch
          %3427 = sbr.rel (%p3425) target = $region44
        $region43: #{tpu_custom_call.1} parent=31 // pred_region
          %s3429 = ssub.s32 16, 16
          %3430 = vsyncadd %s3406, %s3429
          %s3431 = smul.addr %s23, 16
          %s3432 = scalar_lea.hbm %s5, %s3431
          %s3434 = sshll.u32 %s3408, 4
          %s3435 = int_to_ptr.vmem [resolvable:$true] %s3434
          %3437 = dma.vmem_to_hbm [thread:$0]  %s3435, 16, %s3432, %s3406
        $region44: #{tpu_custom_call.1} parent=31 // pred_fallthru
          _
      $region32: #{tpu_custom_call.1} parent=5 // pred_fallthru
        _
      %p3438 = scmp.le.s32.totalorder 2, %s18
      // Predicated region
      $region45: #{tpu_custom_call.1} parent=5 // pred_check
        %p3439 = pneg %p3438
      $region46: #{tpu_custom_call.1} parent=5 // pred_check_branch
        %3441 = sbr.rel (%p3439) target = $region48
      $region47: #{tpu_custom_call.1} parent=5 // pred_region
        %s3442 = ssub.s32 %s18, 2
        // Predicated region
        $region49: #{tpu_custom_call.1} parent=47 // pred_check
          %p3443 = pneg %p115
        $region50: #{tpu_custom_call.1} parent=47 // pred_check_branch
          %3445 = sbr.rel (%p3443) target = $region52
        $region51: #{tpu_custom_call.1} parent=47 // pred_region
          %p3446 = scmp.lt.s32.totalorder %s24, 1
          %s3447 = scalar_select %p3446, %s24, 1
          %s3448 = smul.addr %s3447, 32
          %s3449 = smul.addr %s3448, 8
          %s3450 = scalar_lea.vmem %s3, %s3449
        $region52: #{tpu_custom_call.1} parent=47 // pred_fallthru
          _
        // Predicated region
        $region53: #{tpu_custom_call.1} parent=47 // pred_check
          %p3451 = pneg %p141
        $region54: #{tpu_custom_call.1} parent=47 // pred_check_branch
          %3453 = sbr.rel (%p3451) target = $region56
        $region55: #{tpu_custom_call.1} parent=47 // pred_region
          %s3454 = sand.u32 %s126, 1
          %s3455 = scalar_lea.sflag [#allocation4], %s3454
          %s3456 = sand.u32 %s126, 1
          %s3457 = scalar_lea.vmem [#allocation3], %s3456
          %3458 = dma.done %s3455, 16
        $region56: #{tpu_custom_call.1} parent=47 // pred_fallthru
          _
        // Predicated region
        $region57: #{tpu_custom_call.1} parent=47 // pred_check
          %p3459 = pneg %p167
        $region58: #{tpu_custom_call.1} parent=47 // pred_check_branch
          %3461 = sbr.rel (%p3459) target = $region60
        $region59: #{tpu_custom_call.1} parent=47 // pred_region
          %s3462 = sand.u32 %s152, 1
          %s3463 = scalar_lea.sflag [#allocation6], %s3462
          %s3464 = sand.u32 %s152, 1
          %s3465 = scalar_lea.vmem [#allocation5], %s3464
          %3466 = dma.done %s3463, 16
        $region60: #{tpu_custom_call.1} parent=47 // pred_fallthru
          _
      $region48: #{tpu_custom_call.1} parent=5 // pred_fallthru
        _
    $region6: #{tpu_custom_call.1} parent=1 // loop_footer
      %s22 = sadd.s32 1, %s18
    $region7: #{tpu_custom_call.1} parent=1 // loop_footer_branch
      %17 = sbr.rel target = $region3
    $region8: #{tpu_custom_call.1} parent=1 // loop_exit
      _
    %3467 = vsyncpa [#allocation4], 1
    %s3468 = scalar_lea.sflag [#allocation4], 1
    %3469 = vsyncpa %s3468, 1
    %3470 = vsyncpa [#allocation6], 1
    %s3471 = scalar_lea.sflag [#allocation6], 1
    %3472 = vsyncpa %s3471, 1

</llo_original>
